<compile_context>
chip_gen: v6e
topology: v6e:2x2x1
jax: 0.10.0
libtpu: 0.0.40
codegen_flags: <defaults>
</compile_context>

<pallas_src>
import functools

import jax
import jax.numpy as jnp
from jax.experimental import pallas as pl
from jax.experimental.pallas import tpu as pltpu


# ---------------------------------------------------------------------------
# Fused Pallas kernel
# ---------------------------------------------------------------------------

def _layernorm(x, g, b, eps=1e-12):
    mu = jnp.mean(x, axis=-1, keepdims=True)
    var = jnp.mean((x - mu) ** 2, axis=-1, keepdims=True)
    return (x - mu) * jax.lax.rsqrt(var + eps) * g + b


def _bert_fused_kernel(
    emb_ref, mask_ref,
    emb_ln_g_ref, emb_ln_b_ref,
    wqkv_ref, bqkv_ref, wo_ref, bo_ref,
    ln1_g_ref, ln1_b_ref,
    wi_ref, bi_ref, wf_ref, bf_ref,
    ln2_g_ref, ln2_b_ref,
    wp_ref, bp_ref,
    w1_ref, b1_ref, w2_ref, b2_ref,
    o_ref,
    *, B, S, H, nh, L):
    f32 = jnp.float32
    bf16 = jnp.bfloat16
    dh = H // nh
    scale = 1.0 / float(dh) ** 0.5

    # Embedding LayerNorm (f32).
    x = _layernorm(emb_ref[...], emb_ln_g_ref[...], emb_ln_b_ref[...])      # [B*S, H]

    # Additive attention mask, computed once and hoisted: [B, 1, S].
    bias = ((1.0 - mask_ref[...]) * -10000.0)[:, None, :]

    for l in range(L):                                      # static unroll (small L)
        # ---- self attention: fused QKV projection (bf16 MXU, f32 accum) ----
        qkv = jnp.dot(x.astype(bf16), wqkv_ref[l],
                      preferred_element_type=f32) + bqkv_ref[l]              # [B*S, 3H]
        q, k, v = qkv[:, :H], qkv[:, H:2 * H], qkv[:, 2 * H:]

        wo_l = wo_ref[l]                                                     # [H, H] bf16
        attn = jnp.zeros((B * S, H), f32)
        for h in range(nh):                                 # static unroll over heads
            sl = slice(h * dh, (h + 1) * dh)
            qh = q[:, sl].reshape(B, S, dh).astype(bf16)
            kh = k[:, sl].reshape(B, S, dh).astype(bf16)
            vh = v[:, sl].reshape(B, S, dh).astype(bf16)
            s = jnp.einsum("bqd,bkd->bqk", qh, kh,
                           preferred_element_type=f32) * scale + bias        # [B, S, S]
            m = jnp.max(s, axis=-1, keepdims=True)
            p = jnp.exp(s - m)
            p = p * pl.reciprocal(jnp.sum(p, axis=-1, keepdims=True), approx=True)
            ctx_h = jnp.einsum("bqk,bkd->bqd", p.astype(bf16), vh,
                               preferred_element_type=f32)                   # [B, S, dh]
            # Output projection folded in per head slice (avoids concat/relayout):
            attn = attn + jnp.dot(ctx_h.reshape(B * S, dh).astype(bf16),
                                  wo_l[sl, :], preferred_element_type=f32)
        attn = attn + bo_ref[l]
        x = _layernorm(attn + x, ln1_g_ref[l], ln1_b_ref[l])

        # ---- feed-forward ----
        inter = jax.nn.gelu(
            jnp.dot(x.astype(bf16), wi_ref[l],
                    preferred_element_type=f32) + bi_ref[l])
        ffn = jnp.dot(inter.astype(bf16), wf_ref[l],
                      preferred_element_type=f32) + bf_ref[l]
        x = _layernorm(ffn + x, ln2_g_ref[l], ln2_b_ref[l])

    # ---- BERT pooler on the [CLS] token ----
    cls = x.reshape(B, S, H)[:, 0, :]                                        # [B, H]
    pooled = jnp.tanh(jnp.dot(cls.astype(bf16), wp_ref[...],
                              preferred_element_type=f32) + bp_ref[...])

    # ---- classifier head: relu1(dropout(pooled)) -> relu2(linear1) -> sigmoid(linear2)
    # TODO(synk): dropout treated as inference-mode identity (stochastic op).
    d = jnp.maximum(pooled, 0.0)
    h1 = jnp.maximum(jnp.dot(d.astype(bf16), w1_ref[...],
                             preferred_element_type=f32) + b1_ref[...], 0.0)
    logits = jnp.dot(h1.astype(bf16), w2_ref[...],
                     preferred_element_type=f32) + b2_ref[...]
    o_ref[...] = jax.nn.sigmoid(logits)


# ---------------------------------------------------------------------------
# Parameter init (deterministic, synthetic)
# ---------------------------------------------------------------------------

def init_params(key, cfg):
    H, I, L = cfg["hidden"], cfg["inter"], cfg["layers"]
    keys = iter(jax.random.split(key, 64))

    def w(shape):
        return jax.random.normal(next(keys), shape, jnp.float32) * 0.02

    p = {}
    p["word_emb"] = w((cfg["vocab"], H))
    p["pos_emb"] = w((cfg["max_pos"], H))
    p["type_emb"] = w((2, H))
    p["emb_ln_g"] = jnp.ones((1, H), jnp.float32)
    p["emb_ln_b"] = jnp.zeros((1, H), jnp.float32)

    # Stacked per-layer weights; matmul weights stored bf16 (MXU-native),
    # biases / LayerNorm params kept f32.
    p["wqkv"] = w((L, H, 3 * H)).astype(jnp.bfloat16)
    p["bqkv"] = jnp.zeros((L, 1, 3 * H), jnp.float32)
    p["wo"] = w((L, H, H)).astype(jnp.bfloat16)
    p["bo"] = jnp.zeros((L, 1, H), jnp.float32)
    p["wi"] = w((L, H, I)).astype(jnp.bfloat16)
    p["bi"] = jnp.zeros((L, 1, I), jnp.float32)
    p["wf"] = w((L, I, H)).astype(jnp.bfloat16)
    p["bf"] = jnp.zeros((L, 1, H), jnp.float32)
    p["ln1_g"] = jnp.ones((L, 1, H), jnp.float32)
    p["ln1_b"] = jnp.zeros((L, 1, H), jnp.float32)
    p["ln2_g"] = jnp.ones((L, 1, H), jnp.float32)
    p["ln2_b"] = jnp.zeros((L, 1, H), jnp.float32)

    p["wp"] = w((H, H)).astype(jnp.bfloat16)                      # BERT pooler
    p["bp"] = jnp.zeros((1, H), jnp.float32)
    p["w1"] = w((cfg["h1"], cfg["h2"])).astype(jnp.bfloat16)      # linear1
    p["b1"] = jnp.zeros((1, cfg["h2"]), jnp.float32)
    p["w2"] = w((cfg["h2"], cfg["class_num"])).astype(jnp.bfloat16)  # linear2
    p["b2"] = jnp.zeros((1, cfg["class_num"]), jnp.float32)
    return p


# ---------------------------------------------------------------------------
# Forward pass (embedding gather in JAX glue, everything else in one kernel)
# ---------------------------------------------------------------------------

def bert_model_forward(params, tokens, masks, cfg):
    B, S = tokens.shape
    H, nh, L = cfg["hidden"], cfg["heads"], cfg["layers"]

    # Embedding lookup (gather) stays in JAX; sum of word + position + type-0.
    # TODO(synk): token_type_ids assumed all-zero (reference passes none).
    emb = (params["word_emb"][tokens]
           + params["pos_emb"][:S][None, :, :]
           + params["type_emb"][0][None, None, :]).reshape(B * S, H).astype(jnp.float32)
    mask_f = masks.astype(jnp.float32)

    args = (emb, mask_f,
            params["emb_ln_g"], params["emb_ln_b"],
            params["wqkv"], params["bqkv"], params["wo"], params["bo"],
            params["ln1_g"], params["ln1_b"],
            params["wi"], params["bi"], params["wf"], params["bf"],
            params["ln2_g"], params["ln2_b"],
            params["wp"], params["bp"],
            params["w1"], params["b1"], params["w2"], params["b2"])

    vmem = pl.BlockSpec(memory_space=pltpu.MemorySpace.VMEM)
    kern = functools.partial(_bert_fused_kernel, B=B, S=S, H=H, nh=nh, L=L)
    return pl.pallas_call(
        kern,
        out_shape=jax.ShapeDtypeStruct((B, cfg["class_num"]), jnp.float32),
        in_specs=[vmem] * len(args),
        out_specs=vmem,
    )(*args)


# ---------------------------------------------------------------------------
# Main
# ---------------------------------------------------------------------------

if __name__ == "__main__":
    cfg = dict(vocab=100, hidden=32, heads=4, inter=64, layers=2,
               max_pos=16, h1=32, h2=16, class_num=4)

    key = jax.random.PRNGKey(0)
    k_params, k_tok = jax.random.split(key)
    params = init_params(k_params, cfg)

    B, S = 2, 8
    tokens = jax.random.randint(k_tok, (B, S), 0, cfg["vocab"], dtype=jnp.int32)
    masks = jnp.array([[1, 1, 1, 1, 1, 1, 0, 0],
                       [1, 1, 1, 1, 1, 1, 1, 1]], dtype=jnp.int32)

    proba = bert_model_forward(params, tokens, masks, cfg)
    proba = jax.block_until_ready(proba)

    assert proba.shape == (B, cfg["class_num"])
    assert bool(jnp.all(jnp.isfinite(proba)))
    assert bool(jnp.all((proba >= 0.0) & (proba <= 1.0)))
    print("KERNEL_OK")
</pallas_src>

<mosaic_0001>
module attributes {stable_mosaic.version = 11 : i64} {
  func.func @_bert_fused_kernel(%arg0: memref<16x32xf32, #tpu.memory_space<vmem>>, %arg1: memref<2x8xf32, #tpu.memory_space<vmem>>, %arg2: memref<1x32xf32, #tpu.memory_space<vmem>>, %arg3: memref<1x32xf32, #tpu.memory_space<vmem>>, %arg4: memref<2x32x96xbf16, #tpu.memory_space<vmem>>, %arg5: memref<2x1x96xf32, #tpu.memory_space<vmem>>, %arg6: memref<2x32x32xbf16, #tpu.memory_space<vmem>>, %arg7: memref<2x1x32xf32, #tpu.memory_space<vmem>>, %arg8: memref<2x1x32xf32, #tpu.memory_space<vmem>>, %arg9: memref<2x1x32xf32, #tpu.memory_space<vmem>>, %arg10: memref<2x32x64xbf16, #tpu.memory_space<vmem>>, %arg11: memref<2x1x64xf32, #tpu.memory_space<vmem>>, %arg12: memref<2x64x32xbf16, #tpu.memory_space<vmem>>, %arg13: memref<2x1x32xf32, #tpu.memory_space<vmem>>, %arg14: memref<2x1x32xf32, #tpu.memory_space<vmem>>, %arg15: memref<2x1x32xf32, #tpu.memory_space<vmem>>, %arg16: memref<32x32xbf16, #tpu.memory_space<vmem>>, %arg17: memref<1x32xf32, #tpu.memory_space<vmem>>, %arg18: memref<32x16xbf16, #tpu.memory_space<vmem>>, %arg19: memref<1x16xf32, #tpu.memory_space<vmem>>, %arg20: memref<16x4xbf16, #tpu.memory_space<vmem>>, %arg21: memref<1x4xf32, #tpu.memory_space<vmem>>, %arg22: memref<2x4xf32, #tpu.memory_space<vmem>>) attributes {dimension_semantics = [], scalar_prefetch = 0 : i64, scratch_operands = 0 : i64, tpu.core_type = #tpu.core_type<tc>} {
    %c0 = arith.constant 0 : index
    %c0_0 = arith.constant 0 : index
    %0 = vector.load %arg0[%c0, %c0_0] : memref<16x32xf32, #tpu.memory_space<vmem>>, vector<16x32xf32>
    %c0_1 = arith.constant 0 : index
    %c0_2 = arith.constant 0 : index
    %1 = vector.load %arg2[%c0_1, %c0_2] : memref<1x32xf32, #tpu.memory_space<vmem>>, vector<1x32xf32>
    %c0_3 = arith.constant 0 : index
    %c0_4 = arith.constant 0 : index
    %2 = vector.load %arg3[%c0_3, %c0_4] : memref<1x32xf32, #tpu.memory_space<vmem>>, vector<1x32xf32>
    %cst = arith.constant dense<0.000000e+00> : vector<16xf32>
    %3 = vector.multi_reduction <add>, %0, %cst [1] : vector<16x32xf32> to vector<16xf32>
    %4 = vector.shape_cast %3 : vector<16xf32> to vector<16x1xf32>
    %cst_5 = arith.constant 3.200000e+01 : f32
    %5 = vector.broadcast %cst_5 : f32 to vector<16x1xf32>
    %6 = arith.divf %4, %5 : vector<16x1xf32>
    %7 = vector.broadcast %6 : vector<16x1xf32> to vector<16x32xf32>
    %8 = arith.subf %0, %7 : vector<16x32xf32>
    %9 = arith.mulf %8, %8 : vector<16x32xf32>
    %cst_6 = arith.constant dense<0.000000e+00> : vector<16xf32>
    %10 = vector.multi_reduction <add>, %9, %cst_6 [1] : vector<16x32xf32> to vector<16xf32>
    %11 = vector.shape_cast %10 : vector<16xf32> to vector<16x1xf32>
    %cst_7 = arith.constant 3.200000e+01 : f32
    %12 = vector.broadcast %cst_7 : f32 to vector<16x1xf32>
    %13 = arith.divf %11, %12 : vector<16x1xf32>
    %14 = vector.broadcast %6 : vector<16x1xf32> to vector<16x32xf32>
    %15 = arith.subf %0, %14 : vector<16x32xf32>
    %cst_8 = arith.constant 9.99999996E-13 : f32
    %16 = vector.broadcast %cst_8 : f32 to vector<16x1xf32>
    %17 = arith.addf %13, %16 : vector<16x1xf32>
    %18 = math.rsqrt %17 : vector<16x1xf32>
    %19 = vector.broadcast %18 : vector<16x1xf32> to vector<16x32xf32>
    %20 = arith.mulf %15, %19 : vector<16x32xf32>
    %21 = vector.broadcast %1 : vector<1x32xf32> to vector<16x32xf32>
    %22 = arith.mulf %20, %21 : vector<16x32xf32>
    %23 = vector.broadcast %2 : vector<1x32xf32> to vector<16x32xf32>
    %24 = arith.addf %22, %23 : vector<16x32xf32>
    %c0_9 = arith.constant 0 : index
    %c0_10 = arith.constant 0 : index
    %25 = vector.load %arg1[%c0_9, %c0_10] : memref<2x8xf32, #tpu.memory_space<vmem>>, vector<2x8xf32>
    %cst_11 = arith.constant 1.000000e+00 : f32
    %26 = vector.broadcast %cst_11 : f32 to vector<2x8xf32>
    %27 = arith.subf %26, %25 : vector<2x8xf32>
    %cst_12 = arith.constant -1.000000e+04 : f32
    %28 = vector.broadcast %cst_12 : f32 to vector<2x8xf32>
    %29 = arith.mulf %27, %28 : vector<2x8xf32>
    %30 = vector.shape_cast %29 : vector<2x8xf32> to vector<2x1x8xf32>
    %31 = arith.truncf %24 : vector<16x32xf32> to vector<16x32xbf16>
    %c0_13 = arith.constant 0 : index
    %c0_14 = arith.constant 0 : index
    %c0_15 = arith.constant 0 : index
    %32 = vector.load %arg4[%c0_13, %c0_14, %c0_15] : memref<2x32x96xbf16, #tpu.memory_space<vmem>>, vector<1x32x96xbf16>
    %33 = vector.shape_cast %32 : vector<1x32x96xbf16> to vector<32x96xbf16>
    %cst_16 = arith.constant dense<0.000000e+00> : vector<16x96xf32>
    %34 = tpu.matmul %31, %33, %cst_16 {dimension_numbers = #tpu.dot_dimension_numbers<[1], [0], [0], [1], [0, 0, 1, 1], [], []>} : vector<16x32xbf16>, vector<32x96xbf16>, vector<16x96xf32> -> vector<16x96xf32>
    %c0_17 = arith.constant 0 : index
    %c0_18 = arith.constant 0 : index
    %c0_19 = arith.constant 0 : index
    %35 = vector.load %arg5[%c0_17, %c0_18, %c0_19] : memref<2x1x96xf32, #tpu.memory_space<vmem>>, vector<1x1x96xf32>
    %36 = vector.shape_cast %35 : vector<1x1x96xf32> to vector<1x96xf32>
    %37 = vector.broadcast %36 : vector<1x96xf32> to vector<16x96xf32>
    %38 = arith.addf %34, %37 : vector<16x96xf32>
    %39 = vector.extract_strided_slice %38 {offsets = [0, 0], sizes = [16, 32], strides = [1, 1]} : vector<16x96xf32> to vector<16x32xf32>
    %40 = vector.extract_strided_slice %38 {offsets = [0, 32], sizes = [16, 32], strides = [1, 1]} : vector<16x96xf32> to vector<16x32xf32>
    %41 = vector.extract_strided_slice %38 {offsets = [0, 64], sizes = [16, 32], strides = [1, 1]} : vector<16x96xf32> to vector<16x32xf32>
    %c0_20 = arith.constant 0 : index
    %c0_21 = arith.constant 0 : index
    %c0_22 = arith.constant 0 : index
    %42 = vector.load %arg6[%c0_20, %c0_21, %c0_22] : memref<2x32x32xbf16, #tpu.memory_space<vmem>>, vector<1x32x32xbf16>
    %43 = vector.shape_cast %42 : vector<1x32x32xbf16> to vector<32x32xbf16>
    %cst_23 = arith.constant 0.000000e+00 : f32
    %44 = vector.broadcast %cst_23 : f32 to vector<16x32xf32>
    %45 = vector.extract_strided_slice %39 {offsets = [0, 0], sizes = [16, 8], strides = [1, 1]} : vector<16x32xf32> to vector<16x8xf32>
    %46 = vector.shape_cast %45 : vector<16x8xf32> to vector<2x8x8xf32>
    %47 = arith.truncf %46 : vector<2x8x8xf32> to vector<2x8x8xbf16>
    %48 = vector.extract_strided_slice %40 {offsets = [0, 0], sizes = [16, 8], strides = [1, 1]} : vector<16x32xf32> to vector<16x8xf32>
    %49 = vector.shape_cast %48 : vector<16x8xf32> to vector<2x8x8xf32>
    %50 = arith.truncf %49 : vector<2x8x8xf32> to vector<2x8x8xbf16>
    %51 = vector.extract_strided_slice %41 {offsets = [0, 0], sizes = [16, 8], strides = [1, 1]} : vector<16x32xf32> to vector<16x8xf32>
    %52 = vector.shape_cast %51 : vector<16x8xf32> to vector<2x8x8xf32>
    %53 = arith.truncf %52 : vector<2x8x8xf32> to vector<2x8x8xbf16>
    "tpu.trace_start"() <{level = 10 : i32, message = "bqd,bkd->bqk"}> : () -> ()
    %cst_24 = arith.constant dense<0.000000e+00> : vector<2x8x8xf32>
    %54 = tpu.matmul %47, %50, %cst_24 {dimension_numbers = #tpu.dot_dimension_numbers<[2], [2], [1], [1], [0, 0, 0, 1, 1, 1], [0], [0]>} : vector<2x8x8xbf16>, vector<2x8x8xbf16>, vector<2x8x8xf32> -> vector<2x8x8xf32>
    "tpu.trace_stop"() : () -> ()
    %cst_25 = arith.constant 0.353553385 : f32
    %55 = vector.broadcast %cst_25 : f32 to vector<2x8x8xf32>
    %56 = arith.mulf %54, %55 : vector<2x8x8xf32>
    %57 = vector.broadcast %30 : vector<2x1x8xf32> to vector<2x8x8xf32>
    %58 = arith.addf %56, %57 : vector<2x8x8xf32>
    %cst_26 = arith.constant dense<0xFF800000> : vector<2x8xf32>
    %59 = vector.multi_reduction <maximumf>, %58, %cst_26 [2] : vector<2x8x8xf32> to vector<2x8xf32>
    %60 = vector.shape_cast %59 : vector<2x8xf32> to vector<2x8x1xf32>
    %61 = vector.broadcast %60 : vector<2x8x1xf32> to vector<2x8x8xf32>
    %62 = arith.subf %58, %61 : vector<2x8x8xf32>
    %63 = math.exp %62 : vector<2x8x8xf32>
    %cst_27 = arith.constant dense<0.000000e+00> : vector<2x8xf32>
    %64 = vector.multi_reduction <add>, %63, %cst_27 [2] : vector<2x8x8xf32> to vector<2x8xf32>
    %65 = vector.shape_cast %64 : vector<2x8xf32> to vector<2x8x1xf32>
    %66 = tpu.reciprocal %65 {approx = true} : vector<2x8x1xf32> -> vector<2x8x1xf32>
    %67 = vector.broadcast %66 : vector<2x8x1xf32> to vector<2x8x8xf32>
    %68 = arith.mulf %63, %67 : vector<2x8x8xf32>
    %69 = arith.truncf %68 : vector<2x8x8xf32> to vector<2x8x8xbf16>
    "tpu.trace_start"() <{level = 10 : i32, message = "bqk,bkd->bqd"}> : () -> ()
    %cst_28 = arith.constant dense<0.000000e+00> : vector<2x8x8xf32>
    %70 = tpu.matmul %69, %53, %cst_28 {dimension_numbers = #tpu.dot_dimension_numbers<[2], [1], [1], [2], [0, 0, 0, 1, 1, 2], [0], [0]>} : vector<2x8x8xbf16>, vector<2x8x8xbf16>, vector<2x8x8xf32> -> vector<2x8x8xf32>
    "tpu.trace_stop"() : () -> ()
    %71 = vector.shape_cast %70 : vector<2x8x8xf32> to vector<16x8xf32>
    %72 = arith.truncf %71 : vector<16x8xf32> to vector<16x8xbf16>
    %73 = vector.extract_strided_slice %43 {offsets = [0, 0], sizes = [8, 32], strides = [1, 1]} : vector<32x32xbf16> to vector<8x32xbf16>
    %cst_29 = arith.constant dense<0.000000e+00> : vector<16x32xf32>
    %74 = tpu.matmul %72, %73, %cst_29 {dimension_numbers = #tpu.dot_dimension_numbers<[1], [0], [0], [1], [0, 0, 1, 1], [], []>} : vector<16x8xbf16>, vector<8x32xbf16>, vector<16x32xf32> -> vector<16x32xf32>
    %75 = arith.addf %44, %74 : vector<16x32xf32>
    %76 = vector.extract_strided_slice %39 {offsets = [0, 8], sizes = [16, 8], strides = [1, 1]} : vector<16x32xf32> to vector<16x8xf32>
    %77 = vector.shape_cast %76 : vector<16x8xf32> to vector<2x8x8xf32>
    %78 = arith.truncf %77 : vector<2x8x8xf32> to vector<2x8x8xbf16>
    %79 = vector.extract_strided_slice %40 {offsets = [0, 8], sizes = [16, 8], strides = [1, 1]} : vector<16x32xf32> to vector<16x8xf32>
    %80 = vector.shape_cast %79 : vector<16x8xf32> to vector<2x8x8xf32>
    %81 = arith.truncf %80 : vector<2x8x8xf32> to vector<2x8x8xbf16>
    %82 = vector.extract_strided_slice %41 {offsets = [0, 8], sizes = [16, 8], strides = [1, 1]} : vector<16x32xf32> to vector<16x8xf32>
    %83 = vector.shape_cast %82 : vector<16x8xf32> to vector<2x8x8xf32>
    %84 = arith.truncf %83 : vector<2x8x8xf32> to vector<2x8x8xbf16>
    "tpu.trace_start"() <{level = 10 : i32, message = "bqd,bkd->bqk"}> : () -> ()
    %cst_30 = arith.constant dense<0.000000e+00> : vector<2x8x8xf32>
    %85 = tpu.matmul %78, %81, %cst_30 {dimension_numbers = #tpu.dot_dimension_numbers<[2], [2], [1], [1], [0, 0, 0, 1, 1, 1], [0], [0]>} : vector<2x8x8xbf16>, vector<2x8x8xbf16>, vector<2x8x8xf32> -> vector<2x8x8xf32>
    "tpu.trace_stop"() : () -> ()
    %cst_31 = arith.constant 0.353553385 : f32
    %86 = vector.broadcast %cst_31 : f32 to vector<2x8x8xf32>
    %87 = arith.mulf %85, %86 : vector<2x8x8xf32>
    %88 = vector.broadcast %30 : vector<2x1x8xf32> to vector<2x8x8xf32>
    %89 = arith.addf %87, %88 : vector<2x8x8xf32>
    %cst_32 = arith.constant dense<0xFF800000> : vector<2x8xf32>
    %90 = vector.multi_reduction <maximumf>, %89, %cst_32 [2] : vector<2x8x8xf32> to vector<2x8xf32>
    %91 = vector.shape_cast %90 : vector<2x8xf32> to vector<2x8x1xf32>
    %92 = vector.broadcast %91 : vector<2x8x1xf32> to vector<2x8x8xf32>
    %93 = arith.subf %89, %92 : vector<2x8x8xf32>
    %94 = math.exp %93 : vector<2x8x8xf32>
    %cst_33 = arith.constant dense<0.000000e+00> : vector<2x8xf32>
    %95 = vector.multi_reduction <add>, %94, %cst_33 [2] : vector<2x8x8xf32> to vector<2x8xf32>
    %96 = vector.shape_cast %95 : vector<2x8xf32> to vector<2x8x1xf32>
    %97 = tpu.reciprocal %96 {approx = true} : vector<2x8x1xf32> -> vector<2x8x1xf32>
    %98 = vector.broadcast %97 : vector<2x8x1xf32> to vector<2x8x8xf32>
    %99 = arith.mulf %94, %98 : vector<2x8x8xf32>
    %100 = arith.truncf %99 : vector<2x8x8xf32> to vector<2x8x8xbf16>
    "tpu.trace_start"() <{level = 10 : i32, message = "bqk,bkd->bqd"}> : () -> ()
    %cst_34 = arith.constant dense<0.000000e+00> : vector<2x8x8xf32>
    %101 = tpu.matmul %100, %84, %cst_34 {dimension_numbers = #tpu.dot_dimension_numbers<[2], [1], [1], [2], [0, 0, 0, 1, 1, 2], [0], [0]>} : vector<2x8x8xbf16>, vector<2x8x8xbf16>, vector<2x8x8xf32> -> vector<2x8x8xf32>
    "tpu.trace_stop"() : () -> ()
    %102 = vector.shape_cast %101 : vector<2x8x8xf32> to vector<16x8xf32>
    %103 = arith.truncf %102 : vector<16x8xf32> to vector<16x8xbf16>
    %104 = vector.extract_strided_slice %43 {offsets = [8, 0], sizes = [8, 32], strides = [1, 1]} : vector<32x32xbf16> to vector<8x32xbf16>
    %cst_35 = arith.constant dense<0.000000e+00> : vector<16x32xf32>
    %105 = tpu.matmul %103, %104, %cst_35 {dimension_numbers = #tpu.dot_dimension_numbers<[1], [0], [0], [1], [0, 0, 1, 1], [], []>} : vector<16x8xbf16>, vector<8x32xbf16>, vector<16x32xf32> -> vector<16x32xf32>
    %106 = arith.addf %75, %105 : vector<16x32xf32>
    %107 = vector.extract_strided_slice %39 {offsets = [0, 16], sizes = [16, 8], strides = [1, 1]} : vector<16x32xf32> to vector<16x8xf32>
    %108 = vector.shape_cast %107 : vector<16x8xf32> to vector<2x8x8xf32>
    %109 = arith.truncf %108 : vector<2x8x8xf32> to vector<2x8x8xbf16>
    %110 = vector.extract_strided_slice %40 {offsets = [0, 16], sizes = [16, 8], strides = [1, 1]} : vector<16x32xf32> to vector<16x8xf32>
    %111 = vector.shape_cast %110 : vector<16x8xf32> to vector<2x8x8xf32>
    %112 = arith.truncf %111 : vector<2x8x8xf32> to vector<2x8x8xbf16>
    %113 = vector.extract_strided_slice %41 {offsets = [0, 16], sizes = [16, 8], strides = [1, 1]} : vector<16x32xf32> to vector<16x8xf32>
    %114 = vector.shape_cast %113 : vector<16x8xf32> to vector<2x8x8xf32>
    %115 = arith.truncf %114 : vector<2x8x8xf32> to vector<2x8x8xbf16>
    "tpu.trace_start"() <{level = 10 : i32, message = "bqd,bkd->bqk"}> : () -> ()
    %cst_36 = arith.constant dense<0.000000e+00> : vector<2x8x8xf32>
    %116 = tpu.matmul %109, %112, %cst_36 {dimension_numbers = #tpu.dot_dimension_numbers<[2], [2], [1], [1], [0, 0, 0, 1, 1, 1], [0], [0]>} : vector<2x8x8xbf16>, vector<2x8x8xbf16>, vector<2x8x8xf32> -> vector<2x8x8xf32>
    "tpu.trace_stop"() : () -> ()
    %cst_37 = arith.constant 0.353553385 : f32
    %117 = vector.broadcast %cst_37 : f32 to vector<2x8x8xf32>
    %118 = arith.mulf %116, %117 : vector<2x8x8xf32>
    %119 = vector.broadcast %30 : vector<2x1x8xf32> to vector<2x8x8xf32>
    %120 = arith.addf %118, %119 : vector<2x8x8xf32>
    %cst_38 = arith.constant dense<0xFF800000> : vector<2x8xf32>
    %121 = vector.multi_reduction <maximumf>, %120, %cst_38 [2] : vector<2x8x8xf32> to vector<2x8xf32>
    %122 = vector.shape_cast %121 : vector<2x8xf32> to vector<2x8x1xf32>
    %123 = vector.broadcast %122 : vector<2x8x1xf32> to vector<2x8x8xf32>
    %124 = arith.subf %120, %123 : vector<2x8x8xf32>
    %125 = math.exp %124 : vector<2x8x8xf32>
    %cst_39 = arith.constant dense<0.000000e+00> : vector<2x8xf32>
    %126 = vector.multi_reduction <add>, %125, %cst_39 [2] : vector<2x8x8xf32> to vector<2x8xf32>
    %127 = vector.shape_cast %126 : vector<2x8xf32> to vector<2x8x1xf32>
    %128 = tpu.reciprocal %127 {approx = true} : vector<2x8x1xf32> -> vector<2x8x1xf32>
    %129 = vector.broadcast %128 : vector<2x8x1xf32> to vector<2x8x8xf32>
    %130 = arith.mulf %125, %129 : vector<2x8x8xf32>
    %131 = arith.truncf %130 : vector<2x8x8xf32> to vector<2x8x8xbf16>
    "tpu.trace_start"() <{level = 10 : i32, message = "bqk,bkd->bqd"}> : () -> ()
    %cst_40 = arith.constant dense<0.000000e+00> : vector<2x8x8xf32>
    %132 = tpu.matmul %131, %115, %cst_40 {dimension_numbers = #tpu.dot_dimension_numbers<[2], [1], [1], [2], [0, 0, 0, 1, 1, 2], [0], [0]>} : vector<2x8x8xbf16>, vector<2x8x8xbf16>, vector<2x8x8xf32> -> vector<2x8x8xf32>
    "tpu.trace_stop"() : () -> ()
    %133 = vector.shape_cast %132 : vector<2x8x8xf32> to vector<16x8xf32>
    %134 = arith.truncf %133 : vector<16x8xf32> to vector<16x8xbf16>
    %135 = vector.extract_strided_slice %43 {offsets = [16, 0], sizes = [8, 32], strides = [1, 1]} : vector<32x32xbf16> to vector<8x32xbf16>
    %cst_41 = arith.constant dense<0.000000e+00> : vector<16x32xf32>
    %136 = tpu.matmul %134, %135, %cst_41 {dimension_numbers = #tpu.dot_dimension_numbers<[1], [0], [0], [1], [0, 0, 1, 1], [], []>} : vector<16x8xbf16>, vector<8x32xbf16>, vector<16x32xf32> -> vector<16x32xf32>
    %137 = arith.addf %106, %136 : vector<16x32xf32>
    %138 = vector.extract_strided_slice %39 {offsets = [0, 24], sizes = [16, 8], strides = [1, 1]} : vector<16x32xf32> to vector<16x8xf32>
    %139 = vector.shape_cast %138 : vector<16x8xf32> to vector<2x8x8xf32>
    %140 = arith.truncf %139 : vector<2x8x8xf32> to vector<2x8x8xbf16>
    %141 = vector.extract_strided_slice %40 {offsets = [0, 24], sizes = [16, 8], strides = [1, 1]} : vector<16x32xf32> to vector<16x8xf32>
    %142 = vector.shape_cast %141 : vector<16x8xf32> to vector<2x8x8xf32>
    %143 = arith.truncf %142 : vector<2x8x8xf32> to vector<2x8x8xbf16>
    %144 = vector.extract_strided_slice %41 {offsets = [0, 24], sizes = [16, 8], strides = [1, 1]} : vector<16x32xf32> to vector<16x8xf32>
    %145 = vector.shape_cast %144 : vector<16x8xf32> to vector<2x8x8xf32>
    %146 = arith.truncf %145 : vector<2x8x8xf32> to vector<2x8x8xbf16>
    "tpu.trace_start"() <{level = 10 : i32, message = "bqd,bkd->bqk"}> : () -> ()
    %cst_42 = arith.constant dense<0.000000e+00> : vector<2x8x8xf32>
    %147 = tpu.matmul %140, %143, %cst_42 {dimension_numbers = #tpu.dot_dimension_numbers<[2], [2], [1], [1], [0, 0, 0, 1, 1, 1], [0], [0]>} : vector<2x8x8xbf16>, vector<2x8x8xbf16>, vector<2x8x8xf32> -> vector<2x8x8xf32>
    "tpu.trace_stop"() : () -> ()
    %cst_43 = arith.constant 0.353553385 : f32
    %148 = vector.broadcast %cst_43 : f32 to vector<2x8x8xf32>
    %149 = arith.mulf %147, %148 : vector<2x8x8xf32>
    %150 = vector.broadcast %30 : vector<2x1x8xf32> to vector<2x8x8xf32>
    %151 = arith.addf %149, %150 : vector<2x8x8xf32>
    %cst_44 = arith.constant dense<0xFF800000> : vector<2x8xf32>
    %152 = vector.multi_reduction <maximumf>, %151, %cst_44 [2] : vector<2x8x8xf32> to vector<2x8xf32>
    %153 = vector.shape_cast %152 : vector<2x8xf32> to vector<2x8x1xf32>
    %154 = vector.broadcast %153 : vector<2x8x1xf32> to vector<2x8x8xf32>
    %155 = arith.subf %151, %154 : vector<2x8x8xf32>
    %156 = math.exp %155 : vector<2x8x8xf32>
    %cst_45 = arith.constant dense<0.000000e+00> : vector<2x8xf32>
    %157 = vector.multi_reduction <add>, %156, %cst_45 [2] : vector<2x8x8xf32> to vector<2x8xf32>
    %158 = vector.shape_cast %157 : vector<2x8xf32> to vector<2x8x1xf32>
    %159 = tpu.reciprocal %158 {approx = true} : vector<2x8x1xf32> -> vector<2x8x1xf32>
    %160 = vector.broadcast %159 : vector<2x8x1xf32> to vector<2x8x8xf32>
    %161 = arith.mulf %156, %160 : vector<2x8x8xf32>
    %162 = arith.truncf %161 : vector<2x8x8xf32> to vector<2x8x8xbf16>
    "tpu.trace_start"() <{level = 10 : i32, message = "bqk,bkd->bqd"}> : () -> ()
    %cst_46 = arith.constant dense<0.000000e+00> : vector<2x8x8xf32>
    %163 = tpu.matmul %162, %146, %cst_46 {dimension_numbers = #tpu.dot_dimension_numbers<[2], [1], [1], [2], [0, 0, 0, 1, 1, 2], [0], [0]>} : vector<2x8x8xbf16>, vector<2x8x8xbf16>, vector<2x8x8xf32> -> vector<2x8x8xf32>
    "tpu.trace_stop"() : () -> ()
    %164 = vector.shape_cast %163 : vector<2x8x8xf32> to vector<16x8xf32>
    %165 = arith.truncf %164 : vector<16x8xf32> to vector<16x8xbf16>
    %166 = vector.extract_strided_slice %43 {offsets = [24, 0], sizes = [8, 32], strides = [1, 1]} : vector<32x32xbf16> to vector<8x32xbf16>
    %cst_47 = arith.constant dense<0.000000e+00> : vector<16x32xf32>
    %167 = tpu.matmul %165, %166, %cst_47 {dimension_numbers = #tpu.dot_dimension_numbers<[1], [0], [0], [1], [0, 0, 1, 1], [], []>} : vector<16x8xbf16>, vector<8x32xbf16>, vector<16x32xf32> -> vector<16x32xf32>
    %168 = arith.addf %137, %167 : vector<16x32xf32>
    %c0_48 = arith.constant 0 : index
    %c0_49 = arith.constant 0 : index
    %c0_50 = arith.constant 0 : index
    %169 = vector.load %arg7[%c0_48, %c0_49, %c0_50] : memref<2x1x32xf32, #tpu.memory_space<vmem>>, vector<1x1x32xf32>
    %170 = vector.shape_cast %169 : vector<1x1x32xf32> to vector<1x32xf32>
    %171 = vector.broadcast %170 : vector<1x32xf32> to vector<16x32xf32>
    %172 = arith.addf %168, %171 : vector<16x32xf32>
    %173 = arith.addf %172, %24 : vector<16x32xf32>
    %c0_51 = arith.constant 0 : index
    %c0_52 = arith.constant 0 : index
    %c0_53 = arith.constant 0 : index
    %174 = vector.load %arg8[%c0_51, %c0_52, %c0_53] : memref<2x1x32xf32, #tpu.memory_space<vmem>>, vector<1x1x32xf32>
    %175 = vector.shape_cast %174 : vector<1x1x32xf32> to vector<1x32xf32>
    %c0_54 = arith.constant 0 : index
    %c0_55 = arith.constant 0 : index
    %c0_56 = arith.constant 0 : index
    %176 = vector.load %arg9[%c0_54, %c0_55, %c0_56] : memref<2x1x32xf32, #tpu.memory_space<vmem>>, vector<1x1x32xf32>
    %177 = vector.shape_cast %176 : vector<1x1x32xf32> to vector<1x32xf32>
    %cst_57 = arith.constant dense<0.000000e+00> : vector<16xf32>
    %178 = vector.multi_reduction <add>, %173, %cst_57 [1] : vector<16x32xf32> to vector<16xf32>
    %179 = vector.shape_cast %178 : vector<16xf32> to vector<16x1xf32>
    %cst_58 = arith.constant 3.200000e+01 : f32
    %180 = vector.broadcast %cst_58 : f32 to vector<16x1xf32>
    %181 = arith.divf %179, %180 : vector<16x1xf32>
    %182 = vector.broadcast %181 : vector<16x1xf32> to vector<16x32xf32>
    %183 = arith.subf %173, %182 : vector<16x32xf32>
    %184 = arith.mulf %183, %183 : vector<16x32xf32>
    %cst_59 = arith.constant dense<0.000000e+00> : vector<16xf32>
    %185 = vector.multi_reduction <add>, %184, %cst_59 [1] : vector<16x32xf32> to vector<16xf32>
    %186 = vector.shape_cast %185 : vector<16xf32> to vector<16x1xf32>
    %cst_60 = arith.constant 3.200000e+01 : f32
    %187 = vector.broadcast %cst_60 : f32 to vector<16x1xf32>
    %188 = arith.divf %186, %187 : vector<16x1xf32>
    %189 = vector.broadcast %181 : vector<16x1xf32> to vector<16x32xf32>
    %190 = arith.subf %173, %189 : vector<16x32xf32>
    %cst_61 = arith.constant 9.99999996E-13 : f32
    %191 = vector.broadcast %cst_61 : f32 to vector<16x1xf32>
    %192 = arith.addf %188, %191 : vector<16x1xf32>
    %193 = math.rsqrt %192 : vector<16x1xf32>
    %194 = vector.broadcast %193 : vector<16x1xf32> to vector<16x32xf32>
    %195 = arith.mulf %190, %194 : vector<16x32xf32>
    %196 = vector.broadcast %175 : vector<1x32xf32> to vector<16x32xf32>
    %197 = arith.mulf %195, %196 : vector<16x32xf32>
    %198 = vector.broadcast %177 : vector<1x32xf32> to vector<16x32xf32>
    %199 = arith.addf %197, %198 : vector<16x32xf32>
    %200 = arith.truncf %199 : vector<16x32xf32> to vector<16x32xbf16>
    %c0_62 = arith.constant 0 : index
    %c0_63 = arith.constant 0 : index
    %c0_64 = arith.constant 0 : index
    %201 = vector.load %arg10[%c0_62, %c0_63, %c0_64] : memref<2x32x64xbf16, #tpu.memory_space<vmem>>, vector<1x32x64xbf16>
    %202 = vector.shape_cast %201 : vector<1x32x64xbf16> to vector<32x64xbf16>
    %cst_65 = arith.constant dense<0.000000e+00> : vector<16x64xf32>
    %203 = tpu.matmul %200, %202, %cst_65 {dimension_numbers = #tpu.dot_dimension_numbers<[1], [0], [0], [1], [0, 0, 1, 1], [], []>} : vector<16x32xbf16>, vector<32x64xbf16>, vector<16x64xf32> -> vector<16x64xf32>
    %c0_66 = arith.constant 0 : index
    %c0_67 = arith.constant 0 : index
    %c0_68 = arith.constant 0 : index
    %204 = vector.load %arg11[%c0_66, %c0_67, %c0_68] : memref<2x1x64xf32, #tpu.memory_space<vmem>>, vector<1x1x64xf32>
    %205 = vector.shape_cast %204 : vector<1x1x64xf32> to vector<1x64xf32>
    %206 = vector.broadcast %205 : vector<1x64xf32> to vector<16x64xf32>
    %207 = arith.addf %203, %206 : vector<16x64xf32>
    %208 = arith.mulf %207, %207 : vector<16x64xf32>
    %209 = arith.mulf %207, %208 : vector<16x64xf32>
    %cst_69 = arith.constant 4.471500e-02 : f32
    %210 = vector.broadcast %cst_69 : f32 to vector<16x64xf32>
    %211 = arith.mulf %210, %209 : vector<16x64xf32>
    %212 = arith.addf %207, %211 : vector<16x64xf32>
    %cst_70 = arith.constant 0.797884583 : f32
    %213 = vector.broadcast %cst_70 : f32 to vector<16x64xf32>
    %214 = arith.mulf %213, %212 : vector<16x64xf32>
    %215 = math.tanh %214 : vector<16x64xf32>
    %cst_71 = arith.constant 1.000000e+00 : f32
    %216 = vector.broadcast %cst_71 : f32 to vector<16x64xf32>
    %217 = arith.addf %216, %215 : vector<16x64xf32>
    %cst_72 = arith.constant 5.000000e-01 : f32
    %218 = vector.broadcast %cst_72 : f32 to vector<16x64xf32>
    %219 = arith.mulf %218, %217 : vector<16x64xf32>
    %220 = arith.mulf %207, %219 : vector<16x64xf32>
    %221 = arith.truncf %220 : vector<16x64xf32> to vector<16x64xbf16>
    %c0_73 = arith.constant 0 : index
    %c0_74 = arith.constant 0 : index
    %c0_75 = arith.constant 0 : index
    %222 = vector.load %arg12[%c0_73, %c0_74, %c0_75] : memref<2x64x32xbf16, #tpu.memory_space<vmem>>, vector<1x64x32xbf16>
    %223 = vector.shape_cast %222 : vector<1x64x32xbf16> to vector<64x32xbf16>
    %cst_76 = arith.constant dense<0.000000e+00> : vector<16x32xf32>
    %224 = tpu.matmul %221, %223, %cst_76 {dimension_numbers = #tpu.dot_dimension_numbers<[1], [0], [0], [1], [0, 0, 1, 1], [], []>} : vector<16x64xbf16>, vector<64x32xbf16>, vector<16x32xf32> -> vector<16x32xf32>
    %c0_77 = arith.constant 0 : index
    %c0_78 = arith.constant 0 : index
    %c0_79 = arith.constant 0 : index
    %225 = vector.load %arg13[%c0_77, %c0_78, %c0_79] : memref<2x1x32xf32, #tpu.memory_space<vmem>>, vector<1x1x32xf32>
    %226 = vector.shape_cast %225 : vector<1x1x32xf32> to vector<1x32xf32>
    %227 = vector.broadcast %226 : vector<1x32xf32> to vector<16x32xf32>
    %228 = arith.addf %224, %227 : vector<16x32xf32>
    %229 = arith.addf %228, %199 : vector<16x32xf32>
    %c0_80 = arith.constant 0 : index
    %c0_81 = arith.constant 0 : index
    %c0_82 = arith.constant 0 : index
    %230 = vector.load %arg14[%c0_80, %c0_81, %c0_82] : memref<2x1x32xf32, #tpu.memory_space<vmem>>, vector<1x1x32xf32>
    %231 = vector.shape_cast %230 : vector<1x1x32xf32> to vector<1x32xf32>
    %c0_83 = arith.constant 0 : index
    %c0_84 = arith.constant 0 : index
    %c0_85 = arith.constant 0 : index
    %232 = vector.load %arg15[%c0_83, %c0_84, %c0_85] : memref<2x1x32xf32, #tpu.memory_space<vmem>>, vector<1x1x32xf32>
    %233 = vector.shape_cast %232 : vector<1x1x32xf32> to vector<1x32xf32>
    %cst_86 = arith.constant dense<0.000000e+00> : vector<16xf32>
    %234 = vector.multi_reduction <add>, %229, %cst_86 [1] : vector<16x32xf32> to vector<16xf32>
    %235 = vector.shape_cast %234 : vector<16xf32> to vector<16x1xf32>
    %cst_87 = arith.constant 3.200000e+01 : f32
    %236 = vector.broadcast %cst_87 : f32 to vector<16x1xf32>
    %237 = arith.divf %235, %236 : vector<16x1xf32>
    %238 = vector.broadcast %237 : vector<16x1xf32> to vector<16x32xf32>
    %239 = arith.subf %229, %238 : vector<16x32xf32>
    %240 = arith.mulf %239, %239 : vector<16x32xf32>
    %cst_88 = arith.constant dense<0.000000e+00> : vector<16xf32>
    %241 = vector.multi_reduction <add>, %240, %cst_88 [1] : vector<16x32xf32> to vector<16xf32>
    %242 = vector.shape_cast %241 : vector<16xf32> to vector<16x1xf32>
    %cst_89 = arith.constant 3.200000e+01 : f32
    %243 = vector.broadcast %cst_89 : f32 to vector<16x1xf32>
    %244 = arith.divf %242, %243 : vector<16x1xf32>
    %245 = vector.broadcast %237 : vector<16x1xf32> to vector<16x32xf32>
    %246 = arith.subf %229, %245 : vector<16x32xf32>
    %cst_90 = arith.constant 9.99999996E-13 : f32
    %247 = vector.broadcast %cst_90 : f32 to vector<16x1xf32>
    %248 = arith.addf %244, %247 : vector<16x1xf32>
    %249 = math.rsqrt %248 : vector<16x1xf32>
    %250 = vector.broadcast %249 : vector<16x1xf32> to vector<16x32xf32>
    %251 = arith.mulf %246, %250 : vector<16x32xf32>
    %252 = vector.broadcast %231 : vector<1x32xf32> to vector<16x32xf32>
    %253 = arith.mulf %251, %252 : vector<16x32xf32>
    %254 = vector.broadcast %233 : vector<1x32xf32> to vector<16x32xf32>
    %255 = arith.addf %253, %254 : vector<16x32xf32>
    %256 = arith.truncf %255 : vector<16x32xf32> to vector<16x32xbf16>
    %c1 = arith.constant 1 : index
    %c0_91 = arith.constant 0 : index
    %c0_92 = arith.constant 0 : index
    %257 = vector.load %arg4[%c1, %c0_91, %c0_92] : memref<2x32x96xbf16, #tpu.memory_space<vmem>>, vector<1x32x96xbf16>
    %258 = vector.shape_cast %257 : vector<1x32x96xbf16> to vector<32x96xbf16>
    %cst_93 = arith.constant dense<0.000000e+00> : vector<16x96xf32>
    %259 = tpu.matmul %256, %258, %cst_93 {dimension_numbers = #tpu.dot_dimension_numbers<[1], [0], [0], [1], [0, 0, 1, 1], [], []>} : vector<16x32xbf16>, vector<32x96xbf16>, vector<16x96xf32> -> vector<16x96xf32>
    %c1_94 = arith.constant 1 : index
    %c0_95 = arith.constant 0 : index
    %c0_96 = arith.constant 0 : index
    %260 = vector.load %arg5[%c1_94, %c0_95, %c0_96] : memref<2x1x96xf32, #tpu.memory_space<vmem>>, vector<1x1x96xf32>
    %261 = vector.shape_cast %260 : vector<1x1x96xf32> to vector<1x96xf32>
    %262 = vector.broadcast %261 : vector<1x96xf32> to vector<16x96xf32>
    %263 = arith.addf %259, %262 : vector<16x96xf32>
    %264 = vector.extract_strided_slice %263 {offsets = [0, 0], sizes = [16, 32], strides = [1, 1]} : vector<16x96xf32> to vector<16x32xf32>
    %265 = vector.extract_strided_slice %263 {offsets = [0, 32], sizes = [16, 32], strides = [1, 1]} : vector<16x96xf32> to vector<16x32xf32>
    %266 = vector.extract_strided_slice %263 {offsets = [0, 64], sizes = [16, 32], strides = [1, 1]} : vector<16x96xf32> to vector<16x32xf32>
    %c1_97 = arith.constant 1 : index
    %c0_98 = arith.constant 0 : index
    %c0_99 = arith.constant 0 : index
    %267 = vector.load %arg6[%c1_97, %c0_98, %c0_99] : memref<2x32x32xbf16, #tpu.memory_space<vmem>>, vector<1x32x32xbf16>
    %268 = vector.shape_cast %267 : vector<1x32x32xbf16> to vector<32x32xbf16>
    %cst_100 = arith.constant 0.000000e+00 : f32
    %269 = vector.broadcast %cst_100 : f32 to vector<16x32xf32>
    %270 = vector.extract_strided_slice %264 {offsets = [0, 0], sizes = [16, 8], strides = [1, 1]} : vector<16x32xf32> to vector<16x8xf32>
    %271 = vector.shape_cast %270 : vector<16x8xf32> to vector<2x8x8xf32>
    %272 = arith.truncf %271 : vector<2x8x8xf32> to vector<2x8x8xbf16>
    %273 = vector.extract_strided_slice %265 {offsets = [0, 0], sizes = [16, 8], strides = [1, 1]} : vector<16x32xf32> to vector<16x8xf32>
    %274 = vector.shape_cast %273 : vector<16x8xf32> to vector<2x8x8xf32>
    %275 = arith.truncf %274 : vector<2x8x8xf32> to vector<2x8x8xbf16>
    %276 = vector.extract_strided_slice %266 {offsets = [0, 0], sizes = [16, 8], strides = [1, 1]} : vector<16x32xf32> to vector<16x8xf32>
    %277 = vector.shape_cast %276 : vector<16x8xf32> to vector<2x8x8xf32>
    %278 = arith.truncf %277 : vector<2x8x8xf32> to vector<2x8x8xbf16>
    "tpu.trace_start"() <{level = 10 : i32, message = "bqd,bkd->bqk"}> : () -> ()
    %cst_101 = arith.constant dense<0.000000e+00> : vector<2x8x8xf32>
    %279 = tpu.matmul %272, %275, %cst_101 {dimension_numbers = #tpu.dot_dimension_numbers<[2], [2], [1], [1], [0, 0, 0, 1, 1, 1], [0], [0]>} : vector<2x8x8xbf16>, vector<2x8x8xbf16>, vector<2x8x8xf32> -> vector<2x8x8xf32>
    "tpu.trace_stop"() : () -> ()
    %cst_102 = arith.constant 0.353553385 : f32
    %280 = vector.broadcast %cst_102 : f32 to vector<2x8x8xf32>
    %281 = arith.mulf %279, %280 : vector<2x8x8xf32>
    %282 = vector.broadcast %30 : vector<2x1x8xf32> to vector<2x8x8xf32>
    %283 = arith.addf %281, %282 : vector<2x8x8xf32>
    %cst_103 = arith.constant dense<0xFF800000> : vector<2x8xf32>
    %284 = vector.multi_reduction <maximumf>, %283, %cst_103 [2] : vector<2x8x8xf32> to vector<2x8xf32>
    %285 = vector.shape_cast %284 : vector<2x8xf32> to vector<2x8x1xf32>
    %286 = vector.broadcast %285 : vector<2x8x1xf32> to vector<2x8x8xf32>
    %287 = arith.subf %283, %286 : vector<2x8x8xf32>
    %288 = math.exp %287 : vector<2x8x8xf32>
    %cst_104 = arith.constant dense<0.000000e+00> : vector<2x8xf32>
    %289 = vector.multi_reduction <add>, %288, %cst_104 [2] : vector<2x8x8xf32> to vector<2x8xf32>
    %290 = vector.shape_cast %289 : vector<2x8xf32> to vector<2x8x1xf32>
    %291 = tpu.reciprocal %290 {approx = true} : vector<2x8x1xf32> -> vector<2x8x1xf32>
    %292 = vector.broadcast %291 : vector<2x8x1xf32> to vector<2x8x8xf32>
    %293 = arith.mulf %288, %292 : vector<2x8x8xf32>
    %294 = arith.truncf %293 : vector<2x8x8xf32> to vector<2x8x8xbf16>
    "tpu.trace_start"() <{level = 10 : i32, message = "bqk,bkd->bqd"}> : () -> ()
    %cst_105 = arith.constant dense<0.000000e+00> : vector<2x8x8xf32>
    %295 = tpu.matmul %294, %278, %cst_105 {dimension_numbers = #tpu.dot_dimension_numbers<[2], [1], [1], [2], [0, 0, 0, 1, 1, 2], [0], [0]>} : vector<2x8x8xbf16>, vector<2x8x8xbf16>, vector<2x8x8xf32> -> vector<2x8x8xf32>
    "tpu.trace_stop"() : () -> ()
    %296 = vector.shape_cast %295 : vector<2x8x8xf32> to vector<16x8xf32>
    %297 = arith.truncf %296 : vector<16x8xf32> to vector<16x8xbf16>
    %298 = vector.extract_strided_slice %268 {offsets = [0, 0], sizes = [8, 32], strides = [1, 1]} : vector<32x32xbf16> to vector<8x32xbf16>
    %cst_106 = arith.constant dense<0.000000e+00> : vector<16x32xf32>
    %299 = tpu.matmul %297, %298, %cst_106 {dimension_numbers = #tpu.dot_dimension_numbers<[1], [0], [0], [1], [0, 0, 1, 1], [], []>} : vector<16x8xbf16>, vector<8x32xbf16>, vector<16x32xf32> -> vector<16x32xf32>
    %300 = arith.addf %269, %299 : vector<16x32xf32>
    %301 = vector.extract_strided_slice %264 {offsets = [0, 8], sizes = [16, 8], strides = [1, 1]} : vector<16x32xf32> to vector<16x8xf32>
    %302 = vector.shape_cast %301 : vector<16x8xf32> to vector<2x8x8xf32>
    %303 = arith.truncf %302 : vector<2x8x8xf32> to vector<2x8x8xbf16>
    %304 = vector.extract_strided_slice %265 {offsets = [0, 8], sizes = [16, 8], strides = [1, 1]} : vector<16x32xf32> to vector<16x8xf32>
    %305 = vector.shape_cast %304 : vector<16x8xf32> to vector<2x8x8xf32>
    %306 = arith.truncf %305 : vector<2x8x8xf32> to vector<2x8x8xbf16>
    %307 = vector.extract_strided_slice %266 {offsets = [0, 8], sizes = [16, 8], strides = [1, 1]} : vector<16x32xf32> to vector<16x8xf32>
    %308 = vector.shape_cast %307 : vector<16x8xf32> to vector<2x8x8xf32>
    %309 = arith.truncf %308 : vector<2x8x8xf32> to vector<2x8x8xbf16>
    "tpu.trace_start"() <{level = 10 : i32, message = "bqd,bkd->bqk"}> : () -> ()
    %cst_107 = arith.constant dense<0.000000e+00> : vector<2x8x8xf32>
    %310 = tpu.matmul %303, %306, %cst_107 {dimension_numbers = #tpu.dot_dimension_numbers<[2], [2], [1], [1], [0, 0, 0, 1, 1, 1], [0], [0]>} : vector<2x8x8xbf16>, vector<2x8x8xbf16>, vector<2x8x8xf32> -> vector<2x8x8xf32>
    "tpu.trace_stop"() : () -> ()
    %cst_108 = arith.constant 0.353553385 : f32
    %311 = vector.broadcast %cst_108 : f32 to vector<2x8x8xf32>
    %312 = arith.mulf %310, %311 : vector<2x8x8xf32>
    %313 = vector.broadcast %30 : vector<2x1x8xf32> to vector<2x8x8xf32>
    %314 = arith.addf %312, %313 : vector<2x8x8xf32>
    %cst_109 = arith.constant dense<0xFF800000> : vector<2x8xf32>
    %315 = vector.multi_reduction <maximumf>, %314, %cst_109 [2] : vector<2x8x8xf32> to vector<2x8xf32>
    %316 = vector.shape_cast %315 : vector<2x8xf32> to vector<2x8x1xf32>
    %317 = vector.broadcast %316 : vector<2x8x1xf32> to vector<2x8x8xf32>
    %318 = arith.subf %314, %317 : vector<2x8x8xf32>
    %319 = math.exp %318 : vector<2x8x8xf32>
    %cst_110 = arith.constant dense<0.000000e+00> : vector<2x8xf32>
    %320 = vector.multi_reduction <add>, %319, %cst_110 [2] : vector<2x8x8xf32> to vector<2x8xf32>
    %321 = vector.shape_cast %320 : vector<2x8xf32> to vector<2x8x1xf32>
    %322 = tpu.reciprocal %321 {approx = true} : vector<2x8x1xf32> -> vector<2x8x1xf32>
    %323 = vector.broadcast %322 : vector<2x8x1xf32> to vector<2x8x8xf32>
    %324 = arith.mulf %319, %323 : vector<2x8x8xf32>
    %325 = arith.truncf %324 : vector<2x8x8xf32> to vector<2x8x8xbf16>
    "tpu.trace_start"() <{level = 10 : i32, message = "bqk,bkd->bqd"}> : () -> ()
    %cst_111 = arith.constant dense<0.000000e+00> : vector<2x8x8xf32>
    %326 = tpu.matmul %325, %309, %cst_111 {dimension_numbers = #tpu.dot_dimension_numbers<[2], [1], [1], [2], [0, 0, 0, 1, 1, 2], [0], [0]>} : vector<2x8x8xbf16>, vector<2x8x8xbf16>, vector<2x8x8xf32> -> vector<2x8x8xf32>
    "tpu.trace_stop"() : () -> ()
    %327 = vector.shape_cast %326 : vector<2x8x8xf32> to vector<16x8xf32>
    %328 = arith.truncf %327 : vector<16x8xf32> to vector<16x8xbf16>
    %329 = vector.extract_strided_slice %268 {offsets = [8, 0], sizes = [8, 32], strides = [1, 1]} : vector<32x32xbf16> to vector<8x32xbf16>
    %cst_112 = arith.constant dense<0.000000e+00> : vector<16x32xf32>
    %330 = tpu.matmul %328, %329, %cst_112 {dimension_numbers = #tpu.dot_dimension_numbers<[1], [0], [0], [1], [0, 0, 1, 1], [], []>} : vector<16x8xbf16>, vector<8x32xbf16>, vector<16x32xf32> -> vector<16x32xf32>
    %331 = arith.addf %300, %330 : vector<16x32xf32>
    %332 = vector.extract_strided_slice %264 {offsets = [0, 16], sizes = [16, 8], strides = [1, 1]} : vector<16x32xf32> to vector<16x8xf32>
    %333 = vector.shape_cast %332 : vector<16x8xf32> to vector<2x8x8xf32>
    %334 = arith.truncf %333 : vector<2x8x8xf32> to vector<2x8x8xbf16>
    %335 = vector.extract_strided_slice %265 {offsets = [0, 16], sizes = [16, 8], strides = [1, 1]} : vector<16x32xf32> to vector<16x8xf32>
    %336 = vector.shape_cast %335 : vector<16x8xf32> to vector<2x8x8xf32>
    %337 = arith.truncf %336 : vector<2x8x8xf32> to vector<2x8x8xbf16>
    %338 = vector.extract_strided_slice %266 {offsets = [0, 16], sizes = [16, 8], strides = [1, 1]} : vector<16x32xf32> to vector<16x8xf32>
    %339 = vector.shape_cast %338 : vector<16x8xf32> to vector<2x8x8xf32>
    %340 = arith.truncf %339 : vector<2x8x8xf32> to vector<2x8x8xbf16>
    "tpu.trace_start"() <{level = 10 : i32, message = "bqd,bkd->bqk"}> : () -> ()
    %cst_113 = arith.constant dense<0.000000e+00> : vector<2x8x8xf32>
    %341 = tpu.matmul %334, %337, %cst_113 {dimension_numbers = #tpu.dot_dimension_numbers<[2], [2], [1], [1], [0, 0, 0, 1, 1, 1], [0], [0]>} : vector<2x8x8xbf16>, vector<2x8x8xbf16>, vector<2x8x8xf32> -> vector<2x8x8xf32>
    "tpu.trace_stop"() : () -> ()
    %cst_114 = arith.constant 0.353553385 : f32
    %342 = vector.broadcast %cst_114 : f32 to vector<2x8x8xf32>
    %343 = arith.mulf %341, %342 : vector<2x8x8xf32>
    %344 = vector.broadcast %30 : vector<2x1x8xf32> to vector<2x8x8xf32>
    %345 = arith.addf %343, %344 : vector<2x8x8xf32>
    %cst_115 = arith.constant dense<0xFF800000> : vector<2x8xf32>
    %346 = vector.multi_reduction <maximumf>, %345, %cst_115 [2] : vector<2x8x8xf32> to vector<2x8xf32>
    %347 = vector.shape_cast %346 : vector<2x8xf32> to vector<2x8x1xf32>
    %348 = vector.broadcast %347 : vector<2x8x1xf32> to vector<2x8x8xf32>
    %349 = arith.subf %345, %348 : vector<2x8x8xf32>
    %350 = math.exp %349 : vector<2x8x8xf32>
    %cst_116 = arith.constant dense<0.000000e+00> : vector<2x8xf32>
    %351 = vector.multi_reduction <add>, %350, %cst_116 [2] : vector<2x8x8xf32> to vector<2x8xf32>
    %352 = vector.shape_cast %351 : vector<2x8xf32> to vector<2x8x1xf32>
    %353 = tpu.reciprocal %352 {approx = true} : vector<2x8x1xf32> -> vector<2x8x1xf32>
    %354 = vector.broadcast %353 : vector<2x8x1xf32> to vector<2x8x8xf32>
    %355 = arith.mulf %350, %354 : vector<2x8x8xf32>
    %356 = arith.truncf %355 : vector<2x8x8xf32> to vector<2x8x8xbf16>
    "tpu.trace_start"() <{level = 10 : i32, message = "bqk,bkd->bqd"}> : () -> ()
    %cst_117 = arith.constant dense<0.000000e+00> : vector<2x8x8xf32>
    %357 = tpu.matmul %356, %340, %cst_117 {dimension_numbers = #tpu.dot_dimension_numbers<[2], [1], [1], [2], [0, 0, 0, 1, 1, 2], [0], [0]>} : vector<2x8x8xbf16>, vector<2x8x8xbf16>, vector<2x8x8xf32> -> vector<2x8x8xf32>
    "tpu.trace_stop"() : () -> ()
    %358 = vector.shape_cast %357 : vector<2x8x8xf32> to vector<16x8xf32>
    %359 = arith.truncf %358 : vector<16x8xf32> to vector<16x8xbf16>
    %360 = vector.extract_strided_slice %268 {offsets = [16, 0], sizes = [8, 32], strides = [1, 1]} : vector<32x32xbf16> to vector<8x32xbf16>
    %cst_118 = arith.constant dense<0.000000e+00> : vector<16x32xf32>
    %361 = tpu.matmul %359, %360, %cst_118 {dimension_numbers = #tpu.dot_dimension_numbers<[1], [0], [0], [1], [0, 0, 1, 1], [], []>} : vector<16x8xbf16>, vector<8x32xbf16>, vector<16x32xf32> -> vector<16x32xf32>
    %362 = arith.addf %331, %361 : vector<16x32xf32>
    %363 = vector.extract_strided_slice %264 {offsets = [0, 24], sizes = [16, 8], strides = [1, 1]} : vector<16x32xf32> to vector<16x8xf32>
    %364 = vector.shape_cast %363 : vector<16x8xf32> to vector<2x8x8xf32>
    %365 = arith.truncf %364 : vector<2x8x8xf32> to vector<2x8x8xbf16>
    %366 = vector.extract_strided_slice %265 {offsets = [0, 24], sizes = [16, 8], strides = [1, 1]} : vector<16x32xf32> to vector<16x8xf32>
    %367 = vector.shape_cast %366 : vector<16x8xf32> to vector<2x8x8xf32>
    %368 = arith.truncf %367 : vector<2x8x8xf32> to vector<2x8x8xbf16>
    %369 = vector.extract_strided_slice %266 {offsets = [0, 24], sizes = [16, 8], strides = [1, 1]} : vector<16x32xf32> to vector<16x8xf32>
    %370 = vector.shape_cast %369 : vector<16x8xf32> to vector<2x8x8xf32>
    %371 = arith.truncf %370 : vector<2x8x8xf32> to vector<2x8x8xbf16>
    "tpu.trace_start"() <{level = 10 : i32, message = "bqd,bkd->bqk"}> : () -> ()
    %cst_119 = arith.constant dense<0.000000e+00> : vector<2x8x8xf32>
    %372 = tpu.matmul %365, %368, %cst_119 {dimension_numbers = #tpu.dot_dimension_numbers<[2], [2], [1], [1], [0, 0, 0, 1, 1, 1], [0], [0]>} : vector<2x8x8xbf16>, vector<2x8x8xbf16>, vector<2x8x8xf32> -> vector<2x8x8xf32>
    "tpu.trace_stop"() : () -> ()
    %cst_120 = arith.constant 0.353553385 : f32
    %373 = vector.broadcast %cst_120 : f32 to vector<2x8x8xf32>
    %374 = arith.mulf %372, %373 : vector<2x8x8xf32>
    %375 = vector.broadcast %30 : vector<2x1x8xf32> to vector<2x8x8xf32>
    %376 = arith.addf %374, %375 : vector<2x8x8xf32>
    %cst_121 = arith.constant dense<0xFF800000> : vector<2x8xf32>
    %377 = vector.multi_reduction <maximumf>, %376, %cst_121 [2] : vector<2x8x8xf32> to vector<2x8xf32>
    %378 = vector.shape_cast %377 : vector<2x8xf32> to vector<2x8x1xf32>
    %379 = vector.broadcast %378 : vector<2x8x1xf32> to vector<2x8x8xf32>
    %380 = arith.subf %376, %379 : vector<2x8x8xf32>
    %381 = math.exp %380 : vector<2x8x8xf32>
    %cst_122 = arith.constant dense<0.000000e+00> : vector<2x8xf32>
    %382 = vector.multi_reduction <add>, %381, %cst_122 [2] : vector<2x8x8xf32> to vector<2x8xf32>
    %383 = vector.shape_cast %382 : vector<2x8xf32> to vector<2x8x1xf32>
    %384 = tpu.reciprocal %383 {approx = true} : vector<2x8x1xf32> -> vector<2x8x1xf32>
    %385 = vector.broadcast %384 : vector<2x8x1xf32> to vector<2x8x8xf32>
    %386 = arith.mulf %381, %385 : vector<2x8x8xf32>
    %387 = arith.truncf %386 : vector<2x8x8xf32> to vector<2x8x8xbf16>
    "tpu.trace_start"() <{level = 10 : i32, message = "bqk,bkd->bqd"}> : () -> ()
    %cst_123 = arith.constant dense<0.000000e+00> : vector<2x8x8xf32>
    %388 = tpu.matmul %387, %371, %cst_123 {dimension_numbers = #tpu.dot_dimension_numbers<[2], [1], [1], [2], [0, 0, 0, 1, 1, 2], [0], [0]>} : vector<2x8x8xbf16>, vector<2x8x8xbf16>, vector<2x8x8xf32> -> vector<2x8x8xf32>
    "tpu.trace_stop"() : () -> ()
    %389 = vector.shape_cast %388 : vector<2x8x8xf32> to vector<16x8xf32>
    %390 = arith.truncf %389 : vector<16x8xf32> to vector<16x8xbf16>
    %391 = vector.extract_strided_slice %268 {offsets = [24, 0], sizes = [8, 32], strides = [1, 1]} : vector<32x32xbf16> to vector<8x32xbf16>
    %cst_124 = arith.constant dense<0.000000e+00> : vector<16x32xf32>
    %392 = tpu.matmul %390, %391, %cst_124 {dimension_numbers = #tpu.dot_dimension_numbers<[1], [0], [0], [1], [0, 0, 1, 1], [], []>} : vector<16x8xbf16>, vector<8x32xbf16>, vector<16x32xf32> -> vector<16x32xf32>
    %393 = arith.addf %362, %392 : vector<16x32xf32>
    %c1_125 = arith.constant 1 : index
    %c0_126 = arith.constant 0 : index
    %c0_127 = arith.constant 0 : index
    %394 = vector.load %arg7[%c1_125, %c0_126, %c0_127] : memref<2x1x32xf32, #tpu.memory_space<vmem>>, vector<1x1x32xf32>
    %395 = vector.shape_cast %394 : vector<1x1x32xf32> to vector<1x32xf32>
    %396 = vector.broadcast %395 : vector<1x32xf32> to vector<16x32xf32>
    %397 = arith.addf %393, %396 : vector<16x32xf32>
    %398 = arith.addf %397, %255 : vector<16x32xf32>
    %c1_128 = arith.constant 1 : index
    %c0_129 = arith.constant 0 : index
    %c0_130 = arith.constant 0 : index
    %399 = vector.load %arg8[%c1_128, %c0_129, %c0_130] : memref<2x1x32xf32, #tpu.memory_space<vmem>>, vector<1x1x32xf32>
    %400 = vector.shape_cast %399 : vector<1x1x32xf32> to vector<1x32xf32>
    %c1_131 = arith.constant 1 : index
    %c0_132 = arith.constant 0 : index
    %c0_133 = arith.constant 0 : index
    %401 = vector.load %arg9[%c1_131, %c0_132, %c0_133] : memref<2x1x32xf32, #tpu.memory_space<vmem>>, vector<1x1x32xf32>
    %402 = vector.shape_cast %401 : vector<1x1x32xf32> to vector<1x32xf32>
    %cst_134 = arith.constant dense<0.000000e+00> : vector<16xf32>
    %403 = vector.multi_reduction <add>, %398, %cst_134 [1] : vector<16x32xf32> to vector<16xf32>
    %404 = vector.shape_cast %403 : vector<16xf32> to vector<16x1xf32>
    %cst_135 = arith.constant 3.200000e+01 : f32
    %405 = vector.broadcast %cst_135 : f32 to vector<16x1xf32>
    %406 = arith.divf %404, %405 : vector<16x1xf32>
    %407 = vector.broadcast %406 : vector<16x1xf32> to vector<16x32xf32>
    %408 = arith.subf %398, %407 : vector<16x32xf32>
    %409 = arith.mulf %408, %408 : vector<16x32xf32>
    %cst_136 = arith.constant dense<0.000000e+00> : vector<16xf32>
    %410 = vector.multi_reduction <add>, %409, %cst_136 [1] : vector<16x32xf32> to vector<16xf32>
    %411 = vector.shape_cast %410 : vector<16xf32> to vector<16x1xf32>
    %cst_137 = arith.constant 3.200000e+01 : f32
    %412 = vector.broadcast %cst_137 : f32 to vector<16x1xf32>
    %413 = arith.divf %411, %412 : vector<16x1xf32>
    %414 = vector.broadcast %406 : vector<16x1xf32> to vector<16x32xf32>
    %415 = arith.subf %398, %414 : vector<16x32xf32>
    %cst_138 = arith.constant 9.99999996E-13 : f32
    %416 = vector.broadcast %cst_138 : f32 to vector<16x1xf32>
    %417 = arith.addf %413, %416 : vector<16x1xf32>
    %418 = math.rsqrt %417 : vector<16x1xf32>
    %419 = vector.broadcast %418 : vector<16x1xf32> to vector<16x32xf32>
    %420 = arith.mulf %415, %419 : vector<16x32xf32>
    %421 = vector.broadcast %400 : vector<1x32xf32> to vector<16x32xf32>
    %422 = arith.mulf %420, %421 : vector<16x32xf32>
    %423 = vector.broadcast %402 : vector<1x32xf32> to vector<16x32xf32>
    %424 = arith.addf %422, %423 : vector<16x32xf32>
    %425 = arith.truncf %424 : vector<16x32xf32> to vector<16x32xbf16>
    %c1_139 = arith.constant 1 : index
    %c0_140 = arith.constant 0 : index
    %c0_141 = arith.constant 0 : index
    %426 = vector.load %arg10[%c1_139, %c0_140, %c0_141] : memref<2x32x64xbf16, #tpu.memory_space<vmem>>, vector<1x32x64xbf16>
    %427 = vector.shape_cast %426 : vector<1x32x64xbf16> to vector<32x64xbf16>
    %cst_142 = arith.constant dense<0.000000e+00> : vector<16x64xf32>
    %428 = tpu.matmul %425, %427, %cst_142 {dimension_numbers = #tpu.dot_dimension_numbers<[1], [0], [0], [1], [0, 0, 1, 1], [], []>} : vector<16x32xbf16>, vector<32x64xbf16>, vector<16x64xf32> -> vector<16x64xf32>
    %c1_143 = arith.constant 1 : index
    %c0_144 = arith.constant 0 : index
    %c0_145 = arith.constant 0 : index
    %429 = vector.load %arg11[%c1_143, %c0_144, %c0_145] : memref<2x1x64xf32, #tpu.memory_space<vmem>>, vector<1x1x64xf32>
    %430 = vector.shape_cast %429 : vector<1x1x64xf32> to vector<1x64xf32>
    %431 = vector.broadcast %430 : vector<1x64xf32> to vector<16x64xf32>
    %432 = arith.addf %428, %431 : vector<16x64xf32>
    %433 = arith.mulf %432, %432 : vector<16x64xf32>
    %434 = arith.mulf %432, %433 : vector<16x64xf32>
    %cst_146 = arith.constant 4.471500e-02 : f32
    %435 = vector.broadcast %cst_146 : f32 to vector<16x64xf32>
    %436 = arith.mulf %435, %434 : vector<16x64xf32>
    %437 = arith.addf %432, %436 : vector<16x64xf32>
    %cst_147 = arith.constant 0.797884583 : f32
    %438 = vector.broadcast %cst_147 : f32 to vector<16x64xf32>
    %439 = arith.mulf %438, %437 : vector<16x64xf32>
    %440 = math.tanh %439 : vector<16x64xf32>
    %cst_148 = arith.constant 1.000000e+00 : f32
    %441 = vector.broadcast %cst_148 : f32 to vector<16x64xf32>
    %442 = arith.addf %441, %440 : vector<16x64xf32>
    %cst_149 = arith.constant 5.000000e-01 : f32
    %443 = vector.broadcast %cst_149 : f32 to vector<16x64xf32>
    %444 = arith.mulf %443, %442 : vector<16x64xf32>
    %445 = arith.mulf %432, %444 : vector<16x64xf32>
    %446 = arith.truncf %445 : vector<16x64xf32> to vector<16x64xbf16>
    %c1_150 = arith.constant 1 : index
    %c0_151 = arith.constant 0 : index
    %c0_152 = arith.constant 0 : index
    %447 = vector.load %arg12[%c1_150, %c0_151, %c0_152] : memref<2x64x32xbf16, #tpu.memory_space<vmem>>, vector<1x64x32xbf16>
    %448 = vector.shape_cast %447 : vector<1x64x32xbf16> to vector<64x32xbf16>
    %cst_153 = arith.constant dense<0.000000e+00> : vector<16x32xf32>
    %449 = tpu.matmul %446, %448, %cst_153 {dimension_numbers = #tpu.dot_dimension_numbers<[1], [0], [0], [1], [0, 0, 1, 1], [], []>} : vector<16x64xbf16>, vector<64x32xbf16>, vector<16x32xf32> -> vector<16x32xf32>
    %c1_154 = arith.constant 1 : index
    %c0_155 = arith.constant 0 : index
    %c0_156 = arith.constant 0 : index
    %450 = vector.load %arg13[%c1_154, %c0_155, %c0_156] : memref<2x1x32xf32, #tpu.memory_space<vmem>>, vector<1x1x32xf32>
    %451 = vector.shape_cast %450 : vector<1x1x32xf32> to vector<1x32xf32>
    %452 = vector.broadcast %451 : vector<1x32xf32> to vector<16x32xf32>
    %453 = arith.addf %449, %452 : vector<16x32xf32>
    %454 = arith.addf %453, %424 : vector<16x32xf32>
    %c1_157 = arith.constant 1 : index
    %c0_158 = arith.constant 0 : index
    %c0_159 = arith.constant 0 : index
    %455 = vector.load %arg14[%c1_157, %c0_158, %c0_159] : memref<2x1x32xf32, #tpu.memory_space<vmem>>, vector<1x1x32xf32>
    %456 = vector.shape_cast %455 : vector<1x1x32xf32> to vector<1x32xf32>
    %c1_160 = arith.constant 1 : index
    %c0_161 = arith.constant 0 : index
    %c0_162 = arith.constant 0 : index
    %457 = vector.load %arg15[%c1_160, %c0_161, %c0_162] : memref<2x1x32xf32, #tpu.memory_space<vmem>>, vector<1x1x32xf32>
    %458 = vector.shape_cast %457 : vector<1x1x32xf32> to vector<1x32xf32>
    %cst_163 = arith.constant dense<0.000000e+00> : vector<16xf32>
    %459 = vector.multi_reduction <add>, %454, %cst_163 [1] : vector<16x32xf32> to vector<16xf32>
    %460 = vector.shape_cast %459 : vector<16xf32> to vector<16x1xf32>
    %cst_164 = arith.constant 3.200000e+01 : f32
    %461 = vector.broadcast %cst_164 : f32 to vector<16x1xf32>
    %462 = arith.divf %460, %461 : vector<16x1xf32>
    %463 = vector.broadcast %462 : vector<16x1xf32> to vector<16x32xf32>
    %464 = arith.subf %454, %463 : vector<16x32xf32>
    %465 = arith.mulf %464, %464 : vector<16x32xf32>
    %cst_165 = arith.constant dense<0.000000e+00> : vector<16xf32>
    %466 = vector.multi_reduction <add>, %465, %cst_165 [1] : vector<16x32xf32> to vector<16xf32>
    %467 = vector.shape_cast %466 : vector<16xf32> to vector<16x1xf32>
    %cst_166 = arith.constant 3.200000e+01 : f32
    %468 = vector.broadcast %cst_166 : f32 to vector<16x1xf32>
    %469 = arith.divf %467, %468 : vector<16x1xf32>
    %470 = vector.broadcast %462 : vector<16x1xf32> to vector<16x32xf32>
    %471 = arith.subf %454, %470 : vector<16x32xf32>
    %cst_167 = arith.constant 9.99999996E-13 : f32
    %472 = vector.broadcast %cst_167 : f32 to vector<16x1xf32>
    %473 = arith.addf %469, %472 : vector<16x1xf32>
    %474 = math.rsqrt %473 : vector<16x1xf32>
    %475 = vector.broadcast %474 : vector<16x1xf32> to vector<16x32xf32>
    %476 = arith.mulf %471, %475 : vector<16x32xf32>
    %477 = vector.broadcast %456 : vector<1x32xf32> to vector<16x32xf32>
    %478 = arith.mulf %476, %477 : vector<16x32xf32>
    %479 = vector.broadcast %458 : vector<1x32xf32> to vector<16x32xf32>
    %480 = arith.addf %478, %479 : vector<16x32xf32>
    %481 = vector.shape_cast %480 : vector<16x32xf32> to vector<2x8x32xf32>
    %482 = vector.extract_strided_slice %481 {offsets = [0, 0, 0], sizes = [2, 1, 32], strides = [1, 1, 1]} : vector<2x8x32xf32> to vector<2x1x32xf32>
    %483 = vector.shape_cast %482 : vector<2x1x32xf32> to vector<2x32xf32>
    %484 = arith.truncf %483 : vector<2x32xf32> to vector<2x32xbf16>
    %c0_168 = arith.constant 0 : index
    %c0_169 = arith.constant 0 : index
    %485 = vector.load %arg16[%c0_168, %c0_169] : memref<32x32xbf16, #tpu.memory_space<vmem>>, vector<32x32xbf16>
    %cst_170 = arith.constant dense<0.000000e+00> : vector<2x32xf32>
    %486 = tpu.matmul %484, %485, %cst_170 {dimension_numbers = #tpu.dot_dimension_numbers<[1], [0], [0], [1], [0, 0, 1, 1], [], []>} : vector<2x32xbf16>, vector<32x32xbf16>, vector<2x32xf32> -> vector<2x32xf32>
    %c0_171 = arith.constant 0 : index
    %c0_172 = arith.constant 0 : index
    %487 = vector.load %arg17[%c0_171, %c0_172] : memref<1x32xf32, #tpu.memory_space<vmem>>, vector<1x32xf32>
    %488 = vector.broadcast %487 : vector<1x32xf32> to vector<2x32xf32>
    %489 = arith.addf %486, %488 : vector<2x32xf32>
    %490 = math.tanh %489 : vector<2x32xf32>
    %cst_173 = arith.constant 0.000000e+00 : f32
    %491 = vector.broadcast %cst_173 : f32 to vector<2x32xf32>
    %492 = arith.maximumf %490, %491 : vector<2x32xf32>
    %493 = arith.truncf %492 : vector<2x32xf32> to vector<2x32xbf16>
    %c0_174 = arith.constant 0 : index
    %c0_175 = arith.constant 0 : index
    %494 = vector.load %arg18[%c0_174, %c0_175] : memref<32x16xbf16, #tpu.memory_space<vmem>>, vector<32x16xbf16>
    %cst_176 = arith.constant dense<0.000000e+00> : vector<2x16xf32>
    %495 = tpu.matmul %493, %494, %cst_176 {dimension_numbers = #tpu.dot_dimension_numbers<[1], [0], [0], [1], [0, 0, 1, 1], [], []>} : vector<2x32xbf16>, vector<32x16xbf16>, vector<2x16xf32> -> vector<2x16xf32>
    %c0_177 = arith.constant 0 : index
    %c0_178 = arith.constant 0 : index
    %496 = vector.load %arg19[%c0_177, %c0_178] : memref<1x16xf32, #tpu.memory_space<vmem>>, vector<1x16xf32>
    %497 = vector.broadcast %496 : vector<1x16xf32> to vector<2x16xf32>
    %498 = arith.addf %495, %497 : vector<2x16xf32>
    %cst_179 = arith.constant 0.000000e+00 : f32
    %499 = vector.broadcast %cst_179 : f32 to vector<2x16xf32>
    %500 = arith.maximumf %498, %499 : vector<2x16xf32>
    %501 = arith.truncf %500 : vector<2x16xf32> to vector<2x16xbf16>
    %c0_180 = arith.constant 0 : index
    %c0_181 = arith.constant 0 : index
    %502 = vector.load %arg20[%c0_180, %c0_181] : memref<16x4xbf16, #tpu.memory_space<vmem>>, vector<16x4xbf16>
    %cst_182 = arith.constant dense<0.000000e+00> : vector<2x4xf32>
    %503 = tpu.matmul %501, %502, %cst_182 {dimension_numbers = #tpu.dot_dimension_numbers<[1], [0], [0], [1], [0, 0, 1, 1], [], []>} : vector<2x16xbf16>, vector<16x4xbf16>, vector<2x4xf32> -> vector<2x4xf32>
    %c0_183 = arith.constant 0 : index
    %c0_184 = arith.constant 0 : index
    %504 = vector.load %arg21[%c0_183, %c0_184] : memref<1x4xf32, #tpu.memory_space<vmem>>, vector<1x4xf32>
    %505 = vector.broadcast %504 : vector<1x4xf32> to vector<2x4xf32>
    %506 = arith.addf %503, %505 : vector<2x4xf32>
    %507 = arith.negf %506 : vector<2x4xf32>
    %508 = math.exp %507 : vector<2x4xf32>
    %cst_185 = arith.constant 1.000000e+00 : f32
    %509 = vector.broadcast %cst_185 : f32 to vector<2x4xf32>
    %510 = arith.addf %509, %508 : vector<2x4xf32>
    %511 = arith.divf %509, %510 : vector<2x4xf32>
    %c0_186 = arith.constant 0 : index
    %c0_187 = arith.constant 0 : index
    %512 = vector.load %arg22[%c0_186, %c0_187] : memref<2x4xf32, #tpu.memory_space<vmem>>, vector<2x4xf32>
    tpu.vector_store %arg22[%c0_186, %c0_187], %511 {strides = array<i32>} : memref<2x4xf32, #tpu.memory_space<vmem>>, vector<2x4xf32>,
    return
  }
}

</mosaic_0001>

<llo_original>
// kernel: tpu_custom_call.1
$region0: #{tpu_custom_call.1}
  #allocation0 [shape = 'u32[]', space=smem, size = 0x4, offset = 0x4, fixed_abs, tag = 'smem constant byte address 0x4 - core index']
  #allocation1 [shape = 'u32[144,128]{1,0:T(1,128)}', space=vmem, size = 0x12000, scoped, tag = 'internal scratch']
  %s0 = inlined_call_operand.vmem [shape: f32[16,32], index: 0, kind: input, shape index: {}]
  %s1 = inlined_call_operand.hbm [shape: f32[2,8], index: 1, kind: input, shape index: {}]
  %s2 = inlined_call_operand.vmem [shape: f32[1,32], index: 2, kind: input, shape index: {}]
  %s3 = inlined_call_operand.hbm [shape: f32[1,32], index: 3, kind: input, shape index: {}]
  %s4 = inlined_call_operand.vmem [shape: bf16[2,32,96], index: 4, kind: input, shape index: {}]
  %s5 = inlined_call_operand.hbm [shape: f32[2,1,96], index: 5, kind: input, shape index: {}]
  %s6 = inlined_call_operand.vmem [shape: bf16[2,32,32], index: 6, kind: input, shape index: {}]
  %s7 = inlined_call_operand.hbm [shape: f32[2,1,32], index: 7, kind: input, shape index: {}]
  %s8 = inlined_call_operand.hbm [shape: f32[2,1,32], index: 8, kind: input, shape index: {}]
  %s9 = inlined_call_operand.hbm [shape: f32[2,1,32], index: 9, kind: input, shape index: {}]
  %s10 = inlined_call_operand.vmem [shape: bf16[2,32,64], index: 10, kind: input, shape index: {}]
  %s11 = inlined_call_operand.hbm [shape: f32[2,1,64], index: 11, kind: input, shape index: {}]
  %s12 = inlined_call_operand.vmem [shape: bf16[2,64,32], index: 12, kind: input, shape index: {}]
  %s13 = inlined_call_operand.hbm [shape: f32[2,1,32], index: 13, kind: input, shape index: {}]
  %s14 = inlined_call_operand.hbm [shape: f32[2,1,32], index: 14, kind: input, shape index: {}]
  %s15 = inlined_call_operand.vmem [shape: f32[2,1,32], index: 15, kind: input, shape index: {}]
  %s16 = inlined_call_operand.hbm [shape: bf16[32,32], index: 16, kind: input, shape index: {}]
  %s17 = inlined_call_operand.vmem [shape: f32[1,32], index: 17, kind: input, shape index: {}]
  %s18 = inlined_call_operand.vmem [shape: bf16[32,16], index: 18, kind: input, shape index: {}]
  %s19 = inlined_call_operand.vmem [shape: f32[1,16], index: 19, kind: input, shape index: {}]
  %s20 = inlined_call_operand.vmem [shape: bf16[16,4], index: 20, kind: input, shape index: {}]
  %s21 = inlined_call_operand.vmem [shape: f32[1,4], index: 21, kind: input, shape index: {}]
  %s22 = inlined_call_operand.hbm [shape: f32[2,4], index: 22, kind: output, shape index: {}]
  %s23 = sld [smem:[#allocation0]]
  $region138: #{tpu_custom_call.1} parent=0
    _
  %s25 = ssub.s32 1, %s23
  %s26 = scalar_select 0, %s25, %s23
  $region1: #{tpu_custom_call.1} parent=0
    #allocation2 [shape = 'u8[1024]{0}', space=vmem, size = 0x400, scoped, tag = 'input window, operand 1, single buffered']
    #allocation3 [shape = 's32[1]{0}', space=sflag, size = 0x4, scoped, tag = 'scoped memory for tpu_custom_call.1']
    #allocation4 [shape = 's32[1]{0}', space=sflag, size = 0x4, scoped, tag = 'scoped memory for tpu_custom_call.1']
    #allocation5 [shape = 'u8[512]{0}', space=vmem, size = 0x400, scoped, tag = 'input window, operand 3, single buffered']
    #allocation6 [shape = 's32[1]{0}', space=sflag, size = 0x4, scoped, tag = 'scoped memory for tpu_custom_call.1']
    #allocation7 [shape = 'u8[1024]{0}', space=vmem, size = 0x400, scoped, tag = 'input window, operand 5, single buffered']
    #allocation8 [shape = 'u8[1024]{0}', space=vmem, size = 0x400, scoped, tag = 'input window, operand 7, single buffered']
    #allocation9 [shape = 's32[1]{0}', space=sflag, size = 0x4, scoped, tag = 'scoped memory for tpu_custom_call.1']
    #allocation10 [shape = 'u8[1024]{0}', space=vmem, size = 0x400, scoped, tag = 'input window, operand 8, single buffered']
    #allocation11 [shape = 'u8[1024]{0}', space=vmem, size = 0x400, scoped, tag = 'input window, operand 9, single buffered']
    #allocation12 [shape = 's32[1]{0}', space=sflag, size = 0x4, scoped, tag = 'scoped memory for tpu_custom_call.1']
    #allocation13 [shape = 'u8[1024]{0}', space=vmem, size = 0x400, scoped, tag = 'input window, operand 11, single buffered']
    #allocation14 [shape = 'u8[1024]{0}', space=vmem, size = 0x400, scoped, tag = 'input window, operand 13, single buffered']
    #allocation15 [shape = 's32[1]{0}', space=sflag, size = 0x4, scoped, tag = 'scoped memory for tpu_custom_call.1']
    #allocation16 [shape = 'u8[1024]{0}', space=vmem, size = 0x400, scoped, tag = 'input window, operand 14, single buffered']
    #allocation17 [shape = 'u8[8192]{0}', space=vmem, size = 0x2000, scoped, tag = 'input window, operand 16, single buffered']
    #allocation18 [shape = 's32[1]{0}', space=sflag, size = 0x4, scoped, tag = 'scoped memory for tpu_custom_call.1']
    #allocation19 [shape = 'u8[1024]{0}', space=vmem, size = 0x400, scoped, tag = 'output window, operand 0, single buffered']
    %27 = vsyncpa [#allocation3], 0
    %28 = vsyncpa [#allocation6], 0
    %29 = vsyncpa [#allocation9], 0
    %30 = vsyncpa [#allocation12], 0
    %31 = vsyncpa [#allocation15], 0
    %32 = vsyncpa [#allocation18], 0
    %33 = vsyncpa [#allocation4], 0
    // Predicated region
    $region2: #{tpu_custom_call.1} parent=1 // pred_check
      _
    $region3: #{tpu_custom_call.1} parent=1 // pred_check_branch
      %35 = sbr.rel (0) target = $region5
    $region4: #{tpu_custom_call.1} parent=1 // pred_region
      _
    $region5: #{tpu_custom_call.1} parent=1 // pred_fallthru
      _
    // Predicated region
    $region6: #{tpu_custom_call.1} parent=1 // pred_check
      _
    $region7: #{tpu_custom_call.1} parent=1 // pred_check_branch
      %37 = sbr.rel (0) target = $region9
    $region8: #{tpu_custom_call.1} parent=1 // pred_region
      %s39 = ssub.s32 32, 32
      %40 = vsyncadd [#allocation3], %s39
      %s42 = sshll.u32 [#allocation2], 4
      %s43 = int_to_ptr.vmem [resolvable:$true] %s42
      %45 = dma.hbm_to_vmem [thread:$0]  %s1, 32, %s43, [#allocation3]
    $region9: #{tpu_custom_call.1} parent=1 // pred_fallthru
      _
    // Predicated region
    $region10: #{tpu_custom_call.1} parent=1 // pred_check
      _
    $region11: #{tpu_custom_call.1} parent=1 // pred_check_branch
      %47 = sbr.rel (0) target = $region13
    $region12: #{tpu_custom_call.1} parent=1 // pred_region
      _
    $region13: #{tpu_custom_call.1} parent=1 // pred_fallthru
      _
    // Predicated region
    $region14: #{tpu_custom_call.1} parent=1 // pred_check
      _
    $region15: #{tpu_custom_call.1} parent=1 // pred_check_branch
      %49 = sbr.rel (0) target = $region17
    $region16: #{tpu_custom_call.1} parent=1 // pred_region
      %s51 = ssub.s32 16, 16
      %52 = vsyncadd [#allocation6], %s51
      %s54 = sshll.u32 [#allocation5], 4
      %s55 = int_to_ptr.vmem [resolvable:$true] %s54
      %57 = dma.hbm_to_vmem [thread:$0]  %s3, 16, %s55, [#allocation6]
    $region17: #{tpu_custom_call.1} parent=1 // pred_fallthru
      _
    // Predicated region
    $region18: #{tpu_custom_call.1} parent=1 // pred_check
      _
    $region19: #{tpu_custom_call.1} parent=1 // pred_check_branch
      %59 = sbr.rel (0) target = $region21
    $region20: #{tpu_custom_call.1} parent=1 // pred_region
      _
    $region21: #{tpu_custom_call.1} parent=1 // pred_fallthru
      _
    // Predicated region
    $region22: #{tpu_custom_call.1} parent=1 // pred_check
      _
    $region23: #{tpu_custom_call.1} parent=1 // pred_check_branch
      %61 = sbr.rel (0) target = $region25
    $region24: #{tpu_custom_call.1} parent=1 // pred_region
      %s63 = ssub.s32 32, 32
      %64 = vsyncadd [#allocation6], %s63
      %s65 = sshll.u32 [#allocation7], 4
      %s66 = int_to_ptr.vmem [resolvable:$true] %s65
      %71 = dma.hbm_to_vmem [thread:$0]  %s5, 32, %s66, [#allocation6], 16, 16, 1
    $region25: #{tpu_custom_call.1} parent=1 // pred_fallthru
      _
    // Predicated region
    $region26: #{tpu_custom_call.1} parent=1 // pred_check
      _
    $region27: #{tpu_custom_call.1} parent=1 // pred_check_branch
      %73 = sbr.rel (0) target = $region29
    $region28: #{tpu_custom_call.1} parent=1 // pred_region
      _
    $region29: #{tpu_custom_call.1} parent=1 // pred_fallthru
      _
    // Predicated region
    $region30: #{tpu_custom_call.1} parent=1 // pred_check
      _
    $region31: #{tpu_custom_call.1} parent=1 // pred_check_branch
      %75 = sbr.rel (0) target = $region33
    $region32: #{tpu_custom_call.1} parent=1 // pred_region
      %s77 = ssub.s32 32, 32
      %78 = vsyncadd [#allocation9], %s77
      %s79 = sshll.u32 [#allocation8], 4
      %s80 = int_to_ptr.vmem [resolvable:$true] %s79
      %85 = dma.hbm_to_vmem [thread:$0]  %s7, 32, %s80, [#allocation9], 16, 16, 1
    $region33: #{tpu_custom_call.1} parent=1 // pred_fallthru
      _
    // Predicated region
    $region34: #{tpu_custom_call.1} parent=1 // pred_check
      _
    $region35: #{tpu_custom_call.1} parent=1 // pred_check_branch
      %87 = sbr.rel (0) target = $region37
    $region36: #{tpu_custom_call.1} parent=1 // pred_region
      %s89 = ssub.s32 32, 32
      %90 = vsyncadd [#allocation9], %s89
      %s91 = sshll.u32 [#allocation10], 4
      %s92 = int_to_ptr.vmem [resolvable:$true] %s91
      %97 = dma.hbm_to_vmem [thread:$0]  %s8, 32, %s92, [#allocation9], 16, 16, 1
    $region37: #{tpu_custom_call.1} parent=1 // pred_fallthru
      _
    // Predicated region
    $region38: #{tpu_custom_call.1} parent=1 // pred_check
      _
    $region39: #{tpu_custom_call.1} parent=1 // pred_check_branch
      %99 = sbr.rel (0) target = $region41
    $region40: #{tpu_custom_call.1} parent=1 // pred_region
      %s101 = ssub.s32 32, 32
      %102 = vsyncadd [#allocation12], %s101
      %s103 = sshll.u32 [#allocation11], 4
      %s104 = int_to_ptr.vmem [resolvable:$true] %s103
      %109 = dma.hbm_to_vmem [thread:$0]  %s9, 32, %s104, [#allocation12], 16, 16, 1
    $region41: #{tpu_custom_call.1} parent=1 // pred_fallthru
      _
    // Predicated region
    $region42: #{tpu_custom_call.1} parent=1 // pred_check
      _
    $region43: #{tpu_custom_call.1} parent=1 // pred_check_branch
      %111 = sbr.rel (0) target = $region45
    $region44: #{tpu_custom_call.1} parent=1 // pred_region
      _
    $region45: #{tpu_custom_call.1} parent=1 // pred_fallthru
      _
    // Predicated region
    $region46: #{tpu_custom_call.1} parent=1 // pred_check
      _
    $region47: #{tpu_custom_call.1} parent=1 // pred_check_branch
      %113 = sbr.rel (0) target = $region49
    $region48: #{tpu_custom_call.1} parent=1 // pred_region
      %s115 = ssub.s32 32, 32
      %116 = vsyncadd [#allocation12], %s115
      %s117 = sshll.u32 [#allocation13], 4
      %s118 = int_to_ptr.vmem [resolvable:$true] %s117
      %123 = dma.hbm_to_vmem [thread:$0]  %s11, 32, %s118, [#allocation12], 16, 16, 1
    $region49: #{tpu_custom_call.1} parent=1 // pred_fallthru
      _
    // Predicated region
    $region50: #{tpu_custom_call.1} parent=1 // pred_check
      _
    $region51: #{tpu_custom_call.1} parent=1 // pred_check_branch
      %125 = sbr.rel (0) target = $region53
    $region52: #{tpu_custom_call.1} parent=1 // pred_region
      _
    $region53: #{tpu_custom_call.1} parent=1 // pred_fallthru
      _
    // Predicated region
    $region54: #{tpu_custom_call.1} parent=1 // pred_check
      _
    $region55: #{tpu_custom_call.1} parent=1 // pred_check_branch
      %127 = sbr.rel (0) target = $region57
    $region56: #{tpu_custom_call.1} parent=1 // pred_region
      %s129 = ssub.s32 32, 32
      %130 = vsyncadd [#allocation15], %s129
      %s131 = sshll.u32 [#allocation14], 4
      %s132 = int_to_ptr.vmem [resolvable:$true] %s131
      %137 = dma.hbm_to_vmem [thread:$0]  %s13, 32, %s132, [#allocation15], 16, 16, 1
    $region57: #{tpu_custom_call.1} parent=1 // pred_fallthru
      _
    // Predicated region
    $region58: #{tpu_custom_call.1} parent=1 // pred_check
      _
    $region59: #{tpu_custom_call.1} parent=1 // pred_check_branch
      %139 = sbr.rel (0) target = $region61
    $region60: #{tpu_custom_call.1} parent=1 // pred_region
      %s141 = ssub.s32 32, 32
      %142 = vsyncadd [#allocation15], %s141
      %s143 = sshll.u32 [#allocation16], 4
      %s144 = int_to_ptr.vmem [resolvable:$true] %s143
      %149 = dma.hbm_to_vmem [thread:$0]  %s14, 32, %s144, [#allocation15], 16, 16, 1
    $region61: #{tpu_custom_call.1} parent=1 // pred_fallthru
      _
    // Predicated region
    $region62: #{tpu_custom_call.1} parent=1 // pred_check
      _
    $region63: #{tpu_custom_call.1} parent=1 // pred_check_branch
      %151 = sbr.rel (0) target = $region65
    $region64: #{tpu_custom_call.1} parent=1 // pred_region
      _
    $region65: #{tpu_custom_call.1} parent=1 // pred_fallthru
      _
    // Predicated region
    $region66: #{tpu_custom_call.1} parent=1 // pred_check
      _
    $region67: #{tpu_custom_call.1} parent=1 // pred_check_branch
      %153 = sbr.rel (0) target = $region69
    $region68: #{tpu_custom_call.1} parent=1 // pred_region
      %s155 = ssub.s32 256, 256
      %156 = vsyncadd [#allocation18], %s155
      %s157 = sshll.u32 [#allocation17], 4
      %s158 = int_to_ptr.vmem [resolvable:$true] %s157
      %163 = dma.hbm_to_vmem [thread:$0]  %s16, 256, %s158, [#allocation18], 64, 64, 4
    $region69: #{tpu_custom_call.1} parent=1 // pred_fallthru
      _
    // Predicated region
    $region70: #{tpu_custom_call.1} parent=1 // pred_check
      _
    $region71: #{tpu_custom_call.1} parent=1 // pred_check_branch
      %165 = sbr.rel (0) target = $region73
    $region72: #{tpu_custom_call.1} parent=1 // pred_region
      _
    $region73: #{tpu_custom_call.1} parent=1 // pred_fallthru
      _
    // Predicated region
    $region74: #{tpu_custom_call.1} parent=1 // pred_check
      _
    $region75: #{tpu_custom_call.1} parent=1 // pred_check_branch
      %167 = sbr.rel (0) target = $region77
    $region76: #{tpu_custom_call.1} parent=1 // pred_region
      _
    $region77: #{tpu_custom_call.1} parent=1 // pred_fallthru
      _
    // Predicated region
    $region78: #{tpu_custom_call.1} parent=1 // pred_check
      _
    $region79: #{tpu_custom_call.1} parent=1 // pred_check_branch
      %169 = sbr.rel (0) target = $region81
    $region80: #{tpu_custom_call.1} parent=1 // pred_region
      _
    $region81: #{tpu_custom_call.1} parent=1 // pred_fallthru
      _
    // Predicated region
    $region82: #{tpu_custom_call.1} parent=1 // pred_check
      _
    $region83: #{tpu_custom_call.1} parent=1 // pred_check_branch
      %171 = sbr.rel (0) target = $region85
    $region84: #{tpu_custom_call.1} parent=1 // pred_region
      _
    $region85: #{tpu_custom_call.1} parent=1 // pred_fallthru
      _
    // Predicated region
    $region86: #{tpu_custom_call.1} parent=1 // pred_check
      _
    $region87: #{tpu_custom_call.1} parent=1 // pred_check_branch
      %173 = sbr.rel (0) target = $region89
    $region88: #{tpu_custom_call.1} parent=1 // pred_region
      _
    $region89: #{tpu_custom_call.1} parent=1 // pred_fallthru
      _
    // Predicated region
    $region90: #{tpu_custom_call.1} parent=1 // pred_check
      _
    $region91: #{tpu_custom_call.1} parent=1 // pred_check_branch
      %175 = sbr.rel (0) target = $region93
    $region92: #{tpu_custom_call.1} parent=1 // pred_region
      %176 = dma.done [#allocation3], 32
    $region93: #{tpu_custom_call.1} parent=1 // pred_fallthru
      _
    // Predicated region
    $region94: #{tpu_custom_call.1} parent=1 // pred_check
      _
    $region95: #{tpu_custom_call.1} parent=1 // pred_check_branch
      %178 = sbr.rel (0) target = $region97
    $region96: #{tpu_custom_call.1} parent=1 // pred_region
      %179 = dma.done [#allocation6], 16
    $region97: #{tpu_custom_call.1} parent=1 // pred_fallthru
      _
    // Predicated region
    $region98: #{tpu_custom_call.1} parent=1 // pred_check
      _
    $region99: #{tpu_custom_call.1} parent=1 // pred_check_branch
      %181 = sbr.rel (0) target = $region101
    $region100: #{tpu_custom_call.1} parent=1 // pred_region
      %182 = dma.done [#allocation6], 32
    $region101: #{tpu_custom_call.1} parent=1 // pred_fallthru
      _
    // Predicated region
    $region102: #{tpu_custom_call.1} parent=1 // pred_check
      _
    $region103: #{tpu_custom_call.1} parent=1 // pred_check_branch
      %184 = sbr.rel (0) target = $region105
    $region104: #{tpu_custom_call.1} parent=1 // pred_region
      %185 = dma.done [#allocation9], 32
    $region105: #{tpu_custom_call.1} parent=1 // pred_fallthru
      _
    // Predicated region
    $region106: #{tpu_custom_call.1} parent=1 // pred_check
      _
    $region107: #{tpu_custom_call.1} parent=1 // pred_check_branch
      %187 = sbr.rel (0) target = $region109
    $region108: #{tpu_custom_call.1} parent=1 // pred_region
      %188 = dma.done [#allocation9], 32
    $region109: #{tpu_custom_call.1} parent=1 // pred_fallthru
      _
    // Predicated region
    $region110: #{tpu_custom_call.1} parent=1 // pred_check
      _
    $region111: #{tpu_custom_call.1} parent=1 // pred_check_branch
      %190 = sbr.rel (0) target = $region113
    $region112: #{tpu_custom_call.1} parent=1 // pred_region
      %191 = dma.done [#allocation12], 32
    $region113: #{tpu_custom_call.1} parent=1 // pred_fallthru
      _
    // Predicated region
    $region114: #{tpu_custom_call.1} parent=1 // pred_check
      _
    $region115: #{tpu_custom_call.1} parent=1 // pred_check_branch
      %193 = sbr.rel (0) target = $region117
    $region116: #{tpu_custom_call.1} parent=1 // pred_region
      %194 = dma.done [#allocation12], 32
    $region117: #{tpu_custom_call.1} parent=1 // pred_fallthru
      _
    // Predicated region
    $region118: #{tpu_custom_call.1} parent=1 // pred_check
      _
    $region119: #{tpu_custom_call.1} parent=1 // pred_check_branch
      %196 = sbr.rel (0) target = $region121
    $region120: #{tpu_custom_call.1} parent=1 // pred_region
      %197 = dma.done [#allocation15], 32
    $region121: #{tpu_custom_call.1} parent=1 // pred_fallthru
      _
    // Predicated region
    $region122: #{tpu_custom_call.1} parent=1 // pred_check
      _
    $region123: #{tpu_custom_call.1} parent=1 // pred_check_branch
      %199 = sbr.rel (0) target = $region125
    $region124: #{tpu_custom_call.1} parent=1 // pred_region
      %200 = dma.done [#allocation15], 32
    $region125: #{tpu_custom_call.1} parent=1 // pred_fallthru
      _
    // Predicated region
    $region126: #{tpu_custom_call.1} parent=1 // pred_check
      _
    $region127: #{tpu_custom_call.1} parent=1 // pred_check_branch
      %202 = sbr.rel (0) target = $region129
    $region128: #{tpu_custom_call.1} parent=1 // pred_region
      %203 = dma.done [#allocation18], 256
    $region129: #{tpu_custom_call.1} parent=1 // pred_fallthru
      _
    %v205 = vld [vmem:[%s0] sm:$0xff]
    %v206 = vld [vmem:[%s0 + $0x8] sm:$0xff]
    %v207 = vld [vmem:[%s2] sm:$0x1]
    %v208 = vld [vmem:[#allocation5] sm:$0x1]
    %vm209 = vcmask 261120
    %v210 = vsel %vm209, %v205, 0.0
    %211 = vadd.xlane.f32.xlu0 %v210
    %v212 = vpop.xlane.xlu0 %211
    %v213 = vsel %vm209, %v206, 0.0
    %214 = vadd.xlane.f32.xlu0 %v213
    %v215 = vpop.xlane.xlu0 %214
    %v216 = vrcp.pop 32.0
    %v217 = vmul.f32 %v212, %v216
    %v218 = vmul.f32 %v215, %v216
    %v219 = vsub.f32 %v205, %v217
    %v220 = vsub.f32 %v206, %v218
    %v221 = vmul.f32 %v219, %v219
    %v222 = vmul.f32 %v220, %v220
    %v223 = vsel %vm209, %v221, 0.0
    %224 = vadd.xlane.f32.xlu0 %v223
    %v225 = vpop.xlane.xlu0 %224
    %v226 = vsel %vm209, %v222, 0.0
    %227 = vadd.xlane.f32.xlu0 %v226
    %v228 = vpop.xlane.xlu0 %227
    %v229 = vmul.f32 %v225, %v216
    %v230 = vmul.f32 %v228, %v216
    %v231 = vadd.f32 %v229, 1e-12
    %v232 = vadd.f32 %v230, 1e-12
    %v233 = vrsqrt.pop %v231
    %v234 = vrsqrt.pop %v232
    %v235 = vmul.f32 %v219, %v233
    %v236 = vmul.f32 %v220, %v234
    %v238 = vlaneseq
    %v239 = vshrl.u32 %v238, 7
    %v240 = vsub.s32 0, %v239
    %v241 = vrot.slane %v207, %v240
    %v243 = vmul.f32 %v235, %v241
    %v244 = vmul.f32 %v236, %v241
    %v246 = vlaneseq
    %v247 = vshrl.u32 %v246, 7
    %v248 = vsub.s32 0, %v247
    %v249 = vrot.slane %v208, %v248
    %v251 = vadd.f32 %v243, %v249
    %v252 = vadd.f32 %v244, %v249
    %v253 = vld [vmem:[#allocation2] sm:$0x3]
    %v254 = vsub.f32 1.0, %v253
    %v255 = vmul.f32 %v254, -10000.0
    %v258 = vunpack.c.l.s4 1966171168
    %v259 = vunpack.c.0.s8 %v258
    %v260 = vlaneseq
    %v261 = vshrl.u32 %v260, 7
    %v262 = vsub.s32 %v259, %v261
    %v263 = vrot.slane %v255, %v262
    %v264 = vcombine.high %v263, %v263
    %v266 = vunpack.c.l.s4 1966171168
    %v267 = vunpack.c.0.s8 %v266
    %v268 = vlaneseq
    %v269 = vshrl.u32 %v268, 7
    %v270 = vsub.s32 %v267, %v269
    %v271 = vrot.slane %v263, %v270
    %v273 = vunpack.c.l.s4 1966171168
    %v274 = vunpack.c.0.s8 %v273
    %v275 = vlaneseq
    %v276 = vshrl.u32 %v275, 7
    %v277 = vsub.s32 %v274, %v276
    %v278 = vrot.slane %v264, %v277
    %v279 = vpack.c.bf16 %v252, %v251
    %v280 = vld [vmem:[%s4] sm:$0xf]
    %v281 = vld [vmem:[%s4 + $0x4] sm:$0xf]
    %v282 = vld [vmem:[%s4 + $0x8] sm:$0xf]
    %v283 = vld [vmem:[%s4 + $0xc] sm:$0xf]
    %v284 = vld [vmem:[#allocation7] sm:$0x1]
    %v286 = vlaneseq
    %v287 = vshrl.u32 %v286, 7
    %v288 = vsub.s32 0, %v287
    %v289 = vrot.slane %v284, %v288
    %v295 = vunpack.c.l.b16 %v280
    %v296 = vunpack.c.l.b16 %v281
    %v297 = vunpack.c.l.b16 %v282
    %v298 = vunpack.c.l.b16 %v283
    %v299 = vpack.c.b16 %v296, %v295
    %v300 = vpack.c.b16 %v298, %v297
    %v304 = vsel %vm209, %v279, 0
    %306 = vmatprep.subr.bf16.mxu0 0
    %307 = vmatpush1.bf16.msra.mxu0 0
    %308 = vmatprep.subr.bf16.mxu0 0
    %309 = vmatpush1.bf16.msra.mxu0 0
    %310 = vmatprep.subr.bf16.mxu0 0
    %311 = vmatpush1.bf16.msra.mxu0 0
    %312 = vmatprep.subr.bf16.mxu0 0
    %313 = vmatpush1.bf16.msra.mxu0 0
    %314 = vmatprep.subr.bf16.mxu0 0
    %315 = vmatpush1.bf16.msra.mxu0 0
    %316 = vmatprep.subr.bf16.mxu0 0
    %317 = vmatpush1.bf16.msra.mxu0 0
    %318 = vmatprep.subr.bf16.mxu0 0
    %319 = vmatpush1.bf16.msra.mxu0 %v300
    %320 = vmatprep.subr.bf16.mxu0 0
    %321 = vmatpush1.bf16.msra.mxu0 %v299
    %322 = vmatprep.subr.bf16.mxu0 0
    %323 = vmatpush2.bf16.msra.mxu0 0
    %324 = vmatprep.subr.bf16.mxu0 0
    %325 = vmatpush2.bf16.msra.mxu0 0
    %326 = vmatprep.subr.bf16.mxu0 0
    %327 = vmatpush2.bf16.msra.mxu0 0
    %328 = vmatprep.subr.bf16.mxu0 0
    %329 = vmatpush2.bf16.msra.mxu0 0
    %330 = vmatprep.subr.bf16.mxu0 0
    %331 = vmatpush2.bf16.msra.mxu0 0
    %332 = vmatprep.subr.bf16.mxu0 0
    %333 = vmatpush2.bf16.msra.mxu0 0
    %334 = vmatprep.subr.bf16.mxu0 0
    %335 = vmatpush2.bf16.msra.mxu0 0
    %336 = vmatprep.subr.bf16.mxu0 0
    %337 = vmatpush2.bf16.msra.mxu0 0
    %338 = vmatprep.mubr.bf16.mxu0 0
    %339 = vmatmul.mubr.bf16.gmra.mxu0 %v304
    %v340 = vpop.f32.mrf.mxu0
    %v341 = vadd.f32 %v289, %v340
    %v342 = vpop.f32.mrf.mxu0
    %v343 = vpop.f32.mrf.mxu0
    %v344 = vadd.f32 %v289, %v343
    %v345 = vpop.f32.mrf.mxu0
    %346 = vdwg.mxu0
    %v347 = vld [vmem:[%s6] sm:$0xf]
    %v348 = vld [vmem:[%s6 + $0x4] sm:$0xf]
    %v349 = vld [vmem:[%s6 + $0x8] sm:$0xf]
    %v350 = vld [vmem:[%s6 + $0xc] sm:$0xf]
    %v351 = vpack.c.bf16 %v341, %v341
    %v352 = vpack.c.bf16 %v344, %v344
    %354 = vrot.lane.b32.xlu0 %v351, 96
    %v355 = vpop.permute.xlu0 %354
    %vm356 = vcmask 64512
    %v358 = vsel %vm356, %v351, 0
    %v361 = vsel %vm356, %v355, 0
    %363 = vmatprep.subr.bf16.mxu0 0
    %364 = vmatpush1.bf16.xpose.msra.mxu0 0
    %365 = vmatprep.subr.bf16.mxu0 0
    %366 = vmatpush1.bf16.xpose.msra.mxu0 0
    %367 = vmatprep.subr.bf16.mxu0 0
    %368 = vmatpush1.bf16.xpose.msra.mxu0 0
    %369 = vmatprep.subr.bf16.mxu0 0
    %370 = vmatpush1.bf16.xpose.msra.mxu0 0
    %371 = vmatprep.subr.bf16.mxu0 0
    %372 = vmatpush1.bf16.xpose.msra.mxu0 0
    %373 = vmatprep.subr.bf16.mxu0 0
    %374 = vmatpush1.bf16.xpose.msra.mxu0 0
    %375 = vmatprep.subr.bf16.mxu0 0
    %376 = vmatpush1.bf16.xpose.msra.mxu0 0
    %377 = vmatprep.subr.bf16.mxu0 0
    %378 = vmatpush1.bf16.xpose.msra.mxu0 %v361
    %379 = vmatprep.subr.bf16.mxu0 0
    %380 = vmatpush2.bf16.xpose.msra.mxu0 0
    %381 = vmatprep.subr.bf16.mxu0 0
    %382 = vmatpush2.bf16.xpose.msra.mxu0 0
    %383 = vmatprep.subr.bf16.mxu0 0
    %384 = vmatpush2.bf16.xpose.msra.mxu0 0
    %385 = vmatprep.subr.bf16.mxu0 0
    %386 = vmatpush2.bf16.xpose.msra.mxu0 0
    %387 = vmatprep.subr.bf16.mxu0 0
    %388 = vmatpush2.bf16.xpose.msra.mxu0 0
    %389 = vmatprep.subr.bf16.mxu0 0
    %390 = vmatpush2.bf16.xpose.msra.mxu0 0
    %391 = vmatprep.subr.bf16.mxu0 0
    %392 = vmatpush2.bf16.xpose.msra.mxu0 0
    %393 = vmatprep.subr.bf16.mxu0 0
    %394 = vmatpush2.bf16.xpose.msra.mxu0 0
    %395 = vmatprep.mubr.bf16.mxu0 0
    %396 = vmatmul.mubr.bf16.gmra.mxu0 %v358
    %v397 = vpop.f32.mrf.mxu0
    %v398 = vadd.f32 0.0, %v397
    %v399 = vpop.f32.mrf.mxu0
    %v400 = vpop.f32.mrf.mxu0
    %v401 = vpop.f32.mrf.mxu0
    %402 = vdwg.mxu0
    %404 = vrot.lane.b32.xlu0 %v352, 96
    %v405 = vpop.permute.xlu0 %404
    %v407 = vsel %vm356, %v352, 0
    %v410 = vsel %vm356, %v405, 0
    %412 = vmatprep.subr.bf16.mxu0 0
    %413 = vmatpush1.bf16.xpose.msra.mxu0 0
    %414 = vmatprep.subr.bf16.mxu0 0
    %415 = vmatpush1.bf16.xpose.msra.mxu0 0
    %416 = vmatprep.subr.bf16.mxu0 0
    %417 = vmatpush1.bf16.xpose.msra.mxu0 0
    %418 = vmatprep.subr.bf16.mxu0 0
    %419 = vmatpush1.bf16.xpose.msra.mxu0 0
    %420 = vmatprep.subr.bf16.mxu0 0
    %421 = vmatpush1.bf16.xpose.msra.mxu0 0
    %422 = vmatprep.subr.bf16.mxu0 0
    %423 = vmatpush1.bf16.xpose.msra.mxu0 0
    %424 = vmatprep.subr.bf16.mxu0 0
    %425 = vmatpush1.bf16.xpose.msra.mxu0 0
    %426 = vmatprep.subr.bf16.mxu0 0
    %427 = vmatpush1.bf16.xpose.msra.mxu0 %v410
    %428 = vmatprep.subr.bf16.mxu0 0
    %429 = vmatpush2.bf16.xpose.msra.mxu0 0
    %430 = vmatprep.subr.bf16.mxu0 0
    %431 = vmatpush2.bf16.xpose.msra.mxu0 0
    %432 = vmatprep.subr.bf16.mxu0 0
    %433 = vmatpush2.bf16.xpose.msra.mxu0 0
    %434 = vmatprep.subr.bf16.mxu0 0
    %435 = vmatpush2.bf16.xpose.msra.mxu0 0
    %436 = vmatprep.subr.bf16.mxu0 0
    %437 = vmatpush2.bf16.xpose.msra.mxu0 0
    %438 = vmatprep.subr.bf16.mxu0 0
    %439 = vmatpush2.bf16.xpose.msra.mxu0 0
    %440 = vmatprep.subr.bf16.mxu0 0
    %441 = vmatpush2.bf16.xpose.msra.mxu0 0
    %442 = vmatprep.subr.bf16.mxu0 0
    %443 = vmatpush2.bf16.xpose.msra.mxu0 0
    %444 = vmatprep.mubr.bf16.mxu0 0
    %445 = vmatmul.mubr.bf16.gmra.mxu0 %v407
    %v446 = vpop.f32.mrf.mxu0
    %v447 = vadd.f32 0.0, %v446
    %v448 = vpop.f32.mrf.mxu0
    %v449 = vpop.f32.mrf.mxu0
    %v450 = vpop.f32.mrf.mxu0
    %451 = vdwg.mxu0
    %v452 = vmul.f32 %v398, 0.35355338
    %v453 = vmul.f32 %v447, 0.35355338
    %v454 = vlaneseq
    %v455 = vshrl.u32 %v454, 7
    %v456 = vsub.s32 0, %v455
    %v457 = vrot.slane %v271, %v456
    %v458 = vlaneseq
    %v459 = vshrl.u32 %v458, 7
    %v460 = vsub.s32 0, %v459
    %v461 = vrot.slane %v278, %v460
    %v464 = vadd.f32 %v452, %v457
    %v465 = vadd.f32 %v453, %v461
    %v466 = vsel %vm356, %v464, -inf
    %467 = vmax.xlane.f32.xlu0 %v466
    %v468 = vpop.xlane.xlu0 %467
    %v469 = vsel %vm356, %v465, -inf
    %470 = vmax.xlane.f32.xlu0 %v469
    %v471 = vpop.xlane.xlu0 %470
    %v472 = vsub.f32 %v464, %v468
    %v473 = vsub.f32 %v465, %v471
    %v474 = vmul.f32 %v472, 1.442695
    %v475 = vpow.pop %v474
    %v476 = vmul.f32 %v473, 1.442695
    %v477 = vpow.pop %v476
    %v478 = vsel %vm356, %v475, 0.0
    %479 = vadd.xlane.f32.xlu0 %v478
    %v480 = vpop.xlane.xlu0 %479
    %v481 = vsel %vm356, %v477, 0.0
    %482 = vadd.xlane.f32.xlu0 %v481
    %v483 = vpop.xlane.xlu0 %482
    %v484 = vrcp.pop %v480
    %v485 = vrcp.pop %v483
    %v486 = vmul.f32 %v475, %v484
    %v487 = vmul.f32 %v477, %v485
    %v488 = vpack.c.bf16 %v486, %v486
    %v489 = vpack.c.bf16 %v487, %v487
    %490 = vrot.lane.b32.xlu0 %v351, 64
    %v491 = vpop.permute.xlu0 %490
    %v493 = vsel %vm356, %v488, 0
    %vm495 = vcmask 1043456
    %v497 = vsel %vm495, %v491, 0
    %499 = vmatprep.subr.bf16.mxu0 0
    %500 = vmatpush1.bf16.msra.mxu0 0
    %501 = vmatprep.subr.bf16.mxu0 0
    %502 = vmatpush1.bf16.msra.mxu0 0
    %503 = vmatprep.subr.bf16.mxu0 0
    %504 = vmatpush1.bf16.msra.mxu0 0
    %505 = vmatprep.subr.bf16.mxu0 0
    %506 = vmatpush1.bf16.msra.mxu0 0
    %507 = vmatprep.subr.bf16.mxu0 0
    %508 = vmatpush1.bf16.msra.mxu0 0
    %509 = vmatprep.subr.bf16.mxu0 0
    %510 = vmatpush1.bf16.msra.mxu0 0
    %511 = vmatprep.subr.bf16.mxu0 0
    %512 = vmatpush1.bf16.msra.mxu0 0
    %513 = vmatprep.subr.bf16.mxu0 0
    %514 = vmatpush1.bf16.msra.mxu0 %v497
    %515 = vmatprep.subr.bf16.mxu0 0
    %516 = vmatpush2.bf16.msra.mxu0 0
    %517 = vmatprep.subr.bf16.mxu0 0
    %518 = vmatpush2.bf16.msra.mxu0 0
    %519 = vmatprep.subr.bf16.mxu0 0
    %520 = vmatpush2.bf16.msra.mxu0 0
    %521 = vmatprep.subr.bf16.mxu0 0
    %522 = vmatpush2.bf16.msra.mxu0 0
    %523 = vmatprep.subr.bf16.mxu0 0
    %524 = vmatpush2.bf16.msra.mxu0 0
    %525 = vmatprep.subr.bf16.mxu0 0
    %526 = vmatpush2.bf16.msra.mxu0 0
    %527 = vmatprep.subr.bf16.mxu0 0
    %528 = vmatpush2.bf16.msra.mxu0 0
    %529 = vmatprep.subr.bf16.mxu0 0
    %530 = vmatpush2.bf16.msra.mxu0 0
    %531 = vmatprep.mubr.bf16.mxu0 0
    %532 = vmatmul.mubr.bf16.gmra.mxu0 %v493
    %v533 = vpop.f32.mrf.mxu0
    %v534 = vadd.f32 0.0, %v533
    %v535 = vpop.f32.mrf.mxu0
    %v536 = vpop.f32.mrf.mxu0
    %v537 = vpop.f32.mrf.mxu0
    %538 = vdwg.mxu0
    %539 = vrot.lane.b32.xlu0 %v352, 64
    %v540 = vpop.permute.xlu0 %539
    %v542 = vsel %vm356, %v489, 0
    %v545 = vsel %vm495, %v540, 0
    %547 = vmatprep.subr.bf16.mxu0 0
    %548 = vmatpush1.bf16.msra.mxu0 0
    %549 = vmatprep.subr.bf16.mxu0 0
    %550 = vmatpush1.bf16.msra.mxu0 0
    %551 = vmatprep.subr.bf16.mxu0 0
    %552 = vmatpush1.bf16.msra.mxu0 0
    %553 = vmatprep.subr.bf16.mxu0 0
    %554 = vmatpush1.bf16.msra.mxu0 0
    %555 = vmatprep.subr.bf16.mxu0 0
    %556 = vmatpush1.bf16.msra.mxu0 0
    %557 = vmatprep.subr.bf16.mxu0 0
    %558 = vmatpush1.bf16.msra.mxu0 0
    %559 = vmatprep.subr.bf16.mxu0 0
    %560 = vmatpush1.bf16.msra.mxu0 0
    %561 = vmatprep.subr.bf16.mxu0 0
    %562 = vmatpush1.bf16.msra.mxu0 %v545
    %563 = vmatprep.subr.bf16.mxu0 0
    %564 = vmatpush2.bf16.msra.mxu0 0
    %565 = vmatprep.subr.bf16.mxu0 0
    %566 = vmatpush2.bf16.msra.mxu0 0
    %567 = vmatprep.subr.bf16.mxu0 0
    %568 = vmatpush2.bf16.msra.mxu0 0
    %569 = vmatprep.subr.bf16.mxu0 0
    %570 = vmatpush2.bf16.msra.mxu0 0
    %571 = vmatprep.subr.bf16.mxu0 0
    %572 = vmatpush2.bf16.msra.mxu0 0
    %573 = vmatprep.subr.bf16.mxu0 0
    %574 = vmatpush2.bf16.msra.mxu0 0
    %575 = vmatprep.subr.bf16.mxu0 0
    %576 = vmatpush2.bf16.msra.mxu0 0
    %577 = vmatprep.subr.bf16.mxu0 0
    %578 = vmatpush2.bf16.msra.mxu0 0
    %579 = vmatprep.mubr.bf16.mxu0 0
    %580 = vmatmul.mubr.bf16.gmra.mxu0 %v542
    %v581 = vpop.f32.mrf.mxu0
    %v582 = vadd.f32 0.0, %v581
    %v583 = vpop.f32.mrf.mxu0
    %v584 = vpop.f32.mrf.mxu0
    %v585 = vpop.f32.mrf.mxu0
    %586 = vdwg.mxu0
    %v587 = vpack.c.bf16 %v582, %v534
    %588 = vrot.lane.b32.xlu0 %v351, 120
    %v589 = vpop.permute.xlu0 %588
    %590 = vrot.lane.b32.xlu0 %v351, 88
    %v591 = vpop.permute.xlu0 %590
    %v593 = vsel %vm356, %v589, 0
    %v596 = vsel %vm356, %v591, 0
    %598 = vmatprep.subr.bf16.mxu0 0
    %599 = vmatpush1.bf16.xpose.msra.mxu0 0
    %600 = vmatprep.subr.bf16.mxu0 0
    %601 = vmatpush1.bf16.xpose.msra.mxu0 0
    %602 = vmatprep.subr.bf16.mxu0 0
    %603 = vmatpush1.bf16.xpose.msra.mxu0 0
    %604 = vmatprep.subr.bf16.mxu0 0
    %605 = vmatpush1.bf16.xpose.msra.mxu0 0
    %606 = vmatprep.subr.bf16.mxu0 0
    %607 = vmatpush1.bf16.xpose.msra.mxu0 0
    %608 = vmatprep.subr.bf16.mxu0 0
    %609 = vmatpush1.bf16.xpose.msra.mxu0 0
    %610 = vmatprep.subr.bf16.mxu0 0
    %611 = vmatpush1.bf16.xpose.msra.mxu0 0
    %612 = vmatprep.subr.bf16.mxu0 0
    %613 = vmatpush1.bf16.xpose.msra.mxu0 %v596
    %614 = vmatprep.subr.bf16.mxu0 0
    %615 = vmatpush2.bf16.xpose.msra.mxu0 0
    %616 = vmatprep.subr.bf16.mxu0 0
    %617 = vmatpush2.bf16.xpose.msra.mxu0 0
    %618 = vmatprep.subr.bf16.mxu0 0
    %619 = vmatpush2.bf16.xpose.msra.mxu0 0
    %620 = vmatprep.subr.bf16.mxu0 0
    %621 = vmatpush2.bf16.xpose.msra.mxu0 0
    %622 = vmatprep.subr.bf16.mxu0 0
    %623 = vmatpush2.bf16.xpose.msra.mxu0 0
    %624 = vmatprep.subr.bf16.mxu0 0
    %625 = vmatpush2.bf16.xpose.msra.mxu0 0
    %626 = vmatprep.subr.bf16.mxu0 0
    %627 = vmatpush2.bf16.xpose.msra.mxu0 0
    %628 = vmatprep.subr.bf16.mxu0 0
    %629 = vmatpush2.bf16.xpose.msra.mxu0 0
    %630 = vmatprep.mubr.bf16.mxu0 0
    %631 = vmatmul.mubr.bf16.gmra.mxu0 %v593
    %v632 = vpop.f32.mrf.mxu0
    %v633 = vadd.f32 0.0, %v632
    %v634 = vpop.f32.mrf.mxu0
    %v635 = vpop.f32.mrf.mxu0
    %v636 = vpop.f32.mrf.mxu0
    %637 = vdwg.mxu0
    %638 = vrot.lane.b32.xlu0 %v352, 120
    %v639 = vpop.permute.xlu0 %638
    %640 = vrot.lane.b32.xlu0 %v352, 88
    %v641 = vpop.permute.xlu0 %640
    %v643 = vsel %vm356, %v639, 0
    %v646 = vsel %vm356, %v641, 0
    %648 = vmatprep.subr.bf16.mxu0 0
    %649 = vmatpush1.bf16.xpose.msra.mxu0 0
    %650 = vmatprep.subr.bf16.mxu0 0
    %651 = vmatpush1.bf16.xpose.msra.mxu0 0
    %652 = vmatprep.subr.bf16.mxu0 0
    %653 = vmatpush1.bf16.xpose.msra.mxu0 0
    %654 = vmatprep.subr.bf16.mxu0 0
    %655 = vmatpush1.bf16.xpose.msra.mxu0 0
    %656 = vmatprep.subr.bf16.mxu0 0
    %657 = vmatpush1.bf16.xpose.msra.mxu0 0
    %658 = vmatprep.subr.bf16.mxu0 0
    %659 = vmatpush1.bf16.xpose.msra.mxu0 0
    %660 = vmatprep.subr.bf16.mxu0 0
    %661 = vmatpush1.bf16.xpose.msra.mxu0 0
    %662 = vmatprep.subr.bf16.mxu0 0
    %663 = vmatpush1.bf16.xpose.msra.mxu0 %v646
    %664 = vmatprep.subr.bf16.mxu0 0
    %665 = vmatpush2.bf16.xpose.msra.mxu0 0
    %666 = vmatprep.subr.bf16.mxu0 0
    %667 = vmatpush2.bf16.xpose.msra.mxu0 0
    %668 = vmatprep.subr.bf16.mxu0 0
    %669 = vmatpush2.bf16.xpose.msra.mxu0 0
    %670 = vmatprep.subr.bf16.mxu0 0
    %671 = vmatpush2.bf16.xpose.msra.mxu0 0
    %672 = vmatprep.subr.bf16.mxu0 0
    %673 = vmatpush2.bf16.xpose.msra.mxu0 0
    %674 = vmatprep.subr.bf16.mxu0 0
    %675 = vmatpush2.bf16.xpose.msra.mxu0 0
    %676 = vmatprep.subr.bf16.mxu0 0
    %677 = vmatpush2.bf16.xpose.msra.mxu0 0
    %678 = vmatprep.subr.bf16.mxu0 0
    %679 = vmatpush2.bf16.xpose.msra.mxu0 0
    %680 = vmatprep.mubr.bf16.mxu0 0
    %681 = vmatmul.mubr.bf16.gmra.mxu0 %v643
    %v682 = vpop.f32.mrf.mxu0
    %v683 = vadd.f32 0.0, %v682
    %v684 = vpop.f32.mrf.mxu0
    %v685 = vpop.f32.mrf.mxu0
    %v686 = vpop.f32.mrf.mxu0
    %687 = vdwg.mxu0
    %v688 = vmul.f32 %v633, 0.35355338
    %v689 = vmul.f32 %v683, 0.35355338
    %v690 = vadd.f32 %v688, %v457
    %v691 = vadd.f32 %v689, %v461
    %v692 = vsel %vm356, %v690, -inf
    %693 = vmax.xlane.f32.xlu0 %v692
    %v694 = vpop.xlane.xlu0 %693
    %v695 = vsel %vm356, %v691, -inf
    %696 = vmax.xlane.f32.xlu0 %v695
    %v697 = vpop.xlane.xlu0 %696
    %v698 = vsub.f32 %v690, %v694
    %v699 = vsub.f32 %v691, %v697
    %v700 = vmul.f32 %v698, 1.442695
    %v701 = vpow.pop %v700
    %v702 = vmul.f32 %v699, 1.442695
    %v703 = vpow.pop %v702
    %v704 = vsel %vm356, %v701, 0.0
    %705 = vadd.xlane.f32.xlu0 %v704
    %v706 = vpop.xlane.xlu0 %705
    %v707 = vsel %vm356, %v703, 0.0
    %708 = vadd.xlane.f32.xlu0 %v707
    %v709 = vpop.xlane.xlu0 %708
    %v710 = vrcp.pop %v706
    %v711 = vrcp.pop %v709
    %v712 = vmul.f32 %v701, %v710
    %v713 = vmul.f32 %v703, %v711
    %v714 = vpack.c.bf16 %v712, %v712
    %v715 = vpack.c.bf16 %v713, %v713
    %716 = vrot.lane.b32.xlu0 %v351, 56
    %v717 = vpop.permute.xlu0 %716
    %v719 = vsel %vm356, %v714, 0
    %v722 = vsel %vm495, %v717, 0
    %724 = vmatprep.subr.bf16.mxu0 0
    %725 = vmatpush1.bf16.msra.mxu0 0
    %726 = vmatprep.subr.bf16.mxu0 0
    %727 = vmatpush1.bf16.msra.mxu0 0
    %728 = vmatprep.subr.bf16.mxu0 0
    %729 = vmatpush1.bf16.msra.mxu0 0
    %730 = vmatprep.subr.bf16.mxu0 0
    %731 = vmatpush1.bf16.msra.mxu0 0
    %732 = vmatprep.subr.bf16.mxu0 0
    %733 = vmatpush1.bf16.msra.mxu0 0
    %734 = vmatprep.subr.bf16.mxu0 0
    %735 = vmatpush1.bf16.msra.mxu0 0
    %736 = vmatprep.subr.bf16.mxu0 0
    %737 = vmatpush1.bf16.msra.mxu0 0
    %738 = vmatprep.subr.bf16.mxu0 0
    %739 = vmatpush1.bf16.msra.mxu0 %v722
    %740 = vmatprep.subr.bf16.mxu0 0
    %741 = vmatpush2.bf16.msra.mxu0 0
    %742 = vmatprep.subr.bf16.mxu0 0
    %743 = vmatpush2.bf16.msra.mxu0 0
    %744 = vmatprep.subr.bf16.mxu0 0
    %745 = vmatpush2.bf16.msra.mxu0 0
    %746 = vmatprep.subr.bf16.mxu0 0
    %747 = vmatpush2.bf16.msra.mxu0 0
    %748 = vmatprep.subr.bf16.mxu0 0
    %749 = vmatpush2.bf16.msra.mxu0 0
    %750 = vmatprep.subr.bf16.mxu0 0
    %751 = vmatpush2.bf16.msra.mxu0 0
    %752 = vmatprep.subr.bf16.mxu0 0
    %753 = vmatpush2.bf16.msra.mxu0 0
    %754 = vmatprep.subr.bf16.mxu0 0
    %755 = vmatpush2.bf16.msra.mxu0 0
    %756 = vmatprep.mubr.bf16.mxu0 0
    %757 = vmatmul.mubr.bf16.gmra.mxu0 %v719
    %v758 = vpop.f32.mrf.mxu0
    %v759 = vadd.f32 0.0, %v758
    %v760 = vpop.f32.mrf.mxu0
    %v761 = vpop.f32.mrf.mxu0
    %v762 = vpop.f32.mrf.mxu0
    %763 = vdwg.mxu0
    %764 = vrot.lane.b32.xlu0 %v352, 56
    %v765 = vpop.permute.xlu0 %764
    %v767 = vsel %vm356, %v715, 0
    %v770 = vsel %vm495, %v765, 0
    %772 = vmatprep.subr.bf16.mxu0 0
    %773 = vmatpush1.bf16.msra.mxu0 0
    %774 = vmatprep.subr.bf16.mxu0 0
    %775 = vmatpush1.bf16.msra.mxu0 0
    %776 = vmatprep.subr.bf16.mxu0 0
    %777 = vmatpush1.bf16.msra.mxu0 0
    %778 = vmatprep.subr.bf16.mxu0 0
    %779 = vmatpush1.bf16.msra.mxu0 0
    %780 = vmatprep.subr.bf16.mxu0 0
    %781 = vmatpush1.bf16.msra.mxu0 0
    %782 = vmatprep.subr.bf16.mxu0 0
    %783 = vmatpush1.bf16.msra.mxu0 0
    %784 = vmatprep.subr.bf16.mxu0 0
    %785 = vmatpush1.bf16.msra.mxu0 0
    %786 = vmatprep.subr.bf16.mxu0 0
    %787 = vmatpush1.bf16.msra.mxu0 %v770
    %788 = vmatprep.subr.bf16.mxu0 0
    %789 = vmatpush2.bf16.msra.mxu0 0
    %790 = vmatprep.subr.bf16.mxu0 0
    %791 = vmatpush2.bf16.msra.mxu0 0
    %792 = vmatprep.subr.bf16.mxu0 0
    %793 = vmatpush2.bf16.msra.mxu0 0
    %794 = vmatprep.subr.bf16.mxu0 0
    %795 = vmatpush2.bf16.msra.mxu0 0
    %796 = vmatprep.subr.bf16.mxu0 0
    %797 = vmatpush2.bf16.msra.mxu0 0
    %798 = vmatprep.subr.bf16.mxu0 0
    %799 = vmatpush2.bf16.msra.mxu0 0
    %800 = vmatprep.subr.bf16.mxu0 0
    %801 = vmatpush2.bf16.msra.mxu0 0
    %802 = vmatprep.subr.bf16.mxu0 0
    %803 = vmatpush2.bf16.msra.mxu0 0
    %804 = vmatprep.mubr.bf16.mxu0 0
    %805 = vmatmul.mubr.bf16.gmra.mxu0 %v767
    %v806 = vpop.f32.mrf.mxu0
    %v807 = vadd.f32 0.0, %v806
    %v808 = vpop.f32.mrf.mxu0
    %v809 = vpop.f32.mrf.mxu0
    %v810 = vpop.f32.mrf.mxu0
    %811 = vdwg.mxu0
    %v812 = vpack.c.bf16 %v807, %v759
    %v814 = vsel %vm356, %v812, 0
    %v817 = vsel %vm495, %v348, 0
    %819 = vmatprep.subr.bf16.mxu0 0
    %820 = vmatpush1.bf16.msra.mxu0 0
    %821 = vmatprep.subr.bf16.mxu0 0
    %822 = vmatpush1.bf16.msra.mxu0 0
    %823 = vmatprep.subr.bf16.mxu0 0
    %824 = vmatpush1.bf16.msra.mxu0 0
    %825 = vmatprep.subr.bf16.mxu0 0
    %826 = vmatpush1.bf16.msra.mxu0 0
    %827 = vmatprep.subr.bf16.mxu0 0
    %828 = vmatpush1.bf16.msra.mxu0 0
    %829 = vmatprep.subr.bf16.mxu0 0
    %830 = vmatpush1.bf16.msra.mxu0 0
    %831 = vmatprep.subr.bf16.mxu0 0
    %832 = vmatpush1.bf16.msra.mxu0 0
    %833 = vmatprep.subr.bf16.mxu0 0
    %834 = vmatpush1.bf16.msra.mxu0 %v817
    %835 = vmatprep.subr.bf16.mxu0 0
    %836 = vmatpush2.bf16.msra.mxu0 0
    %837 = vmatprep.subr.bf16.mxu0 0
    %838 = vmatpush2.bf16.msra.mxu0 0
    %839 = vmatprep.subr.bf16.mxu0 0
    %840 = vmatpush2.bf16.msra.mxu0 0
    %841 = vmatprep.subr.bf16.mxu0 0
    %842 = vmatpush2.bf16.msra.mxu0 0
    %843 = vmatprep.subr.bf16.mxu0 0
    %844 = vmatpush2.bf16.msra.mxu0 0
    %845 = vmatprep.subr.bf16.mxu0 0
    %846 = vmatpush2.bf16.msra.mxu0 0
    %847 = vmatprep.subr.bf16.mxu0 0
    %848 = vmatpush2.bf16.msra.mxu0 0
    %849 = vmatprep.subr.bf16.mxu0 0
    %850 = vmatpush2.bf16.msra.mxu0 0
    %851 = vmatprep.mubr.bf16.mxu0 0
    %852 = vmatmul.mubr.bf16.gmra.mxu0 %v814
    %v853 = vpop.f32.mrf.mxu0
    %v854 = vadd.f32 0.0, %v853
    %v855 = vpop.f32.mrf.mxu0
    %v856 = vpop.f32.mrf.mxu0
    %v857 = vadd.f32 0.0, %v856
    %v858 = vpop.f32.mrf.mxu0
    %859 = vdwg.mxu0
    %v861 = vsel %vm356, %v587, 0
    %v864 = vsel %vm495, %v347, 0
    %866 = vmatprep.subr.bf16.mxu0 0
    %867 = vmatpush1.bf16.msra.mxu0 0
    %868 = vmatprep.subr.bf16.mxu0 0
    %869 = vmatpush1.bf16.msra.mxu0 0
    %870 = vmatprep.subr.bf16.mxu0 0
    %871 = vmatpush1.bf16.msra.mxu0 0
    %872 = vmatprep.subr.bf16.mxu0 0
    %873 = vmatpush1.bf16.msra.mxu0 0
    %874 = vmatprep.subr.bf16.mxu0 0
    %875 = vmatpush1.bf16.msra.mxu0 0
    %876 = vmatprep.subr.bf16.mxu0 0
    %877 = vmatpush1.bf16.msra.mxu0 0
    %878 = vmatprep.subr.bf16.mxu0 0
    %879 = vmatpush1.bf16.msra.mxu0 0
    %880 = vmatprep.subr.bf16.mxu0 0
    %881 = vmatpush1.bf16.msra.mxu0 %v864
    %882 = vmatprep.subr.bf16.mxu0 0
    %883 = vmatpush2.bf16.msra.mxu0 0
    %884 = vmatprep.subr.bf16.mxu0 0
    %885 = vmatpush2.bf16.msra.mxu0 0
    %886 = vmatprep.subr.bf16.mxu0 0
    %887 = vmatpush2.bf16.msra.mxu0 0
    %888 = vmatprep.subr.bf16.mxu0 0
    %889 = vmatpush2.bf16.msra.mxu0 0
    %890 = vmatprep.subr.bf16.mxu0 0
    %891 = vmatpush2.bf16.msra.mxu0 0
    %892 = vmatprep.subr.bf16.mxu0 0
    %893 = vmatpush2.bf16.msra.mxu0 0
    %894 = vmatprep.subr.bf16.mxu0 0
    %895 = vmatpush2.bf16.msra.mxu0 0
    %896 = vmatprep.subr.bf16.mxu0 0
    %897 = vmatpush2.bf16.msra.mxu0 0
    %898 = vmatprep.mubr.bf16.mxu0 0
    %899 = vmatmul.mubr.bf16.gmra.mxu0 %v861
    %v900 = vpop.f32.mrf.mxu0
    %v901 = vadd.f32 %v854, %v900
    %v902 = vpop.f32.mrf.mxu0
    %v903 = vpop.f32.mrf.mxu0
    %v904 = vadd.f32 %v857, %v903
    %v905 = vpop.f32.mrf.mxu0
    %906 = vdwg.mxu0
    %907 = vrot.lane.b32.xlu0 %v351, 112
    %v908 = vpop.permute.xlu0 %907
    %909 = vrot.lane.b32.xlu0 %v351, 80
    %v910 = vpop.permute.xlu0 %909
    %v912 = vsel %vm356, %v908, 0
    %v915 = vsel %vm356, %v910, 0
    %917 = vmatprep.subr.bf16.mxu0 0
    %918 = vmatpush1.bf16.xpose.msra.mxu0 0
    %919 = vmatprep.subr.bf16.mxu0 0
    %920 = vmatpush1.bf16.xpose.msra.mxu0 0
    %921 = vmatprep.subr.bf16.mxu0 0
    %922 = vmatpush1.bf16.xpose.msra.mxu0 0
    %923 = vmatprep.subr.bf16.mxu0 0
    %924 = vmatpush1.bf16.xpose.msra.mxu0 0
    %925 = vmatprep.subr.bf16.mxu0 0
    %926 = vmatpush1.bf16.xpose.msra.mxu0 0
    %927 = vmatprep.subr.bf16.mxu0 0
    %928 = vmatpush1.bf16.xpose.msra.mxu0 0
    %929 = vmatprep.subr.bf16.mxu0 0
    %930 = vmatpush1.bf16.xpose.msra.mxu0 0
    %931 = vmatprep.subr.bf16.mxu0 0
    %932 = vmatpush1.bf16.xpose.msra.mxu0 %v915
    %933 = vmatprep.subr.bf16.mxu0 0
    %934 = vmatpush2.bf16.xpose.msra.mxu0 0
    %935 = vmatprep.subr.bf16.mxu0 0
    %936 = vmatpush2.bf16.xpose.msra.mxu0 0
    %937 = vmatprep.subr.bf16.mxu0 0
    %938 = vmatpush2.bf16.xpose.msra.mxu0 0
    %939 = vmatprep.subr.bf16.mxu0 0
    %940 = vmatpush2.bf16.xpose.msra.mxu0 0
    %941 = vmatprep.subr.bf16.mxu0 0
    %942 = vmatpush2.bf16.xpose.msra.mxu0 0
    %943 = vmatprep.subr.bf16.mxu0 0
    %944 = vmatpush2.bf16.xpose.msra.mxu0 0
    %945 = vmatprep.subr.bf16.mxu0 0
    %946 = vmatpush2.bf16.xpose.msra.mxu0 0
    %947 = vmatprep.subr.bf16.mxu0 0
    %948 = vmatpush2.bf16.xpose.msra.mxu0 0
    %949 = vmatprep.mubr.bf16.mxu0 0
    %950 = vmatmul.mubr.bf16.gmra.mxu0 %v912
    %v951 = vpop.f32.mrf.mxu0
    %v952 = vadd.f32 0.0, %v951
    %v953 = vpop.f32.mrf.mxu0
    %v954 = vpop.f32.mrf.mxu0
    %v955 = vpop.f32.mrf.mxu0
    %956 = vdwg.mxu0
    %957 = vrot.lane.b32.xlu0 %v352, 112
    %v958 = vpop.permute.xlu0 %957
    %959 = vrot.lane.b32.xlu0 %v352, 80
    %v960 = vpop.permute.xlu0 %959
    %v962 = vsel %vm356, %v958, 0
    %v965 = vsel %vm356, %v960, 0
    %967 = vmatprep.subr.bf16.mxu0 0
    %968 = vmatpush1.bf16.xpose.msra.mxu0 0
    %969 = vmatprep.subr.bf16.mxu0 0
    %970 = vmatpush1.bf16.xpose.msra.mxu0 0
    %971 = vmatprep.subr.bf16.mxu0 0
    %972 = vmatpush1.bf16.xpose.msra.mxu0 0
    %973 = vmatprep.subr.bf16.mxu0 0
    %974 = vmatpush1.bf16.xpose.msra.mxu0 0
    %975 = vmatprep.subr.bf16.mxu0 0
    %976 = vmatpush1.bf16.xpose.msra.mxu0 0
    %977 = vmatprep.subr.bf16.mxu0 0
    %978 = vmatpush1.bf16.xpose.msra.mxu0 0
    %979 = vmatprep.subr.bf16.mxu0 0
    %980 = vmatpush1.bf16.xpose.msra.mxu0 0
    %981 = vmatprep.subr.bf16.mxu0 0
    %982 = vmatpush1.bf16.xpose.msra.mxu0 %v965
    %983 = vmatprep.subr.bf16.mxu0 0
    %984 = vmatpush2.bf16.xpose.msra.mxu0 0
    %985 = vmatprep.subr.bf16.mxu0 0
    %986 = vmatpush2.bf16.xpose.msra.mxu0 0
    %987 = vmatprep.subr.bf16.mxu0 0
    %988 = vmatpush2.bf16.xpose.msra.mxu0 0
    %989 = vmatprep.subr.bf16.mxu0 0
    %990 = vmatpush2.bf16.xpose.msra.mxu0 0
    %991 = vmatprep.subr.bf16.mxu0 0
    %992 = vmatpush2.bf16.xpose.msra.mxu0 0
    %993 = vmatprep.subr.bf16.mxu0 0
    %994 = vmatpush2.bf16.xpose.msra.mxu0 0
    %995 = vmatprep.subr.bf16.mxu0 0
    %996 = vmatpush2.bf16.xpose.msra.mxu0 0
    %997 = vmatprep.subr.bf16.mxu0 0
    %998 = vmatpush2.bf16.xpose.msra.mxu0 0
    %999 = vmatprep.mubr.bf16.mxu0 0
    %1000 = vmatmul.mubr.bf16.gmra.mxu0 %v962
    %v1001 = vpop.f32.mrf.mxu0
    %v1002 = vadd.f32 0.0, %v1001
    %v1003 = vpop.f32.mrf.mxu0
    %v1004 = vpop.f32.mrf.mxu0
    %v1005 = vpop.f32.mrf.mxu0
    %1006 = vdwg.mxu0
    %v1007 = vmul.f32 %v952, 0.35355338
    %v1008 = vmul.f32 %v1002, 0.35355338
    %v1009 = vadd.f32 %v1007, %v457
    %v1010 = vadd.f32 %v1008, %v461
    %v1011 = vsel %vm356, %v1009, -inf
    %1012 = vmax.xlane.f32.xlu0 %v1011
    %v1013 = vpop.xlane.xlu0 %1012
    %v1014 = vsel %vm356, %v1010, -inf
    %1015 = vmax.xlane.f32.xlu0 %v1014
    %v1016 = vpop.xlane.xlu0 %1015
    %v1017 = vsub.f32 %v1009, %v1013
    %v1018 = vsub.f32 %v1010, %v1016
    %v1019 = vmul.f32 %v1017, 1.442695
    %v1020 = vpow.pop %v1019
    %v1021 = vmul.f32 %v1018, 1.442695
    %v1022 = vpow.pop %v1021
    %v1023 = vsel %vm356, %v1020, 0.0
    %1024 = vadd.xlane.f32.xlu0 %v1023
    %v1025 = vpop.xlane.xlu0 %1024
    %v1026 = vsel %vm356, %v1022, 0.0
    %1027 = vadd.xlane.f32.xlu0 %v1026
    %v1028 = vpop.xlane.xlu0 %1027
    %v1029 = vrcp.pop %v1025
    %v1030 = vrcp.pop %v1028
    %v1031 = vmul.f32 %v1020, %v1029
    %v1032 = vmul.f32 %v1022, %v1030
    %v1033 = vpack.c.bf16 %v1031, %v1031
    %v1034 = vpack.c.bf16 %v1032, %v1032
    %1035 = vrot.lane.b32.xlu0 %v351, 48
    %v1036 = vpop.permute.xlu0 %1035
    %v1038 = vsel %vm356, %v1033, 0
    %v1041 = vsel %vm495, %v1036, 0
    %1043 = vmatprep.subr.bf16.mxu0 0
    %1044 = vmatpush1.bf16.msra.mxu0 0
    %1045 = vmatprep.subr.bf16.mxu0 0
    %1046 = vmatpush1.bf16.msra.mxu0 0
    %1047 = vmatprep.subr.bf16.mxu0 0
    %1048 = vmatpush1.bf16.msra.mxu0 0
    %1049 = vmatprep.subr.bf16.mxu0 0
    %1050 = vmatpush1.bf16.msra.mxu0 0
    %1051 = vmatprep.subr.bf16.mxu0 0
    %1052 = vmatpush1.bf16.msra.mxu0 0
    %1053 = vmatprep.subr.bf16.mxu0 0
    %1054 = vmatpush1.bf16.msra.mxu0 0
    %1055 = vmatprep.subr.bf16.mxu0 0
    %1056 = vmatpush1.bf16.msra.mxu0 0
    %1057 = vmatprep.subr.bf16.mxu0 0
    %1058 = vmatpush1.bf16.msra.mxu0 %v1041
    %1059 = vmatprep.subr.bf16.mxu0 0
    %1060 = vmatpush2.bf16.msra.mxu0 0
    %1061 = vmatprep.subr.bf16.mxu0 0
    %1062 = vmatpush2.bf16.msra.mxu0 0
    %1063 = vmatprep.subr.bf16.mxu0 0
    %1064 = vmatpush2.bf16.msra.mxu0 0
    %1065 = vmatprep.subr.bf16.mxu0 0
    %1066 = vmatpush2.bf16.msra.mxu0 0
    %1067 = vmatprep.subr.bf16.mxu0 0
    %1068 = vmatpush2.bf16.msra.mxu0 0
    %1069 = vmatprep.subr.bf16.mxu0 0
    %1070 = vmatpush2.bf16.msra.mxu0 0
    %1071 = vmatprep.subr.bf16.mxu0 0
    %1072 = vmatpush2.bf16.msra.mxu0 0
    %1073 = vmatprep.subr.bf16.mxu0 0
    %1074 = vmatpush2.bf16.msra.mxu0 0
    %1075 = vmatprep.mubr.bf16.mxu0 0
    %1076 = vmatmul.mubr.bf16.gmra.mxu0 %v1038
    %v1077 = vpop.f32.mrf.mxu0
    %v1078 = vadd.f32 0.0, %v1077
    %v1079 = vpop.f32.mrf.mxu0
    %v1080 = vpop.f32.mrf.mxu0
    %v1081 = vpop.f32.mrf.mxu0
    %1082 = vdwg.mxu0
    %1083 = vrot.lane.b32.xlu0 %v352, 48
    %v1084 = vpop.permute.xlu0 %1083
    %v1086 = vsel %vm356, %v1034, 0
    %v1089 = vsel %vm495, %v1084, 0
    %1091 = vmatprep.subr.bf16.mxu0 0
    %1092 = vmatpush1.bf16.msra.mxu0 0
    %1093 = vmatprep.subr.bf16.mxu0 0
    %1094 = vmatpush1.bf16.msra.mxu0 0
    %1095 = vmatprep.subr.bf16.mxu0 0
    %1096 = vmatpush1.bf16.msra.mxu0 0
    %1097 = vmatprep.subr.bf16.mxu0 0
    %1098 = vmatpush1.bf16.msra.mxu0 0
    %1099 = vmatprep.subr.bf16.mxu0 0
    %1100 = vmatpush1.bf16.msra.mxu0 0
    %1101 = vmatprep.subr.bf16.mxu0 0
    %1102 = vmatpush1.bf16.msra.mxu0 0
    %1103 = vmatprep.subr.bf16.mxu0 0
    %1104 = vmatpush1.bf16.msra.mxu0 0
    %1105 = vmatprep.subr.bf16.mxu0 0
    %1106 = vmatpush1.bf16.msra.mxu0 %v1089
    %1107 = vmatprep.subr.bf16.mxu0 0
    %1108 = vmatpush2.bf16.msra.mxu0 0
    %1109 = vmatprep.subr.bf16.mxu0 0
    %1110 = vmatpush2.bf16.msra.mxu0 0
    %1111 = vmatprep.subr.bf16.mxu0 0
    %1112 = vmatpush2.bf16.msra.mxu0 0
    %1113 = vmatprep.subr.bf16.mxu0 0
    %1114 = vmatpush2.bf16.msra.mxu0 0
    %1115 = vmatprep.subr.bf16.mxu0 0
    %1116 = vmatpush2.bf16.msra.mxu0 0
    %1117 = vmatprep.subr.bf16.mxu0 0
    %1118 = vmatpush2.bf16.msra.mxu0 0
    %1119 = vmatprep.subr.bf16.mxu0 0
    %1120 = vmatpush2.bf16.msra.mxu0 0
    %1121 = vmatprep.subr.bf16.mxu0 0
    %1122 = vmatpush2.bf16.msra.mxu0 0
    %1123 = vmatprep.mubr.bf16.mxu0 0
    %1124 = vmatmul.mubr.bf16.gmra.mxu0 %v1086
    %v1125 = vpop.f32.mrf.mxu0
    %v1126 = vadd.f32 0.0, %v1125
    %v1127 = vpop.f32.mrf.mxu0
    %v1128 = vpop.f32.mrf.mxu0
    %v1129 = vpop.f32.mrf.mxu0
    %1130 = vdwg.mxu0
    %v1131 = vpack.c.bf16 %v1126, %v1078
    %v1133 = vsel %vm356, %v1131, 0
    %v1136 = vsel %vm495, %v349, 0
    %1138 = vmatprep.subr.bf16.mxu0 0
    %1139 = vmatpush1.bf16.msra.mxu0 0
    %1140 = vmatprep.subr.bf16.mxu0 0
    %1141 = vmatpush1.bf16.msra.mxu0 0
    %1142 = vmatprep.subr.bf16.mxu0 0
    %1143 = vmatpush1.bf16.msra.mxu0 0
    %1144 = vmatprep.subr.bf16.mxu0 0
    %1145 = vmatpush1.bf16.msra.mxu0 0
    %1146 = vmatprep.subr.bf16.mxu0 0
    %1147 = vmatpush1.bf16.msra.mxu0 0
    %1148 = vmatprep.subr.bf16.mxu0 0
    %1149 = vmatpush1.bf16.msra.mxu0 0
    %1150 = vmatprep.subr.bf16.mxu0 0
    %1151 = vmatpush1.bf16.msra.mxu0 0
    %1152 = vmatprep.subr.bf16.mxu0 0
    %1153 = vmatpush1.bf16.msra.mxu0 %v1136
    %1154 = vmatprep.subr.bf16.mxu0 0
    %1155 = vmatpush2.bf16.msra.mxu0 0
    %1156 = vmatprep.subr.bf16.mxu0 0
    %1157 = vmatpush2.bf16.msra.mxu0 0
    %1158 = vmatprep.subr.bf16.mxu0 0
    %1159 = vmatpush2.bf16.msra.mxu0 0
    %1160 = vmatprep.subr.bf16.mxu0 0
    %1161 = vmatpush2.bf16.msra.mxu0 0
    %1162 = vmatprep.subr.bf16.mxu0 0
    %1163 = vmatpush2.bf16.msra.mxu0 0
    %1164 = vmatprep.subr.bf16.mxu0 0
    %1165 = vmatpush2.bf16.msra.mxu0 0
    %1166 = vmatprep.subr.bf16.mxu0 0
    %1167 = vmatpush2.bf16.msra.mxu0 0
    %1168 = vmatprep.subr.bf16.mxu0 0
    %1169 = vmatpush2.bf16.msra.mxu0 0
    %1170 = vmatprep.mubr.bf16.mxu0 0
    %1171 = vmatmul.mubr.bf16.gmra.mxu0 %v1133
    %v1172 = vpop.f32.mrf.mxu0
    %v1173 = vadd.f32 0.0, %v1172
    %v1174 = vpop.f32.mrf.mxu0
    %v1175 = vpop.f32.mrf.mxu0
    %v1176 = vadd.f32 0.0, %v1175
    %v1177 = vpop.f32.mrf.mxu0
    %1178 = vdwg.mxu0
    %v1179 = vadd.f32 %v901, %v1173
    %v1180 = vadd.f32 %v904, %v1176
    %1181 = vrot.lane.b32.xlu0 %v351, 104
    %v1182 = vpop.permute.xlu0 %1181
    %1183 = vrot.lane.b32.xlu0 %v351, 72
    %v1184 = vpop.permute.xlu0 %1183
    %v1186 = vsel %vm356, %v1182, 0
    %v1189 = vsel %vm356, %v1184, 0
    %1191 = vmatprep.subr.bf16.mxu0 0
    %1192 = vmatpush1.bf16.xpose.msra.mxu0 0
    %1193 = vmatprep.subr.bf16.mxu0 0
    %1194 = vmatpush1.bf16.xpose.msra.mxu0 0
    %1195 = vmatprep.subr.bf16.mxu0 0
    %1196 = vmatpush1.bf16.xpose.msra.mxu0 0
    %1197 = vmatprep.subr.bf16.mxu0 0
    %1198 = vmatpush1.bf16.xpose.msra.mxu0 0
    %1199 = vmatprep.subr.bf16.mxu0 0
    %1200 = vmatpush1.bf16.xpose.msra.mxu0 0
    %1201 = vmatprep.subr.bf16.mxu0 0
    %1202 = vmatpush1.bf16.xpose.msra.mxu0 0
    %1203 = vmatprep.subr.bf16.mxu0 0
    %1204 = vmatpush1.bf16.xpose.msra.mxu0 0
    %1205 = vmatprep.subr.bf16.mxu0 0
    %1206 = vmatpush1.bf16.xpose.msra.mxu0 %v1189
    %1207 = vmatprep.subr.bf16.mxu0 0
    %1208 = vmatpush2.bf16.xpose.msra.mxu0 0
    %1209 = vmatprep.subr.bf16.mxu0 0
    %1210 = vmatpush2.bf16.xpose.msra.mxu0 0
    %1211 = vmatprep.subr.bf16.mxu0 0
    %1212 = vmatpush2.bf16.xpose.msra.mxu0 0
    %1213 = vmatprep.subr.bf16.mxu0 0
    %1214 = vmatpush2.bf16.xpose.msra.mxu0 0
    %1215 = vmatprep.subr.bf16.mxu0 0
    %1216 = vmatpush2.bf16.xpose.msra.mxu0 0
    %1217 = vmatprep.subr.bf16.mxu0 0
    %1218 = vmatpush2.bf16.xpose.msra.mxu0 0
    %1219 = vmatprep.subr.bf16.mxu0 0
    %1220 = vmatpush2.bf16.xpose.msra.mxu0 0
    %1221 = vmatprep.subr.bf16.mxu0 0
    %1222 = vmatpush2.bf16.xpose.msra.mxu0 0
    %1223 = vmatprep.mubr.bf16.mxu0 0
    %1224 = vmatmul.mubr.bf16.gmra.mxu0 %v1186
    %v1225 = vpop.f32.mrf.mxu0
    %v1226 = vadd.f32 0.0, %v1225
    %v1227 = vpop.f32.mrf.mxu0
    %v1228 = vpop.f32.mrf.mxu0
    %v1229 = vpop.f32.mrf.mxu0
    %1230 = vdwg.mxu0
    %1231 = vrot.lane.b32.xlu0 %v352, 104
    %v1232 = vpop.permute.xlu0 %1231
    %1233 = vrot.lane.b32.xlu0 %v352, 72
    %v1234 = vpop.permute.xlu0 %1233
    %v1236 = vsel %vm356, %v1232, 0
    %v1239 = vsel %vm356, %v1234, 0
    %1241 = vmatprep.subr.bf16.mxu0 0
    %1242 = vmatpush1.bf16.xpose.msra.mxu0 0
    %1243 = vmatprep.subr.bf16.mxu0 0
    %1244 = vmatpush1.bf16.xpose.msra.mxu0 0
    %1245 = vmatprep.subr.bf16.mxu0 0
    %1246 = vmatpush1.bf16.xpose.msra.mxu0 0
    %1247 = vmatprep.subr.bf16.mxu0 0
    %1248 = vmatpush1.bf16.xpose.msra.mxu0 0
    %1249 = vmatprep.subr.bf16.mxu0 0
    %1250 = vmatpush1.bf16.xpose.msra.mxu0 0
    %1251 = vmatprep.subr.bf16.mxu0 0
    %1252 = vmatpush1.bf16.xpose.msra.mxu0 0
    %1253 = vmatprep.subr.bf16.mxu0 0
    %1254 = vmatpush1.bf16.xpose.msra.mxu0 0
    %1255 = vmatprep.subr.bf16.mxu0 0
    %1256 = vmatpush1.bf16.xpose.msra.mxu0 %v1239
    %1257 = vmatprep.subr.bf16.mxu0 0
    %1258 = vmatpush2.bf16.xpose.msra.mxu0 0
    %1259 = vmatprep.subr.bf16.mxu0 0
    %1260 = vmatpush2.bf16.xpose.msra.mxu0 0
    %1261 = vmatprep.subr.bf16.mxu0 0
    %1262 = vmatpush2.bf16.xpose.msra.mxu0 0
    %1263 = vmatprep.subr.bf16.mxu0 0
    %1264 = vmatpush2.bf16.xpose.msra.mxu0 0
    %1265 = vmatprep.subr.bf16.mxu0 0
    %1266 = vmatpush2.bf16.xpose.msra.mxu0 0
    %1267 = vmatprep.subr.bf16.mxu0 0
    %1268 = vmatpush2.bf16.xpose.msra.mxu0 0
    %1269 = vmatprep.subr.bf16.mxu0 0
    %1270 = vmatpush2.bf16.xpose.msra.mxu0 0
    %1271 = vmatprep.subr.bf16.mxu0 0
    %1272 = vmatpush2.bf16.xpose.msra.mxu0 0
    %1273 = vmatprep.mubr.bf16.mxu0 0
    %1274 = vmatmul.mubr.bf16.gmra.mxu0 %v1236
    %v1275 = vpop.f32.mrf.mxu0
    %v1276 = vadd.f32 0.0, %v1275
    %v1277 = vpop.f32.mrf.mxu0
    %v1278 = vpop.f32.mrf.mxu0
    %v1279 = vpop.f32.mrf.mxu0
    %1280 = vdwg.mxu0
    %v1281 = vmul.f32 %v1226, 0.35355338
    %v1282 = vmul.f32 %v1276, 0.35355338
    %v1283 = vadd.f32 %v1281, %v457
    %v1284 = vadd.f32 %v1282, %v461
    %v1285 = vsel %vm356, %v1283, -inf
    %1286 = vmax.xlane.f32.xlu0 %v1285
    %v1287 = vpop.xlane.xlu0 %1286
    %v1288 = vsel %vm356, %v1284, -inf
    %1289 = vmax.xlane.f32.xlu0 %v1288
    %v1290 = vpop.xlane.xlu0 %1289
    %v1291 = vsub.f32 %v1283, %v1287
    %v1292 = vsub.f32 %v1284, %v1290
    %v1293 = vmul.f32 %v1291, 1.442695
    %v1294 = vpow.pop %v1293
    %v1295 = vmul.f32 %v1292, 1.442695
    %v1296 = vpow.pop %v1295
    %v1297 = vsel %vm356, %v1294, 0.0
    %1298 = vadd.xlane.f32.xlu0 %v1297
    %v1299 = vpop.xlane.xlu0 %1298
    %v1300 = vsel %vm356, %v1296, 0.0
    %1301 = vadd.xlane.f32.xlu0 %v1300
    %v1302 = vpop.xlane.xlu0 %1301
    %v1303 = vrcp.pop %v1299
    %v1304 = vrcp.pop %v1302
    %v1305 = vmul.f32 %v1294, %v1303
    %v1306 = vmul.f32 %v1296, %v1304
    %v1307 = vpack.c.bf16 %v1305, %v1305
    %v1308 = vpack.c.bf16 %v1306, %v1306
    %1309 = vrot.lane.b32.xlu0 %v351, 40
    %v1310 = vpop.permute.xlu0 %1309
    %v1312 = vsel %vm356, %v1307, 0
    %v1315 = vsel %vm495, %v1310, 0
    %1317 = vmatprep.subr.bf16.mxu0 0
    %1318 = vmatpush1.bf16.msra.mxu0 0
    %1319 = vmatprep.subr.bf16.mxu0 0
    %1320 = vmatpush1.bf16.msra.mxu0 0
    %1321 = vmatprep.subr.bf16.mxu0 0
    %1322 = vmatpush1.bf16.msra.mxu0 0
    %1323 = vmatprep.subr.bf16.mxu0 0
    %1324 = vmatpush1.bf16.msra.mxu0 0
    %1325 = vmatprep.subr.bf16.mxu0 0
    %1326 = vmatpush1.bf16.msra.mxu0 0
    %1327 = vmatprep.subr.bf16.mxu0 0
    %1328 = vmatpush1.bf16.msra.mxu0 0
    %1329 = vmatprep.subr.bf16.mxu0 0
    %1330 = vmatpush1.bf16.msra.mxu0 0
    %1331 = vmatprep.subr.bf16.mxu0 0
    %1332 = vmatpush1.bf16.msra.mxu0 %v1315
    %1333 = vmatprep.subr.bf16.mxu0 0
    %1334 = vmatpush2.bf16.msra.mxu0 0
    %1335 = vmatprep.subr.bf16.mxu0 0
    %1336 = vmatpush2.bf16.msra.mxu0 0
    %1337 = vmatprep.subr.bf16.mxu0 0
    %1338 = vmatpush2.bf16.msra.mxu0 0
    %1339 = vmatprep.subr.bf16.mxu0 0
    %1340 = vmatpush2.bf16.msra.mxu0 0
    %1341 = vmatprep.subr.bf16.mxu0 0
    %1342 = vmatpush2.bf16.msra.mxu0 0
    %1343 = vmatprep.subr.bf16.mxu0 0
    %1344 = vmatpush2.bf16.msra.mxu0 0
    %1345 = vmatprep.subr.bf16.mxu0 0
    %1346 = vmatpush2.bf16.msra.mxu0 0
    %1347 = vmatprep.subr.bf16.mxu0 0
    %1348 = vmatpush2.bf16.msra.mxu0 0
    %1349 = vmatprep.mubr.bf16.mxu0 0
    %1350 = vmatmul.mubr.bf16.gmra.mxu0 %v1312
    %v1351 = vpop.f32.mrf.mxu0
    %v1352 = vadd.f32 0.0, %v1351
    %v1353 = vpop.f32.mrf.mxu0
    %v1354 = vpop.f32.mrf.mxu0
    %v1355 = vpop.f32.mrf.mxu0
    %1356 = vdwg.mxu0
    %1357 = vrot.lane.b32.xlu0 %v352, 40
    %v1358 = vpop.permute.xlu0 %1357
    %v1360 = vsel %vm356, %v1308, 0
    %v1363 = vsel %vm495, %v1358, 0
    %1365 = vmatprep.subr.bf16.mxu0 0
    %1366 = vmatpush1.bf16.msra.mxu0 0
    %1367 = vmatprep.subr.bf16.mxu0 0
    %1368 = vmatpush1.bf16.msra.mxu0 0
    %1369 = vmatprep.subr.bf16.mxu0 0
    %1370 = vmatpush1.bf16.msra.mxu0 0
    %1371 = vmatprep.subr.bf16.mxu0 0
    %1372 = vmatpush1.bf16.msra.mxu0 0
    %1373 = vmatprep.subr.bf16.mxu0 0
    %1374 = vmatpush1.bf16.msra.mxu0 0
    %1375 = vmatprep.subr.bf16.mxu0 0
    %1376 = vmatpush1.bf16.msra.mxu0 0
    %1377 = vmatprep.subr.bf16.mxu0 0
    %1378 = vmatpush1.bf16.msra.mxu0 0
    %1379 = vmatprep.subr.bf16.mxu0 0
    %1380 = vmatpush1.bf16.msra.mxu0 %v1363
    %1381 = vmatprep.subr.bf16.mxu0 0
    %1382 = vmatpush2.bf16.msra.mxu0 0
    %1383 = vmatprep.subr.bf16.mxu0 0
    %1384 = vmatpush2.bf16.msra.mxu0 0
    %1385 = vmatprep.subr.bf16.mxu0 0
    %1386 = vmatpush2.bf16.msra.mxu0 0
    %1387 = vmatprep.subr.bf16.mxu0 0
    %1388 = vmatpush2.bf16.msra.mxu0 0
    %1389 = vmatprep.subr.bf16.mxu0 0
    %1390 = vmatpush2.bf16.msra.mxu0 0
    %1391 = vmatprep.subr.bf16.mxu0 0
    %1392 = vmatpush2.bf16.msra.mxu0 0
    %1393 = vmatprep.subr.bf16.mxu0 0
    %1394 = vmatpush2.bf16.msra.mxu0 0
    %1395 = vmatprep.subr.bf16.mxu0 0
    %1396 = vmatpush2.bf16.msra.mxu0 0
    %1397 = vmatprep.mubr.bf16.mxu0 0
    %1398 = vmatmul.mubr.bf16.gmra.mxu0 %v1360
    %v1399 = vpop.f32.mrf.mxu0
    %v1400 = vadd.f32 0.0, %v1399
    %v1401 = vpop.f32.mrf.mxu0
    %v1402 = vpop.f32.mrf.mxu0
    %v1403 = vpop.f32.mrf.mxu0
    %1404 = vdwg.mxu0
    %v1405 = vpack.c.bf16 %v1400, %v1352
    %v1407 = vsel %vm356, %v1405, 0
    %v1410 = vsel %vm495, %v350, 0
    %1412 = vmatprep.subr.bf16.mxu0 0
    %1413 = vmatpush1.bf16.msra.mxu0 0
    %1414 = vmatprep.subr.bf16.mxu0 0
    %1415 = vmatpush1.bf16.msra.mxu0 0
    %1416 = vmatprep.subr.bf16.mxu0 0
    %1417 = vmatpush1.bf16.msra.mxu0 0
    %1418 = vmatprep.subr.bf16.mxu0 0
    %1419 = vmatpush1.bf16.msra.mxu0 0
    %1420 = vmatprep.subr.bf16.mxu0 0
    %1421 = vmatpush1.bf16.msra.mxu0 0
    %1422 = vmatprep.subr.bf16.mxu0 0
    %1423 = vmatpush1.bf16.msra.mxu0 0
    %1424 = vmatprep.subr.bf16.mxu0 0
    %1425 = vmatpush1.bf16.msra.mxu0 0
    %1426 = vmatprep.subr.bf16.mxu0 0
    %1427 = vmatpush1.bf16.msra.mxu0 %v1410
    %1428 = vmatprep.subr.bf16.mxu0 0
    %1429 = vmatpush2.bf16.msra.mxu0 0
    %1430 = vmatprep.subr.bf16.mxu0 0
    %1431 = vmatpush2.bf16.msra.mxu0 0
    %1432 = vmatprep.subr.bf16.mxu0 0
    %1433 = vmatpush2.bf16.msra.mxu0 0
    %1434 = vmatprep.subr.bf16.mxu0 0
    %1435 = vmatpush2.bf16.msra.mxu0 0
    %1436 = vmatprep.subr.bf16.mxu0 0
    %1437 = vmatpush2.bf16.msra.mxu0 0
    %1438 = vmatprep.subr.bf16.mxu0 0
    %1439 = vmatpush2.bf16.msra.mxu0 0
    %1440 = vmatprep.subr.bf16.mxu0 0
    %1441 = vmatpush2.bf16.msra.mxu0 0
    %1442 = vmatprep.subr.bf16.mxu0 0
    %1443 = vmatpush2.bf16.msra.mxu0 0
    %1444 = vmatprep.mubr.bf16.mxu0 0
    %1445 = vmatmul.mubr.bf16.gmra.mxu0 %v1407
    %v1446 = vpop.f32.mrf.mxu0
    %v1447 = vadd.f32 0.0, %v1446
    %v1448 = vpop.f32.mrf.mxu0
    %v1449 = vpop.f32.mrf.mxu0
    %v1450 = vadd.f32 0.0, %v1449
    %v1451 = vpop.f32.mrf.mxu0
    %1452 = vdwg.mxu0
    %v1453 = vadd.f32 %v1179, %v1447
    %v1454 = vadd.f32 %v1180, %v1450
    %v1455 = vld [vmem:[#allocation8] sm:$0x1]
    %v1457 = vlaneseq
    %v1458 = vshrl.u32 %v1457, 7
    %v1459 = vsub.s32 0, %v1458
    %v1460 = vrot.slane %v1455, %v1459
    %v1462 = vadd.f32 %v1453, %v1460
    %v1463 = vadd.f32 %v1454, %v1460
    %v1464 = vadd.f32 %v1462, %v251
    %v1465 = vadd.f32 %v1463, %v252
    %v1466 = vld [vmem:[#allocation10] sm:$0x1]
    %v1467 = vld [vmem:[#allocation11] sm:$0x1]
    %v1468 = vsel %vm209, %v1464, 0.0
    %1469 = vadd.xlane.f32.xlu0 %v1468
    %v1470 = vpop.xlane.xlu0 %1469
    %v1471 = vsel %vm209, %v1465, 0.0
    %1472 = vadd.xlane.f32.xlu0 %v1471
    %v1473 = vpop.xlane.xlu0 %1472
    %v1474 = vmul.f32 %v1470, %v216
    %v1475 = vmul.f32 %v1473, %v216
    %v1476 = vsub.f32 %v1464, %v1474
    %v1477 = vsub.f32 %v1465, %v1475
    %v1478 = vmul.f32 %v1476, %v1476
    %v1479 = vmul.f32 %v1477, %v1477
    %v1480 = vsel %vm209, %v1478, 0.0
    %1481 = vadd.xlane.f32.xlu0 %v1480
    %v1482 = vpop.xlane.xlu0 %1481
    %v1483 = vsel %vm209, %v1479, 0.0
    %1484 = vadd.xlane.f32.xlu0 %v1483
    %v1485 = vpop.xlane.xlu0 %1484
    %v1486 = vmul.f32 %v1482, %v216
    %v1487 = vmul.f32 %v1485, %v216
    %v1488 = vadd.f32 %v1486, 1e-12
    %v1489 = vadd.f32 %v1487, 1e-12
    %v1490 = vrsqrt.pop %v1488
    %v1491 = vrsqrt.pop %v1489
    %v1492 = vmul.f32 %v1476, %v1490
    %v1493 = vmul.f32 %v1477, %v1491
    %v1495 = vlaneseq
    %v1496 = vshrl.u32 %v1495, 7
    %v1497 = vsub.s32 0, %v1496
    %v1498 = vrot.slane %v1466, %v1497
    %v1500 = vmul.f32 %v1492, %v1498
    %v1501 = vmul.f32 %v1493, %v1498
    %v1503 = vlaneseq
    %v1504 = vshrl.u32 %v1503, 7
    %v1505 = vsub.s32 0, %v1504
    %v1506 = vrot.slane %v1467, %v1505
    %v1508 = vadd.f32 %v1500, %v1506
    %v1509 = vadd.f32 %v1501, %v1506
    %v1510 = vpack.c.bf16 %v1509, %v1508
    %v1511 = vld [vmem:[%s10] sm:$0xf]
    %v1512 = vld [vmem:[%s10 + $0x4] sm:$0xf]
    %v1513 = vld [vmem:[%s10 + $0x8] sm:$0xf]
    %v1514 = vld [vmem:[%s10 + $0xc] sm:$0xf]
    %v1515 = vld [vmem:[#allocation13] sm:$0x1]
    %v1517 = vlaneseq
    %v1518 = vshrl.u32 %v1517, 7
    %v1519 = vsub.s32 0, %v1518
    %v1520 = vrot.slane %v1515, %v1519
    %v1526 = vunpack.c.l.b16 %v1511
    %v1527 = vunpack.c.l.b16 %v1512
    %v1528 = vunpack.c.l.b16 %v1513
    %v1529 = vunpack.c.l.b16 %v1514
    %v1530 = vpack.c.b16 %v1527, %v1526
    %v1531 = vpack.c.b16 %v1529, %v1528
    %v1535 = vsel %vm209, %v1510, 0
    %1537 = vmatprep.subr.bf16.mxu0 0
    %1538 = vmatpush1.bf16.msra.mxu0 0
    %1539 = vmatprep.subr.bf16.mxu0 0
    %1540 = vmatpush1.bf16.msra.mxu0 0
    %1541 = vmatprep.subr.bf16.mxu0 0
    %1542 = vmatpush1.bf16.msra.mxu0 0
    %1543 = vmatprep.subr.bf16.mxu0 0
    %1544 = vmatpush1.bf16.msra.mxu0 0
    %1545 = vmatprep.subr.bf16.mxu0 0
    %1546 = vmatpush1.bf16.msra.mxu0 0
    %1547 = vmatprep.subr.bf16.mxu0 0
    %1548 = vmatpush1.bf16.msra.mxu0 0
    %1549 = vmatprep.subr.bf16.mxu0 0
    %1550 = vmatpush1.bf16.msra.mxu0 %v1531
    %1551 = vmatprep.subr.bf16.mxu0 0
    %1552 = vmatpush1.bf16.msra.mxu0 %v1530
    %1553 = vmatprep.subr.bf16.mxu0 0
    %1554 = vmatpush2.bf16.msra.mxu0 0
    %1555 = vmatprep.subr.bf16.mxu0 0
    %1556 = vmatpush2.bf16.msra.mxu0 0
    %1557 = vmatprep.subr.bf16.mxu0 0
    %1558 = vmatpush2.bf16.msra.mxu0 0
    %1559 = vmatprep.subr.bf16.mxu0 0
    %1560 = vmatpush2.bf16.msra.mxu0 0
    %1561 = vmatprep.subr.bf16.mxu0 0
    %1562 = vmatpush2.bf16.msra.mxu0 0
    %1563 = vmatprep.subr.bf16.mxu0 0
    %1564 = vmatpush2.bf16.msra.mxu0 0
    %1565 = vmatprep.subr.bf16.mxu0 0
    %1566 = vmatpush2.bf16.msra.mxu0 0
    %1567 = vmatprep.subr.bf16.mxu0 0
    %1568 = vmatpush2.bf16.msra.mxu0 0
    %1569 = vmatprep.mubr.bf16.mxu0 0
    %1570 = vmatmul.mubr.bf16.gmra.mxu0 %v1535
    %v1571 = vpop.f32.mrf.mxu0
    %v1572 = vadd.f32 %v1520, %v1571
    %v1573 = vpop.f32.mrf.mxu0
    %v1574 = vpop.f32.mrf.mxu0
    %v1575 = vadd.f32 %v1520, %v1574
    %v1576 = vpop.f32.mrf.mxu0
    %1577 = vdwg.mxu0
    %v1578 = vmul.f32 %v1572, %v1572
    %v1579 = vmul.f32 %v1575, %v1575
    %v1580 = vmul.f32 %v1572, %v1578
    %v1581 = vmul.f32 %v1575, %v1579
    %v1582 = vmul.f32 %v1580, 0.044715
    %v1583 = vmul.f32 %v1581, 0.044715
    %v1584 = vadd.f32 %v1572, %v1582
    %v1585 = vadd.f32 %v1575, %v1583
    %v1586 = vmul.f32 %v1584, 0.7978846
    %v1587 = vmul.f32 %v1585, 0.7978846
    %v1588 = vtanh.pop %v1586
    %v1589 = vtanh.pop %v1587
    %v1590 = vadd.f32 %v1588, 1.0
    %v1591 = vadd.f32 %v1589, 1.0
    %v1592 = vmul.f32 %v1590, 0.5
    %v1593 = vmul.f32 %v1591, 0.5
    %v1594 = vmul.f32 %v1572, %v1592
    %v1595 = vmul.f32 %v1575, %v1593
    %v1596 = vpack.c.bf16 %v1595, %v1594
    %v1597 = vld [vmem:[%s12] sm:$0xf]
    %v1598 = vld [vmem:[%s12 + $0x4] sm:$0xf]
    %v1599 = vld [vmem:[%s12 + $0x8] sm:$0xf]
    %v1600 = vld [vmem:[%s12 + $0xc] sm:$0xf]
    %v1601 = vld [vmem:[%s12 + $0x10] sm:$0xf]
    %v1602 = vld [vmem:[%s12 + $0x14] sm:$0xf]
    %v1603 = vld [vmem:[%s12 + $0x18] sm:$0xf]
    %v1604 = vld [vmem:[%s12 + $0x1c] sm:$0xf]
    %v1605 = vld [vmem:[#allocation14] sm:$0x1]
    %v1607 = vlaneseq
    %v1608 = vshrl.u32 %v1607, 7
    %v1609 = vsub.s32 0, %v1608
    %v1610 = vrot.slane %v1605, %v1609
    %v1620 = vunpack.c.l.b16 %v1597
    %v1621 = vunpack.c.l.b16 %v1598
    %v1622 = vunpack.c.l.b16 %v1599
    %v1623 = vunpack.c.l.b16 %v1600
    %v1624 = vunpack.c.l.b16 %v1601
    %v1625 = vunpack.c.l.b16 %v1602
    %v1626 = vunpack.c.l.b16 %v1603
    %v1627 = vunpack.c.l.b16 %v1604
    %v1628 = vpack.c.b16 %v1621, %v1620
    %v1629 = vpack.c.b16 %v1623, %v1622
    %v1630 = vpack.c.b16 %v1625, %v1624
    %v1631 = vpack.c.b16 %v1627, %v1626
    %vm1636 = vcmask 523264
    %v1638 = vsel %vm1636, %v1596, 0
    %1640 = vmatprep.subr.bf16.mxu0 0
    %1641 = vmatpush1.bf16.msra.mxu0 0
    %1642 = vmatprep.subr.bf16.mxu0 0
    %1643 = vmatpush1.bf16.msra.mxu0 0
    %1644 = vmatprep.subr.bf16.mxu0 0
    %1645 = vmatpush1.bf16.msra.mxu0 0
    %1646 = vmatprep.subr.bf16.mxu0 0
    %1647 = vmatpush1.bf16.msra.mxu0 0
    %1648 = vmatprep.subr.bf16.mxu0 0
    %1649 = vmatpush1.bf16.msra.mxu0 %v1631
    %1650 = vmatprep.subr.bf16.mxu0 0
    %1651 = vmatpush1.bf16.msra.mxu0 %v1630
    %1652 = vmatprep.subr.bf16.mxu0 0
    %1653 = vmatpush1.bf16.msra.mxu0 %v1629
    %1654 = vmatprep.subr.bf16.mxu0 0
    %1655 = vmatpush1.bf16.msra.mxu0 %v1628
    %1656 = vmatprep.subr.bf16.mxu0 0
    %1657 = vmatpush2.bf16.msra.mxu0 0
    %1658 = vmatprep.subr.bf16.mxu0 0
    %1659 = vmatpush2.bf16.msra.mxu0 0
    %1660 = vmatprep.subr.bf16.mxu0 0
    %1661 = vmatpush2.bf16.msra.mxu0 0
    %1662 = vmatprep.subr.bf16.mxu0 0
    %1663 = vmatpush2.bf16.msra.mxu0 0
    %1664 = vmatprep.subr.bf16.mxu0 0
    %1665 = vmatpush2.bf16.msra.mxu0 0
    %1666 = vmatprep.subr.bf16.mxu0 0
    %1667 = vmatpush2.bf16.msra.mxu0 0
    %1668 = vmatprep.subr.bf16.mxu0 0
    %1669 = vmatpush2.bf16.msra.mxu0 0
    %1670 = vmatprep.subr.bf16.mxu0 0
    %1671 = vmatpush2.bf16.msra.mxu0 0
    %1672 = vmatprep.mubr.bf16.mxu0 0
    %1673 = vmatmul.mubr.bf16.gmra.mxu0 %v1638
    %v1674 = vpop.f32.mrf.mxu0
    %v1675 = vadd.f32 %v1610, %v1674
    %v1676 = vpop.f32.mrf.mxu0
    %v1677 = vpop.f32.mrf.mxu0
    %v1678 = vadd.f32 %v1610, %v1677
    %v1679 = vpop.f32.mrf.mxu0
    %1680 = vdwg.mxu0
    %v1681 = vadd.f32 %v1675, %v1508
    %v1682 = vadd.f32 %v1678, %v1509
    %v1683 = vld [vmem:[#allocation16] sm:$0x1]
    %v1684 = vld [vmem:[%s15] sm:$0x1]
    %v1685 = vsel %vm209, %v1681, 0.0
    %1686 = vadd.xlane.f32.xlu0 %v1685
    %v1687 = vpop.xlane.xlu0 %1686
    %v1688 = vsel %vm209, %v1682, 0.0
    %1689 = vadd.xlane.f32.xlu0 %v1688
    %v1690 = vpop.xlane.xlu0 %1689
    %v1691 = vmul.f32 %v1687, %v216
    %v1692 = vmul.f32 %v1690, %v216
    %v1693 = vsub.f32 %v1681, %v1691
    %v1694 = vsub.f32 %v1682, %v1692
    %v1695 = vmul.f32 %v1693, %v1693
    %v1696 = vmul.f32 %v1694, %v1694
    %v1697 = vsel %vm209, %v1695, 0.0
    %1698 = vadd.xlane.f32.xlu0 %v1697
    %v1699 = vpop.xlane.xlu0 %1698
    %v1700 = vsel %vm209, %v1696, 0.0
    %1701 = vadd.xlane.f32.xlu0 %v1700
    %v1702 = vpop.xlane.xlu0 %1701
    %v1703 = vmul.f32 %v1699, %v216
    %v1704 = vmul.f32 %v1702, %v216
    %v1705 = vadd.f32 %v1703, 1e-12
    %v1706 = vadd.f32 %v1704, 1e-12
    %v1707 = vrsqrt.pop %v1705
    %v1708 = vrsqrt.pop %v1706
    %v1709 = vmul.f32 %v1693, %v1707
    %v1710 = vmul.f32 %v1694, %v1708
    %v1712 = vlaneseq
    %v1713 = vshrl.u32 %v1712, 7
    %v1714 = vsub.s32 0, %v1713
    %v1715 = vrot.slane %v1683, %v1714
    %v1717 = vmul.f32 %v1709, %v1715
    %v1718 = vmul.f32 %v1710, %v1715
    %v1720 = vlaneseq
    %v1721 = vshrl.u32 %v1720, 7
    %v1722 = vsub.s32 0, %v1721
    %v1723 = vrot.slane %v1684, %v1722
    %v1725 = vadd.f32 %v1717, %v1723
    %v1726 = vadd.f32 %v1718, %v1723
    %v1727 = vpack.c.bf16 %v1726, %v1725
    %s1728 = scalar_lea.vmem %s4, 16
    %v1729 = vld [vmem:[%s1728] sm:$0xf]
    %v1730 = vld [vmem:[%s1728 + $0x4] sm:$0xf]
    %v1731 = vld [vmem:[%s1728 + $0x8] sm:$0xf]
    %v1732 = vld [vmem:[%s1728 + $0xc] sm:$0xf]
    %s1733 = scalar_lea.vmem [#allocation7], 1
    %v1734 = vld [vmem:[%s1733] sm:$0x1]
    %v1736 = vlaneseq
    %v1737 = vshrl.u32 %v1736, 7
    %v1738 = vsub.s32 0, %v1737
    %v1739 = vrot.slane %v1734, %v1738
    %v1745 = vunpack.c.l.b16 %v1729
    %v1746 = vunpack.c.l.b16 %v1730
    %v1747 = vunpack.c.l.b16 %v1731
    %v1748 = vunpack.c.l.b16 %v1732
    %v1749 = vpack.c.b16 %v1746, %v1745
    %v1750 = vpack.c.b16 %v1748, %v1747
    %v1754 = vsel %vm209, %v1727, 0
    %1756 = vmatprep.subr.bf16.mxu0 0
    %1757 = vmatpush1.bf16.msra.mxu0 0
    %1758 = vmatprep.subr.bf16.mxu0 0
    %1759 = vmatpush1.bf16.msra.mxu0 0
    %1760 = vmatprep.subr.bf16.mxu0 0
    %1761 = vmatpush1.bf16.msra.mxu0 0
    %1762 = vmatprep.subr.bf16.mxu0 0
    %1763 = vmatpush1.bf16.msra.mxu0 0
    %1764 = vmatprep.subr.bf16.mxu0 0
    %1765 = vmatpush1.bf16.msra.mxu0 0
    %1766 = vmatprep.subr.bf16.mxu0 0
    %1767 = vmatpush1.bf16.msra.mxu0 0
    %1768 = vmatprep.subr.bf16.mxu0 0
    %1769 = vmatpush1.bf16.msra.mxu0 %v1750
    %1770 = vmatprep.subr.bf16.mxu0 0
    %1771 = vmatpush1.bf16.msra.mxu0 %v1749
    %1772 = vmatprep.subr.bf16.mxu0 0
    %1773 = vmatpush2.bf16.msra.mxu0 0
    %1774 = vmatprep.subr.bf16.mxu0 0
    %1775 = vmatpush2.bf16.msra.mxu0 0
    %1776 = vmatprep.subr.bf16.mxu0 0
    %1777 = vmatpush2.bf16.msra.mxu0 0
    %1778 = vmatprep.subr.bf16.mxu0 0
    %1779 = vmatpush2.bf16.msra.mxu0 0
    %1780 = vmatprep.subr.bf16.mxu0 0
    %1781 = vmatpush2.bf16.msra.mxu0 0
    %1782 = vmatprep.subr.bf16.mxu0 0
    %1783 = vmatpush2.bf16.msra.mxu0 0
    %1784 = vmatprep.subr.bf16.mxu0 0
    %1785 = vmatpush2.bf16.msra.mxu0 0
    %1786 = vmatprep.subr.bf16.mxu0 0
    %1787 = vmatpush2.bf16.msra.mxu0 0
    %1788 = vmatprep.mubr.bf16.mxu0 0
    %1789 = vmatmul.mubr.bf16.gmra.mxu0 %v1754
    %v1790 = vpop.f32.mrf.mxu0
    %v1791 = vadd.f32 %v1739, %v1790
    %v1792 = vpop.f32.mrf.mxu0
    %v1793 = vpop.f32.mrf.mxu0
    %v1794 = vadd.f32 %v1739, %v1793
    %v1795 = vpop.f32.mrf.mxu0
    %1796 = vdwg.mxu0
    %s1797 = scalar_lea.vmem %s6, 16
    %v1798 = vld [vmem:[%s1797] sm:$0xf]
    %v1799 = vld [vmem:[%s1797 + $0x4] sm:$0xf]
    %v1800 = vld [vmem:[%s1797 + $0x8] sm:$0xf]
    %v1801 = vld [vmem:[%s1797 + $0xc] sm:$0xf]
    %v1802 = vpack.c.bf16 %v1791, %v1791
    %v1803 = vpack.c.bf16 %v1794, %v1794
    %1805 = vrot.lane.b32.xlu0 %v1802, 96
    %v1806 = vpop.permute.xlu0 %1805
    %v1808 = vsel %vm356, %v1802, 0
    %v1811 = vsel %vm356, %v1806, 0
    %1813 = vmatprep.subr.bf16.mxu0 0
    %1814 = vmatpush1.bf16.xpose.msra.mxu0 0
    %1815 = vmatprep.subr.bf16.mxu0 0
    %1816 = vmatpush1.bf16.xpose.msra.mxu0 0
    %1817 = vmatprep.subr.bf16.mxu0 0
    %1818 = vmatpush1.bf16.xpose.msra.mxu0 0
    %1819 = vmatprep.subr.bf16.mxu0 0
    %1820 = vmatpush1.bf16.xpose.msra.mxu0 0
    %1821 = vmatprep.subr.bf16.mxu0 0
    %1822 = vmatpush1.bf16.xpose.msra.mxu0 0
    %1823 = vmatprep.subr.bf16.mxu0 0
    %1824 = vmatpush1.bf16.xpose.msra.mxu0 0
    %1825 = vmatprep.subr.bf16.mxu0 0
    %1826 = vmatpush1.bf16.xpose.msra.mxu0 0
    %1827 = vmatprep.subr.bf16.mxu0 0
    %1828 = vmatpush1.bf16.xpose.msra.mxu0 %v1811
    %1829 = vmatprep.subr.bf16.mxu0 0
    %1830 = vmatpush2.bf16.xpose.msra.mxu0 0
    %1831 = vmatprep.subr.bf16.mxu0 0
    %1832 = vmatpush2.bf16.xpose.msra.mxu0 0
    %1833 = vmatprep.subr.bf16.mxu0 0
    %1834 = vmatpush2.bf16.xpose.msra.mxu0 0
    %1835 = vmatprep.subr.bf16.mxu0 0
    %1836 = vmatpush2.bf16.xpose.msra.mxu0 0
    %1837 = vmatprep.subr.bf16.mxu0 0
    %1838 = vmatpush2.bf16.xpose.msra.mxu0 0
    %1839 = vmatprep.subr.bf16.mxu0 0
    %1840 = vmatpush2.bf16.xpose.msra.mxu0 0
    %1841 = vmatprep.subr.bf16.mxu0 0
    %1842 = vmatpush2.bf16.xpose.msra.mxu0 0
    %1843 = vmatprep.subr.bf16.mxu0 0
    %1844 = vmatpush2.bf16.xpose.msra.mxu0 0
    %1845 = vmatprep.mubr.bf16.mxu0 0
    %1846 = vmatmul.mubr.bf16.gmra.mxu0 %v1808
    %v1847 = vpop.f32.mrf.mxu0
    %v1848 = vadd.f32 0.0, %v1847
    %v1849 = vpop.f32.mrf.mxu0
    %v1850 = vpop.f32.mrf.mxu0
    %v1851 = vpop.f32.mrf.mxu0
    %1852 = vdwg.mxu0
    %1854 = vrot.lane.b32.xlu0 %v1803, 96
    %v1855 = vpop.permute.xlu0 %1854
    %v1857 = vsel %vm356, %v1803, 0
    %v1860 = vsel %vm356, %v1855, 0
    %1862 = vmatprep.subr.bf16.mxu0 0
    %1863 = vmatpush1.bf16.xpose.msra.mxu0 0
    %1864 = vmatprep.subr.bf16.mxu0 0
    %1865 = vmatpush1.bf16.xpose.msra.mxu0 0
    %1866 = vmatprep.subr.bf16.mxu0 0
    %1867 = vmatpush1.bf16.xpose.msra.mxu0 0
    %1868 = vmatprep.subr.bf16.mxu0 0
    %1869 = vmatpush1.bf16.xpose.msra.mxu0 0
    %1870 = vmatprep.subr.bf16.mxu0 0
    %1871 = vmatpush1.bf16.xpose.msra.mxu0 0
    %1872 = vmatprep.subr.bf16.mxu0 0
    %1873 = vmatpush1.bf16.xpose.msra.mxu0 0
    %1874 = vmatprep.subr.bf16.mxu0 0
    %1875 = vmatpush1.bf16.xpose.msra.mxu0 0
    %1876 = vmatprep.subr.bf16.mxu0 0
    %1877 = vmatpush1.bf16.xpose.msra.mxu0 %v1860
    %1878 = vmatprep.subr.bf16.mxu0 0
    %1879 = vmatpush2.bf16.xpose.msra.mxu0 0
    %1880 = vmatprep.subr.bf16.mxu0 0
    %1881 = vmatpush2.bf16.xpose.msra.mxu0 0
    %1882 = vmatprep.subr.bf16.mxu0 0
    %1883 = vmatpush2.bf16.xpose.msra.mxu0 0
    %1884 = vmatprep.subr.bf16.mxu0 0
    %1885 = vmatpush2.bf16.xpose.msra.mxu0 0
    %1886 = vmatprep.subr.bf16.mxu0 0
    %1887 = vmatpush2.bf16.xpose.msra.mxu0 0
    %1888 = vmatprep.subr.bf16.mxu0 0
    %1889 = vmatpush2.bf16.xpose.msra.mxu0 0
    %1890 = vmatprep.subr.bf16.mxu0 0
    %1891 = vmatpush2.bf16.xpose.msra.mxu0 0
    %1892 = vmatprep.subr.bf16.mxu0 0
    %1893 = vmatpush2.bf16.xpose.msra.mxu0 0
    %1894 = vmatprep.mubr.bf16.mxu0 0
    %1895 = vmatmul.mubr.bf16.gmra.mxu0 %v1857
    %v1896 = vpop.f32.mrf.mxu0
    %v1897 = vadd.f32 0.0, %v1896
    %v1898 = vpop.f32.mrf.mxu0
    %v1899 = vpop.f32.mrf.mxu0
    %v1900 = vpop.f32.mrf.mxu0
    %1901 = vdwg.mxu0
    %v1902 = vmul.f32 %v1848, 0.35355338
    %v1903 = vmul.f32 %v1897, 0.35355338
    %v1904 = vadd.f32 %v1902, %v457
    %v1905 = vadd.f32 %v1903, %v461
    %v1906 = vsel %vm356, %v1904, -inf
    %1907 = vmax.xlane.f32.xlu0 %v1906
    %v1908 = vpop.xlane.xlu0 %1907
    %v1909 = vsel %vm356, %v1905, -inf
    %1910 = vmax.xlane.f32.xlu0 %v1909
    %v1911 = vpop.xlane.xlu0 %1910
    %v1912 = vsub.f32 %v1904, %v1908
    %v1913 = vsub.f32 %v1905, %v1911
    %v1914 = vmul.f32 %v1912, 1.442695
    %v1915 = vpow.pop %v1914
    %v1916 = vmul.f32 %v1913, 1.442695
    %v1917 = vpow.pop %v1916
    %v1918 = vsel %vm356, %v1915, 0.0
    %1919 = vadd.xlane.f32.xlu0 %v1918
    %v1920 = vpop.xlane.xlu0 %1919
    %v1921 = vsel %vm356, %v1917, 0.0
    %1922 = vadd.xlane.f32.xlu0 %v1921
    %v1923 = vpop.xlane.xlu0 %1922
    %v1924 = vrcp.pop %v1920
    %v1925 = vrcp.pop %v1923
    %v1926 = vmul.f32 %v1915, %v1924
    %v1927 = vmul.f32 %v1917, %v1925
    %v1928 = vpack.c.bf16 %v1926, %v1926
    %v1929 = vpack.c.bf16 %v1927, %v1927
    %1930 = vrot.lane.b32.xlu0 %v1802, 64
    %v1931 = vpop.permute.xlu0 %1930
    %v1933 = vsel %vm356, %v1928, 0
    %v1936 = vsel %vm495, %v1931, 0
    %1938 = vmatprep.subr.bf16.mxu0 0
    %1939 = vmatpush1.bf16.msra.mxu0 0
    %1940 = vmatprep.subr.bf16.mxu0 0
    %1941 = vmatpush1.bf16.msra.mxu0 0
    %1942 = vmatprep.subr.bf16.mxu0 0
    %1943 = vmatpush1.bf16.msra.mxu0 0
    %1944 = vmatprep.subr.bf16.mxu0 0
    %1945 = vmatpush1.bf16.msra.mxu0 0
    %1946 = vmatprep.subr.bf16.mxu0 0
    %1947 = vmatpush1.bf16.msra.mxu0 0
    %1948 = vmatprep.subr.bf16.mxu0 0
    %1949 = vmatpush1.bf16.msra.mxu0 0
    %1950 = vmatprep.subr.bf16.mxu0 0
    %1951 = vmatpush1.bf16.msra.mxu0 0
    %1952 = vmatprep.subr.bf16.mxu0 0
    %1953 = vmatpush1.bf16.msra.mxu0 %v1936
    %1954 = vmatprep.subr.bf16.mxu0 0
    %1955 = vmatpush2.bf16.msra.mxu0 0
    %1956 = vmatprep.subr.bf16.mxu0 0
    %1957 = vmatpush2.bf16.msra.mxu0 0
    %1958 = vmatprep.subr.bf16.mxu0 0
    %1959 = vmatpush2.bf16.msra.mxu0 0
    %1960 = vmatprep.subr.bf16.mxu0 0
    %1961 = vmatpush2.bf16.msra.mxu0 0
    %1962 = vmatprep.subr.bf16.mxu0 0
    %1963 = vmatpush2.bf16.msra.mxu0 0
    %1964 = vmatprep.subr.bf16.mxu0 0
    %1965 = vmatpush2.bf16.msra.mxu0 0
    %1966 = vmatprep.subr.bf16.mxu0 0
    %1967 = vmatpush2.bf16.msra.mxu0 0
    %1968 = vmatprep.subr.bf16.mxu0 0
    %1969 = vmatpush2.bf16.msra.mxu0 0
    %1970 = vmatprep.mubr.bf16.mxu0 0
    %1971 = vmatmul.mubr.bf16.gmra.mxu0 %v1933
    %v1972 = vpop.f32.mrf.mxu0
    %v1973 = vadd.f32 0.0, %v1972
    %v1974 = vpop.f32.mrf.mxu0
    %v1975 = vpop.f32.mrf.mxu0
    %v1976 = vpop.f32.mrf.mxu0
    %1977 = vdwg.mxu0
    %1978 = vrot.lane.b32.xlu0 %v1803, 64
    %v1979 = vpop.permute.xlu0 %1978
    %v1981 = vsel %vm356, %v1929, 0
    %v1984 = vsel %vm495, %v1979, 0
    %1986 = vmatprep.subr.bf16.mxu0 0
    %1987 = vmatpush1.bf16.msra.mxu0 0
    %1988 = vmatprep.subr.bf16.mxu0 0
    %1989 = vmatpush1.bf16.msra.mxu0 0
    %1990 = vmatprep.subr.bf16.mxu0 0
    %1991 = vmatpush1.bf16.msra.mxu0 0
    %1992 = vmatprep.subr.bf16.mxu0 0
    %1993 = vmatpush1.bf16.msra.mxu0 0
    %1994 = vmatprep.subr.bf16.mxu0 0
    %1995 = vmatpush1.bf16.msra.mxu0 0
    %1996 = vmatprep.subr.bf16.mxu0 0
    %1997 = vmatpush1.bf16.msra.mxu0 0
    %1998 = vmatprep.subr.bf16.mxu0 0
    %1999 = vmatpush1.bf16.msra.mxu0 0
    %2000 = vmatprep.subr.bf16.mxu0 0
    %2001 = vmatpush1.bf16.msra.mxu0 %v1984
    %2002 = vmatprep.subr.bf16.mxu0 0
    %2003 = vmatpush2.bf16.msra.mxu0 0
    %2004 = vmatprep.subr.bf16.mxu0 0
    %2005 = vmatpush2.bf16.msra.mxu0 0
    %2006 = vmatprep.subr.bf16.mxu0 0
    %2007 = vmatpush2.bf16.msra.mxu0 0
    %2008 = vmatprep.subr.bf16.mxu0 0
    %2009 = vmatpush2.bf16.msra.mxu0 0
    %2010 = vmatprep.subr.bf16.mxu0 0
    %2011 = vmatpush2.bf16.msra.mxu0 0
    %2012 = vmatprep.subr.bf16.mxu0 0
    %2013 = vmatpush2.bf16.msra.mxu0 0
    %2014 = vmatprep.subr.bf16.mxu0 0
    %2015 = vmatpush2.bf16.msra.mxu0 0
    %2016 = vmatprep.subr.bf16.mxu0 0
    %2017 = vmatpush2.bf16.msra.mxu0 0
    %2018 = vmatprep.mubr.bf16.mxu0 0
    %2019 = vmatmul.mubr.bf16.gmra.mxu0 %v1981
    %v2020 = vpop.f32.mrf.mxu0
    %v2021 = vadd.f32 0.0, %v2020
    %v2022 = vpop.f32.mrf.mxu0
    %v2023 = vpop.f32.mrf.mxu0
    %v2024 = vpop.f32.mrf.mxu0
    %2025 = vdwg.mxu0
    %v2026 = vpack.c.bf16 %v2021, %v1973
    %2027 = vrot.lane.b32.xlu0 %v1802, 120
    %v2028 = vpop.permute.xlu0 %2027
    %2029 = vrot.lane.b32.xlu0 %v1802, 88
    %v2030 = vpop.permute.xlu0 %2029
    %v2032 = vsel %vm356, %v2028, 0
    %v2035 = vsel %vm356, %v2030, 0
    %2037 = vmatprep.subr.bf16.mxu0 0
    %2038 = vmatpush1.bf16.xpose.msra.mxu0 0
    %2039 = vmatprep.subr.bf16.mxu0 0
    %2040 = vmatpush1.bf16.xpose.msra.mxu0 0
    %2041 = vmatprep.subr.bf16.mxu0 0
    %2042 = vmatpush1.bf16.xpose.msra.mxu0 0
    %2043 = vmatprep.subr.bf16.mxu0 0
    %2044 = vmatpush1.bf16.xpose.msra.mxu0 0
    %2045 = vmatprep.subr.bf16.mxu0 0
    %2046 = vmatpush1.bf16.xpose.msra.mxu0 0
    %2047 = vmatprep.subr.bf16.mxu0 0
    %2048 = vmatpush1.bf16.xpose.msra.mxu0 0
    %2049 = vmatprep.subr.bf16.mxu0 0
    %2050 = vmatpush1.bf16.xpose.msra.mxu0 0
    %2051 = vmatprep.subr.bf16.mxu0 0
    %2052 = vmatpush1.bf16.xpose.msra.mxu0 %v2035
    %2053 = vmatprep.subr.bf16.mxu0 0
    %2054 = vmatpush2.bf16.xpose.msra.mxu0 0
    %2055 = vmatprep.subr.bf16.mxu0 0
    %2056 = vmatpush2.bf16.xpose.msra.mxu0 0
    %2057 = vmatprep.subr.bf16.mxu0 0
    %2058 = vmatpush2.bf16.xpose.msra.mxu0 0
    %2059 = vmatprep.subr.bf16.mxu0 0
    %2060 = vmatpush2.bf16.xpose.msra.mxu0 0
    %2061 = vmatprep.subr.bf16.mxu0 0
    %2062 = vmatpush2.bf16.xpose.msra.mxu0 0
    %2063 = vmatprep.subr.bf16.mxu0 0
    %2064 = vmatpush2.bf16.xpose.msra.mxu0 0
    %2065 = vmatprep.subr.bf16.mxu0 0
    %2066 = vmatpush2.bf16.xpose.msra.mxu0 0
    %2067 = vmatprep.subr.bf16.mxu0 0
    %2068 = vmatpush2.bf16.xpose.msra.mxu0 0
    %2069 = vmatprep.mubr.bf16.mxu0 0
    %2070 = vmatmul.mubr.bf16.gmra.mxu0 %v2032
    %v2071 = vpop.f32.mrf.mxu0
    %v2072 = vadd.f32 0.0, %v2071
    %v2073 = vpop.f32.mrf.mxu0
    %v2074 = vpop.f32.mrf.mxu0
    %v2075 = vpop.f32.mrf.mxu0
    %2076 = vdwg.mxu0
    %2077 = vrot.lane.b32.xlu0 %v1803, 120
    %v2078 = vpop.permute.xlu0 %2077
    %2079 = vrot.lane.b32.xlu0 %v1803, 88
    %v2080 = vpop.permute.xlu0 %2079
    %v2082 = vsel %vm356, %v2078, 0
    %v2085 = vsel %vm356, %v2080, 0
    %2087 = vmatprep.subr.bf16.mxu0 0
    %2088 = vmatpush1.bf16.xpose.msra.mxu0 0
    %2089 = vmatprep.subr.bf16.mxu0 0
    %2090 = vmatpush1.bf16.xpose.msra.mxu0 0
    %2091 = vmatprep.subr.bf16.mxu0 0
    %2092 = vmatpush1.bf16.xpose.msra.mxu0 0
    %2093 = vmatprep.subr.bf16.mxu0 0
    %2094 = vmatpush1.bf16.xpose.msra.mxu0 0
    %2095 = vmatprep.subr.bf16.mxu0 0
    %2096 = vmatpush1.bf16.xpose.msra.mxu0 0
    %2097 = vmatprep.subr.bf16.mxu0 0
    %2098 = vmatpush1.bf16.xpose.msra.mxu0 0
    %2099 = vmatprep.subr.bf16.mxu0 0
    %2100 = vmatpush1.bf16.xpose.msra.mxu0 0
    %2101 = vmatprep.subr.bf16.mxu0 0
    %2102 = vmatpush1.bf16.xpose.msra.mxu0 %v2085
    %2103 = vmatprep.subr.bf16.mxu0 0
    %2104 = vmatpush2.bf16.xpose.msra.mxu0 0
    %2105 = vmatprep.subr.bf16.mxu0 0
    %2106 = vmatpush2.bf16.xpose.msra.mxu0 0
    %2107 = vmatprep.subr.bf16.mxu0 0
    %2108 = vmatpush2.bf16.xpose.msra.mxu0 0
    %2109 = vmatprep.subr.bf16.mxu0 0
    %2110 = vmatpush2.bf16.xpose.msra.mxu0 0
    %2111 = vmatprep.subr.bf16.mxu0 0
    %2112 = vmatpush2.bf16.xpose.msra.mxu0 0
    %2113 = vmatprep.subr.bf16.mxu0 0
    %2114 = vmatpush2.bf16.xpose.msra.mxu0 0
    %2115 = vmatprep.subr.bf16.mxu0 0
    %2116 = vmatpush2.bf16.xpose.msra.mxu0 0
    %2117 = vmatprep.subr.bf16.mxu0 0
    %2118 = vmatpush2.bf16.xpose.msra.mxu0 0
    %2119 = vmatprep.mubr.bf16.mxu0 0
    %2120 = vmatmul.mubr.bf16.gmra.mxu0 %v2082
    %v2121 = vpop.f32.mrf.mxu0
    %v2122 = vadd.f32 0.0, %v2121
    %v2123 = vpop.f32.mrf.mxu0
    %v2124 = vpop.f32.mrf.mxu0
    %v2125 = vpop.f32.mrf.mxu0
    %2126 = vdwg.mxu0
    %v2127 = vmul.f32 %v2072, 0.35355338
    %v2128 = vmul.f32 %v2122, 0.35355338
    %v2129 = vadd.f32 %v2127, %v457
    %v2130 = vadd.f32 %v2128, %v461
    %v2131 = vsel %vm356, %v2129, -inf
    %2132 = vmax.xlane.f32.xlu0 %v2131
    %v2133 = vpop.xlane.xlu0 %2132
    %v2134 = vsel %vm356, %v2130, -inf
    %2135 = vmax.xlane.f32.xlu0 %v2134
    %v2136 = vpop.xlane.xlu0 %2135
    %v2137 = vsub.f32 %v2129, %v2133
    %v2138 = vsub.f32 %v2130, %v2136
    %v2139 = vmul.f32 %v2137, 1.442695
    %v2140 = vpow.pop %v2139
    %v2141 = vmul.f32 %v2138, 1.442695
    %v2142 = vpow.pop %v2141
    %v2143 = vsel %vm356, %v2140, 0.0
    %2144 = vadd.xlane.f32.xlu0 %v2143
    %v2145 = vpop.xlane.xlu0 %2144
    %v2146 = vsel %vm356, %v2142, 0.0
    %2147 = vadd.xlane.f32.xlu0 %v2146
    %v2148 = vpop.xlane.xlu0 %2147
    %v2149 = vrcp.pop %v2145
    %v2150 = vrcp.pop %v2148
    %v2151 = vmul.f32 %v2140, %v2149
    %v2152 = vmul.f32 %v2142, %v2150
    %v2153 = vpack.c.bf16 %v2151, %v2151
    %v2154 = vpack.c.bf16 %v2152, %v2152
    %2155 = vrot.lane.b32.xlu0 %v1802, 56
    %v2156 = vpop.permute.xlu0 %2155
    %v2158 = vsel %vm356, %v2153, 0
    %v2161 = vsel %vm495, %v2156, 0
    %2163 = vmatprep.subr.bf16.mxu0 0
    %2164 = vmatpush1.bf16.msra.mxu0 0
    %2165 = vmatprep.subr.bf16.mxu0 0
    %2166 = vmatpush1.bf16.msra.mxu0 0
    %2167 = vmatprep.subr.bf16.mxu0 0
    %2168 = vmatpush1.bf16.msra.mxu0 0
    %2169 = vmatprep.subr.bf16.mxu0 0
    %2170 = vmatpush1.bf16.msra.mxu0 0
    %2171 = vmatprep.subr.bf16.mxu0 0
    %2172 = vmatpush1.bf16.msra.mxu0 0
    %2173 = vmatprep.subr.bf16.mxu0 0
    %2174 = vmatpush1.bf16.msra.mxu0 0
    %2175 = vmatprep.subr.bf16.mxu0 0
    %2176 = vmatpush1.bf16.msra.mxu0 0
    %2177 = vmatprep.subr.bf16.mxu0 0
    %2178 = vmatpush1.bf16.msra.mxu0 %v2161
    %2179 = vmatprep.subr.bf16.mxu0 0
    %2180 = vmatpush2.bf16.msra.mxu0 0
    %2181 = vmatprep.subr.bf16.mxu0 0
    %2182 = vmatpush2.bf16.msra.mxu0 0
    %2183 = vmatprep.subr.bf16.mxu0 0
    %2184 = vmatpush2.bf16.msra.mxu0 0
    %2185 = vmatprep.subr.bf16.mxu0 0
    %2186 = vmatpush2.bf16.msra.mxu0 0
    %2187 = vmatprep.subr.bf16.mxu0 0
    %2188 = vmatpush2.bf16.msra.mxu0 0
    %2189 = vmatprep.subr.bf16.mxu0 0
    %2190 = vmatpush2.bf16.msra.mxu0 0
    %2191 = vmatprep.subr.bf16.mxu0 0
    %2192 = vmatpush2.bf16.msra.mxu0 0
    %2193 = vmatprep.subr.bf16.mxu0 0
    %2194 = vmatpush2.bf16.msra.mxu0 0
    %2195 = vmatprep.mubr.bf16.mxu0 0
    %2196 = vmatmul.mubr.bf16.gmra.mxu0 %v2158
    %v2197 = vpop.f32.mrf.mxu0
    %v2198 = vadd.f32 0.0, %v2197
    %v2199 = vpop.f32.mrf.mxu0
    %v2200 = vpop.f32.mrf.mxu0
    %v2201 = vpop.f32.mrf.mxu0
    %2202 = vdwg.mxu0
    %2203 = vrot.lane.b32.xlu0 %v1803, 56
    %v2204 = vpop.permute.xlu0 %2203
    %v2206 = vsel %vm356, %v2154, 0
    %v2209 = vsel %vm495, %v2204, 0
    %2211 = vmatprep.subr.bf16.mxu0 0
    %2212 = vmatpush1.bf16.msra.mxu0 0
    %2213 = vmatprep.subr.bf16.mxu0 0
    %2214 = vmatpush1.bf16.msra.mxu0 0
    %2215 = vmatprep.subr.bf16.mxu0 0
    %2216 = vmatpush1.bf16.msra.mxu0 0
    %2217 = vmatprep.subr.bf16.mxu0 0
    %2218 = vmatpush1.bf16.msra.mxu0 0
    %2219 = vmatprep.subr.bf16.mxu0 0
    %2220 = vmatpush1.bf16.msra.mxu0 0
    %2221 = vmatprep.subr.bf16.mxu0 0
    %2222 = vmatpush1.bf16.msra.mxu0 0
    %2223 = vmatprep.subr.bf16.mxu0 0
    %2224 = vmatpush1.bf16.msra.mxu0 0
    %2225 = vmatprep.subr.bf16.mxu0 0
    %2226 = vmatpush1.bf16.msra.mxu0 %v2209
    %2227 = vmatprep.subr.bf16.mxu0 0
    %2228 = vmatpush2.bf16.msra.mxu0 0
    %2229 = vmatprep.subr.bf16.mxu0 0
    %2230 = vmatpush2.bf16.msra.mxu0 0
    %2231 = vmatprep.subr.bf16.mxu0 0
    %2232 = vmatpush2.bf16.msra.mxu0 0
    %2233 = vmatprep.subr.bf16.mxu0 0
    %2234 = vmatpush2.bf16.msra.mxu0 0
    %2235 = vmatprep.subr.bf16.mxu0 0
    %2236 = vmatpush2.bf16.msra.mxu0 0
    %2237 = vmatprep.subr.bf16.mxu0 0
    %2238 = vmatpush2.bf16.msra.mxu0 0
    %2239 = vmatprep.subr.bf16.mxu0 0
    %2240 = vmatpush2.bf16.msra.mxu0 0
    %2241 = vmatprep.subr.bf16.mxu0 0
    %2242 = vmatpush2.bf16.msra.mxu0 0
    %2243 = vmatprep.mubr.bf16.mxu0 0
    %2244 = vmatmul.mubr.bf16.gmra.mxu0 %v2206
    %v2245 = vpop.f32.mrf.mxu0
    %v2246 = vadd.f32 0.0, %v2245
    %v2247 = vpop.f32.mrf.mxu0
    %v2248 = vpop.f32.mrf.mxu0
    %v2249 = vpop.f32.mrf.mxu0
    %2250 = vdwg.mxu0
    %v2251 = vpack.c.bf16 %v2246, %v2198
    %v2253 = vsel %vm356, %v2251, 0
    %v2256 = vsel %vm495, %v1799, 0
    %2258 = vmatprep.subr.bf16.mxu0 0
    %2259 = vmatpush1.bf16.msra.mxu0 0
    %2260 = vmatprep.subr.bf16.mxu0 0
    %2261 = vmatpush1.bf16.msra.mxu0 0
    %2262 = vmatprep.subr.bf16.mxu0 0
    %2263 = vmatpush1.bf16.msra.mxu0 0
    %2264 = vmatprep.subr.bf16.mxu0 0
    %2265 = vmatpush1.bf16.msra.mxu0 0
    %2266 = vmatprep.subr.bf16.mxu0 0
    %2267 = vmatpush1.bf16.msra.mxu0 0
    %2268 = vmatprep.subr.bf16.mxu0 0
    %2269 = vmatpush1.bf16.msra.mxu0 0
    %2270 = vmatprep.subr.bf16.mxu0 0
    %2271 = vmatpush1.bf16.msra.mxu0 0
    %2272 = vmatprep.subr.bf16.mxu0 0
    %2273 = vmatpush1.bf16.msra.mxu0 %v2256
    %2274 = vmatprep.subr.bf16.mxu0 0
    %2275 = vmatpush2.bf16.msra.mxu0 0
    %2276 = vmatprep.subr.bf16.mxu0 0
    %2277 = vmatpush2.bf16.msra.mxu0 0
    %2278 = vmatprep.subr.bf16.mxu0 0
    %2279 = vmatpush2.bf16.msra.mxu0 0
    %2280 = vmatprep.subr.bf16.mxu0 0
    %2281 = vmatpush2.bf16.msra.mxu0 0
    %2282 = vmatprep.subr.bf16.mxu0 0
    %2283 = vmatpush2.bf16.msra.mxu0 0
    %2284 = vmatprep.subr.bf16.mxu0 0
    %2285 = vmatpush2.bf16.msra.mxu0 0
    %2286 = vmatprep.subr.bf16.mxu0 0
    %2287 = vmatpush2.bf16.msra.mxu0 0
    %2288 = vmatprep.subr.bf16.mxu0 0
    %2289 = vmatpush2.bf16.msra.mxu0 0
    %2290 = vmatprep.mubr.bf16.mxu0 0
    %2291 = vmatmul.mubr.bf16.gmra.mxu0 %v2253
    %v2292 = vpop.f32.mrf.mxu0
    %v2293 = vadd.f32 0.0, %v2292
    %v2294 = vpop.f32.mrf.mxu0
    %v2295 = vpop.f32.mrf.mxu0
    %v2296 = vadd.f32 0.0, %v2295
    %v2297 = vpop.f32.mrf.mxu0
    %2298 = vdwg.mxu0
    %v2300 = vsel %vm356, %v2026, 0
    %v2303 = vsel %vm495, %v1798, 0
    %2305 = vmatprep.subr.bf16.mxu0 0
    %2306 = vmatpush1.bf16.msra.mxu0 0
    %2307 = vmatprep.subr.bf16.mxu0 0
    %2308 = vmatpush1.bf16.msra.mxu0 0
    %2309 = vmatprep.subr.bf16.mxu0 0
    %2310 = vmatpush1.bf16.msra.mxu0 0
    %2311 = vmatprep.subr.bf16.mxu0 0
    %2312 = vmatpush1.bf16.msra.mxu0 0
    %2313 = vmatprep.subr.bf16.mxu0 0
    %2314 = vmatpush1.bf16.msra.mxu0 0
    %2315 = vmatprep.subr.bf16.mxu0 0
    %2316 = vmatpush1.bf16.msra.mxu0 0
    %2317 = vmatprep.subr.bf16.mxu0 0
    %2318 = vmatpush1.bf16.msra.mxu0 0
    %2319 = vmatprep.subr.bf16.mxu0 0
    %2320 = vmatpush1.bf16.msra.mxu0 %v2303
    %2321 = vmatprep.subr.bf16.mxu0 0
    %2322 = vmatpush2.bf16.msra.mxu0 0
    %2323 = vmatprep.subr.bf16.mxu0 0
    %2324 = vmatpush2.bf16.msra.mxu0 0
    %2325 = vmatprep.subr.bf16.mxu0 0
    %2326 = vmatpush2.bf16.msra.mxu0 0
    %2327 = vmatprep.subr.bf16.mxu0 0
    %2328 = vmatpush2.bf16.msra.mxu0 0
    %2329 = vmatprep.subr.bf16.mxu0 0
    %2330 = vmatpush2.bf16.msra.mxu0 0
    %2331 = vmatprep.subr.bf16.mxu0 0
    %2332 = vmatpush2.bf16.msra.mxu0 0
    %2333 = vmatprep.subr.bf16.mxu0 0
    %2334 = vmatpush2.bf16.msra.mxu0 0
    %2335 = vmatprep.subr.bf16.mxu0 0
    %2336 = vmatpush2.bf16.msra.mxu0 0
    %2337 = vmatprep.mubr.bf16.mxu0 0
    %2338 = vmatmul.mubr.bf16.gmra.mxu0 %v2300
    %v2339 = vpop.f32.mrf.mxu0
    %v2340 = vadd.f32 %v2293, %v2339
    %v2341 = vpop.f32.mrf.mxu0
    %v2342 = vpop.f32.mrf.mxu0
    %v2343 = vadd.f32 %v2296, %v2342
    %v2344 = vpop.f32.mrf.mxu0
    %2345 = vdwg.mxu0
    %2346 = vrot.lane.b32.xlu0 %v1802, 112
    %v2347 = vpop.permute.xlu0 %2346
    %2348 = vrot.lane.b32.xlu0 %v1802, 80
    %v2349 = vpop.permute.xlu0 %2348
    %v2351 = vsel %vm356, %v2347, 0
    %v2354 = vsel %vm356, %v2349, 0
    %2356 = vmatprep.subr.bf16.mxu0 0
    %2357 = vmatpush1.bf16.xpose.msra.mxu0 0
    %2358 = vmatprep.subr.bf16.mxu0 0
    %2359 = vmatpush1.bf16.xpose.msra.mxu0 0
    %2360 = vmatprep.subr.bf16.mxu0 0
    %2361 = vmatpush1.bf16.xpose.msra.mxu0 0
    %2362 = vmatprep.subr.bf16.mxu0 0
    %2363 = vmatpush1.bf16.xpose.msra.mxu0 0
    %2364 = vmatprep.subr.bf16.mxu0 0
    %2365 = vmatpush1.bf16.xpose.msra.mxu0 0
    %2366 = vmatprep.subr.bf16.mxu0 0
    %2367 = vmatpush1.bf16.xpose.msra.mxu0 0
    %2368 = vmatprep.subr.bf16.mxu0 0
    %2369 = vmatpush1.bf16.xpose.msra.mxu0 0
    %2370 = vmatprep.subr.bf16.mxu0 0
    %2371 = vmatpush1.bf16.xpose.msra.mxu0 %v2354
    %2372 = vmatprep.subr.bf16.mxu0 0
    %2373 = vmatpush2.bf16.xpose.msra.mxu0 0
    %2374 = vmatprep.subr.bf16.mxu0 0
    %2375 = vmatpush2.bf16.xpose.msra.mxu0 0
    %2376 = vmatprep.subr.bf16.mxu0 0
    %2377 = vmatpush2.bf16.xpose.msra.mxu0 0
    %2378 = vmatprep.subr.bf16.mxu0 0
    %2379 = vmatpush2.bf16.xpose.msra.mxu0 0
    %2380 = vmatprep.subr.bf16.mxu0 0
    %2381 = vmatpush2.bf16.xpose.msra.mxu0 0
    %2382 = vmatprep.subr.bf16.mxu0 0
    %2383 = vmatpush2.bf16.xpose.msra.mxu0 0
    %2384 = vmatprep.subr.bf16.mxu0 0
    %2385 = vmatpush2.bf16.xpose.msra.mxu0 0
    %2386 = vmatprep.subr.bf16.mxu0 0
    %2387 = vmatpush2.bf16.xpose.msra.mxu0 0
    %2388 = vmatprep.mubr.bf16.mxu0 0
    %2389 = vmatmul.mubr.bf16.gmra.mxu0 %v2351
    %v2390 = vpop.f32.mrf.mxu0
    %v2391 = vadd.f32 0.0, %v2390
    %v2392 = vpop.f32.mrf.mxu0
    %v2393 = vpop.f32.mrf.mxu0
    %v2394 = vpop.f32.mrf.mxu0
    %2395 = vdwg.mxu0
    %2396 = vrot.lane.b32.xlu0 %v1803, 112
    %v2397 = vpop.permute.xlu0 %2396
    %2398 = vrot.lane.b32.xlu0 %v1803, 80
    %v2399 = vpop.permute.xlu0 %2398
    %v2401 = vsel %vm356, %v2397, 0
    %v2404 = vsel %vm356, %v2399, 0
    %2406 = vmatprep.subr.bf16.mxu0 0
    %2407 = vmatpush1.bf16.xpose.msra.mxu0 0
    %2408 = vmatprep.subr.bf16.mxu0 0
    %2409 = vmatpush1.bf16.xpose.msra.mxu0 0
    %2410 = vmatprep.subr.bf16.mxu0 0
    %2411 = vmatpush1.bf16.xpose.msra.mxu0 0
    %2412 = vmatprep.subr.bf16.mxu0 0
    %2413 = vmatpush1.bf16.xpose.msra.mxu0 0
    %2414 = vmatprep.subr.bf16.mxu0 0
    %2415 = vmatpush1.bf16.xpose.msra.mxu0 0
    %2416 = vmatprep.subr.bf16.mxu0 0
    %2417 = vmatpush1.bf16.xpose.msra.mxu0 0
    %2418 = vmatprep.subr.bf16.mxu0 0
    %2419 = vmatpush1.bf16.xpose.msra.mxu0 0
    %2420 = vmatprep.subr.bf16.mxu0 0
    %2421 = vmatpush1.bf16.xpose.msra.mxu0 %v2404
    %2422 = vmatprep.subr.bf16.mxu0 0
    %2423 = vmatpush2.bf16.xpose.msra.mxu0 0
    %2424 = vmatprep.subr.bf16.mxu0 0
    %2425 = vmatpush2.bf16.xpose.msra.mxu0 0
    %2426 = vmatprep.subr.bf16.mxu0 0
    %2427 = vmatpush2.bf16.xpose.msra.mxu0 0
    %2428 = vmatprep.subr.bf16.mxu0 0
    %2429 = vmatpush2.bf16.xpose.msra.mxu0 0
    %2430 = vmatprep.subr.bf16.mxu0 0
    %2431 = vmatpush2.bf16.xpose.msra.mxu0 0
    %2432 = vmatprep.subr.bf16.mxu0 0
    %2433 = vmatpush2.bf16.xpose.msra.mxu0 0
    %2434 = vmatprep.subr.bf16.mxu0 0
    %2435 = vmatpush2.bf16.xpose.msra.mxu0 0
    %2436 = vmatprep.subr.bf16.mxu0 0
    %2437 = vmatpush2.bf16.xpose.msra.mxu0 0
    %2438 = vmatprep.mubr.bf16.mxu0 0
    %2439 = vmatmul.mubr.bf16.gmra.mxu0 %v2401
    %v2440 = vpop.f32.mrf.mxu0
    %v2441 = vadd.f32 0.0, %v2440
    %v2442 = vpop.f32.mrf.mxu0
    %v2443 = vpop.f32.mrf.mxu0
    %v2444 = vpop.f32.mrf.mxu0
    %2445 = vdwg.mxu0
    %v2446 = vmul.f32 %v2391, 0.35355338
    %v2447 = vmul.f32 %v2441, 0.35355338
    %v2448 = vadd.f32 %v2446, %v457
    %v2449 = vadd.f32 %v2447, %v461
    %v2450 = vsel %vm356, %v2448, -inf
    %2451 = vmax.xlane.f32.xlu0 %v2450
    %v2452 = vpop.xlane.xlu0 %2451
    %v2453 = vsel %vm356, %v2449, -inf
    %2454 = vmax.xlane.f32.xlu0 %v2453
    %v2455 = vpop.xlane.xlu0 %2454
    %v2456 = vsub.f32 %v2448, %v2452
    %v2457 = vsub.f32 %v2449, %v2455
    %v2458 = vmul.f32 %v2456, 1.442695
    %v2459 = vpow.pop %v2458
    %v2460 = vmul.f32 %v2457, 1.442695
    %v2461 = vpow.pop %v2460
    %v2462 = vsel %vm356, %v2459, 0.0
    %2463 = vadd.xlane.f32.xlu0 %v2462
    %v2464 = vpop.xlane.xlu0 %2463
    %v2465 = vsel %vm356, %v2461, 0.0
    %2466 = vadd.xlane.f32.xlu0 %v2465
    %v2467 = vpop.xlane.xlu0 %2466
    %v2468 = vrcp.pop %v2464
    %v2469 = vrcp.pop %v2467
    %v2470 = vmul.f32 %v2459, %v2468
    %v2471 = vmul.f32 %v2461, %v2469
    %v2472 = vpack.c.bf16 %v2470, %v2470
    %v2473 = vpack.c.bf16 %v2471, %v2471
    %2474 = vrot.lane.b32.xlu0 %v1802, 48
    %v2475 = vpop.permute.xlu0 %2474
    %v2477 = vsel %vm356, %v2472, 0
    %v2480 = vsel %vm495, %v2475, 0
    %2482 = vmatprep.subr.bf16.mxu0 0
    %2483 = vmatpush1.bf16.msra.mxu0 0
    %2484 = vmatprep.subr.bf16.mxu0 0
    %2485 = vmatpush1.bf16.msra.mxu0 0
    %2486 = vmatprep.subr.bf16.mxu0 0
    %2487 = vmatpush1.bf16.msra.mxu0 0
    %2488 = vmatprep.subr.bf16.mxu0 0
    %2489 = vmatpush1.bf16.msra.mxu0 0
    %2490 = vmatprep.subr.bf16.mxu0 0
    %2491 = vmatpush1.bf16.msra.mxu0 0
    %2492 = vmatprep.subr.bf16.mxu0 0
    %2493 = vmatpush1.bf16.msra.mxu0 0
    %2494 = vmatprep.subr.bf16.mxu0 0
    %2495 = vmatpush1.bf16.msra.mxu0 0
    %2496 = vmatprep.subr.bf16.mxu0 0
    %2497 = vmatpush1.bf16.msra.mxu0 %v2480
    %2498 = vmatprep.subr.bf16.mxu0 0
    %2499 = vmatpush2.bf16.msra.mxu0 0
    %2500 = vmatprep.subr.bf16.mxu0 0
    %2501 = vmatpush2.bf16.msra.mxu0 0
    %2502 = vmatprep.subr.bf16.mxu0 0
    %2503 = vmatpush2.bf16.msra.mxu0 0
    %2504 = vmatprep.subr.bf16.mxu0 0
    %2505 = vmatpush2.bf16.msra.mxu0 0
    %2506 = vmatprep.subr.bf16.mxu0 0
    %2507 = vmatpush2.bf16.msra.mxu0 0
    %2508 = vmatprep.subr.bf16.mxu0 0
    %2509 = vmatpush2.bf16.msra.mxu0 0
    %2510 = vmatprep.subr.bf16.mxu0 0
    %2511 = vmatpush2.bf16.msra.mxu0 0
    %2512 = vmatprep.subr.bf16.mxu0 0
    %2513 = vmatpush2.bf16.msra.mxu0 0
    %2514 = vmatprep.mubr.bf16.mxu0 0
    %2515 = vmatmul.mubr.bf16.gmra.mxu0 %v2477
    %v2516 = vpop.f32.mrf.mxu0
    %v2517 = vadd.f32 0.0, %v2516
    %v2518 = vpop.f32.mrf.mxu0
    %v2519 = vpop.f32.mrf.mxu0
    %v2520 = vpop.f32.mrf.mxu0
    %2521 = vdwg.mxu0
    %2522 = vrot.lane.b32.xlu0 %v1803, 48
    %v2523 = vpop.permute.xlu0 %2522
    %v2525 = vsel %vm356, %v2473, 0
    %v2528 = vsel %vm495, %v2523, 0
    %2530 = vmatprep.subr.bf16.mxu0 0
    %2531 = vmatpush1.bf16.msra.mxu0 0
    %2532 = vmatprep.subr.bf16.mxu0 0
    %2533 = vmatpush1.bf16.msra.mxu0 0
    %2534 = vmatprep.subr.bf16.mxu0 0
    %2535 = vmatpush1.bf16.msra.mxu0 0
    %2536 = vmatprep.subr.bf16.mxu0 0
    %2537 = vmatpush1.bf16.msra.mxu0 0
    %2538 = vmatprep.subr.bf16.mxu0 0
    %2539 = vmatpush1.bf16.msra.mxu0 0
    %2540 = vmatprep.subr.bf16.mxu0 0
    %2541 = vmatpush1.bf16.msra.mxu0 0
    %2542 = vmatprep.subr.bf16.mxu0 0
    %2543 = vmatpush1.bf16.msra.mxu0 0
    %2544 = vmatprep.subr.bf16.mxu0 0
    %2545 = vmatpush1.bf16.msra.mxu0 %v2528
    %2546 = vmatprep.subr.bf16.mxu0 0
    %2547 = vmatpush2.bf16.msra.mxu0 0
    %2548 = vmatprep.subr.bf16.mxu0 0
    %2549 = vmatpush2.bf16.msra.mxu0 0
    %2550 = vmatprep.subr.bf16.mxu0 0
    %2551 = vmatpush2.bf16.msra.mxu0 0
    %2552 = vmatprep.subr.bf16.mxu0 0
    %2553 = vmatpush2.bf16.msra.mxu0 0
    %2554 = vmatprep.subr.bf16.mxu0 0
    %2555 = vmatpush2.bf16.msra.mxu0 0
    %2556 = vmatprep.subr.bf16.mxu0 0
    %2557 = vmatpush2.bf16.msra.mxu0 0
    %2558 = vmatprep.subr.bf16.mxu0 0
    %2559 = vmatpush2.bf16.msra.mxu0 0
    %2560 = vmatprep.subr.bf16.mxu0 0
    %2561 = vmatpush2.bf16.msra.mxu0 0
    %2562 = vmatprep.mubr.bf16.mxu0 0
    %2563 = vmatmul.mubr.bf16.gmra.mxu0 %v2525
    %v2564 = vpop.f32.mrf.mxu0
    %v2565 = vadd.f32 0.0, %v2564
    %v2566 = vpop.f32.mrf.mxu0
    %v2567 = vpop.f32.mrf.mxu0
    %v2568 = vpop.f32.mrf.mxu0
    %2569 = vdwg.mxu0
    %v2570 = vpack.c.bf16 %v2565, %v2517
    %v2572 = vsel %vm356, %v2570, 0
    %v2575 = vsel %vm495, %v1800, 0
    %2577 = vmatprep.subr.bf16.mxu0 0
    %2578 = vmatpush1.bf16.msra.mxu0 0
    %2579 = vmatprep.subr.bf16.mxu0 0
    %2580 = vmatpush1.bf16.msra.mxu0 0
    %2581 = vmatprep.subr.bf16.mxu0 0
    %2582 = vmatpush1.bf16.msra.mxu0 0
    %2583 = vmatprep.subr.bf16.mxu0 0
    %2584 = vmatpush1.bf16.msra.mxu0 0
    %2585 = vmatprep.subr.bf16.mxu0 0
    %2586 = vmatpush1.bf16.msra.mxu0 0
    %2587 = vmatprep.subr.bf16.mxu0 0
    %2588 = vmatpush1.bf16.msra.mxu0 0
    %2589 = vmatprep.subr.bf16.mxu0 0
    %2590 = vmatpush1.bf16.msra.mxu0 0
    %2591 = vmatprep.subr.bf16.mxu0 0
    %2592 = vmatpush1.bf16.msra.mxu0 %v2575
    %2593 = vmatprep.subr.bf16.mxu0 0
    %2594 = vmatpush2.bf16.msra.mxu0 0
    %2595 = vmatprep.subr.bf16.mxu0 0
    %2596 = vmatpush2.bf16.msra.mxu0 0
    %2597 = vmatprep.subr.bf16.mxu0 0
    %2598 = vmatpush2.bf16.msra.mxu0 0
    %2599 = vmatprep.subr.bf16.mxu0 0
    %2600 = vmatpush2.bf16.msra.mxu0 0
    %2601 = vmatprep.subr.bf16.mxu0 0
    %2602 = vmatpush2.bf16.msra.mxu0 0
    %2603 = vmatprep.subr.bf16.mxu0 0
    %2604 = vmatpush2.bf16.msra.mxu0 0
    %2605 = vmatprep.subr.bf16.mxu0 0
    %2606 = vmatpush2.bf16.msra.mxu0 0
    %2607 = vmatprep.subr.bf16.mxu0 0
    %2608 = vmatpush2.bf16.msra.mxu0 0
    %2609 = vmatprep.mubr.bf16.mxu0 0
    %2610 = vmatmul.mubr.bf16.gmra.mxu0 %v2572
    %v2611 = vpop.f32.mrf.mxu0
    %v2612 = vadd.f32 0.0, %v2611
    %v2613 = vpop.f32.mrf.mxu0
    %v2614 = vpop.f32.mrf.mxu0
    %v2615 = vadd.f32 0.0, %v2614
    %v2616 = vpop.f32.mrf.mxu0
    %2617 = vdwg.mxu0
    %v2618 = vadd.f32 %v2340, %v2612
    %v2619 = vadd.f32 %v2343, %v2615
    %2620 = vrot.lane.b32.xlu0 %v1802, 104
    %v2621 = vpop.permute.xlu0 %2620
    %2622 = vrot.lane.b32.xlu0 %v1802, 72
    %v2623 = vpop.permute.xlu0 %2622
    %v2625 = vsel %vm356, %v2621, 0
    %v2628 = vsel %vm356, %v2623, 0
    %2630 = vmatprep.subr.bf16.mxu0 0
    %2631 = vmatpush1.bf16.xpose.msra.mxu0 0
    %2632 = vmatprep.subr.bf16.mxu0 0
    %2633 = vmatpush1.bf16.xpose.msra.mxu0 0
    %2634 = vmatprep.subr.bf16.mxu0 0
    %2635 = vmatpush1.bf16.xpose.msra.mxu0 0
    %2636 = vmatprep.subr.bf16.mxu0 0
    %2637 = vmatpush1.bf16.xpose.msra.mxu0 0
    %2638 = vmatprep.subr.bf16.mxu0 0
    %2639 = vmatpush1.bf16.xpose.msra.mxu0 0
    %2640 = vmatprep.subr.bf16.mxu0 0
    %2641 = vmatpush1.bf16.xpose.msra.mxu0 0
    %2642 = vmatprep.subr.bf16.mxu0 0
    %2643 = vmatpush1.bf16.xpose.msra.mxu0 0
    %2644 = vmatprep.subr.bf16.mxu0 0
    %2645 = vmatpush1.bf16.xpose.msra.mxu0 %v2628
    %2646 = vmatprep.subr.bf16.mxu0 0
    %2647 = vmatpush2.bf16.xpose.msra.mxu0 0
    %2648 = vmatprep.subr.bf16.mxu0 0
    %2649 = vmatpush2.bf16.xpose.msra.mxu0 0
    %2650 = vmatprep.subr.bf16.mxu0 0
    %2651 = vmatpush2.bf16.xpose.msra.mxu0 0
    %2652 = vmatprep.subr.bf16.mxu0 0
    %2653 = vmatpush2.bf16.xpose.msra.mxu0 0
    %2654 = vmatprep.subr.bf16.mxu0 0
    %2655 = vmatpush2.bf16.xpose.msra.mxu0 0
    %2656 = vmatprep.subr.bf16.mxu0 0
    %2657 = vmatpush2.bf16.xpose.msra.mxu0 0
    %2658 = vmatprep.subr.bf16.mxu0 0
    %2659 = vmatpush2.bf16.xpose.msra.mxu0 0
    %2660 = vmatprep.subr.bf16.mxu0 0
    %2661 = vmatpush2.bf16.xpose.msra.mxu0 0
    %2662 = vmatprep.mubr.bf16.mxu0 0
    %2663 = vmatmul.mubr.bf16.gmra.mxu0 %v2625
    %v2664 = vpop.f32.mrf.mxu0
    %v2665 = vadd.f32 0.0, %v2664
    %v2666 = vpop.f32.mrf.mxu0
    %v2667 = vpop.f32.mrf.mxu0
    %v2668 = vpop.f32.mrf.mxu0
    %2669 = vdwg.mxu0
    %2670 = vrot.lane.b32.xlu0 %v1803, 104
    %v2671 = vpop.permute.xlu0 %2670
    %2672 = vrot.lane.b32.xlu0 %v1803, 72
    %v2673 = vpop.permute.xlu0 %2672
    %v2675 = vsel %vm356, %v2671, 0
    %v2678 = vsel %vm356, %v2673, 0
    %2680 = vmatprep.subr.bf16.mxu0 0
    %2681 = vmatpush1.bf16.xpose.msra.mxu0 0
    %2682 = vmatprep.subr.bf16.mxu0 0
    %2683 = vmatpush1.bf16.xpose.msra.mxu0 0
    %2684 = vmatprep.subr.bf16.mxu0 0
    %2685 = vmatpush1.bf16.xpose.msra.mxu0 0
    %2686 = vmatprep.subr.bf16.mxu0 0
    %2687 = vmatpush1.bf16.xpose.msra.mxu0 0
    %2688 = vmatprep.subr.bf16.mxu0 0
    %2689 = vmatpush1.bf16.xpose.msra.mxu0 0
    %2690 = vmatprep.subr.bf16.mxu0 0
    %2691 = vmatpush1.bf16.xpose.msra.mxu0 0
    %2692 = vmatprep.subr.bf16.mxu0 0
    %2693 = vmatpush1.bf16.xpose.msra.mxu0 0
    %2694 = vmatprep.subr.bf16.mxu0 0
    %2695 = vmatpush1.bf16.xpose.msra.mxu0 %v2678
    %2696 = vmatprep.subr.bf16.mxu0 0
    %2697 = vmatpush2.bf16.xpose.msra.mxu0 0
    %2698 = vmatprep.subr.bf16.mxu0 0
    %2699 = vmatpush2.bf16.xpose.msra.mxu0 0
    %2700 = vmatprep.subr.bf16.mxu0 0
    %2701 = vmatpush2.bf16.xpose.msra.mxu0 0
    %2702 = vmatprep.subr.bf16.mxu0 0
    %2703 = vmatpush2.bf16.xpose.msra.mxu0 0
    %2704 = vmatprep.subr.bf16.mxu0 0
    %2705 = vmatpush2.bf16.xpose.msra.mxu0 0
    %2706 = vmatprep.subr.bf16.mxu0 0
    %2707 = vmatpush2.bf16.xpose.msra.mxu0 0
    %2708 = vmatprep.subr.bf16.mxu0 0
    %2709 = vmatpush2.bf16.xpose.msra.mxu0 0
    %2710 = vmatprep.subr.bf16.mxu0 0
    %2711 = vmatpush2.bf16.xpose.msra.mxu0 0
    %2712 = vmatprep.mubr.bf16.mxu0 0
    %2713 = vmatmul.mubr.bf16.gmra.mxu0 %v2675
    %v2714 = vpop.f32.mrf.mxu0
    %v2715 = vadd.f32 0.0, %v2714
    %v2716 = vpop.f32.mrf.mxu0
    %v2717 = vpop.f32.mrf.mxu0
    %v2718 = vpop.f32.mrf.mxu0
    %2719 = vdwg.mxu0
    %v2720 = vmul.f32 %v2665, 0.35355338
    %v2721 = vmul.f32 %v2715, 0.35355338
    %v2722 = vadd.f32 %v2720, %v457
    %v2723 = vadd.f32 %v2721, %v461
    %v2724 = vsel %vm356, %v2722, -inf
    %2725 = vmax.xlane.f32.xlu0 %v2724
    %v2726 = vpop.xlane.xlu0 %2725
    %v2727 = vsel %vm356, %v2723, -inf
    %2728 = vmax.xlane.f32.xlu0 %v2727
    %v2729 = vpop.xlane.xlu0 %2728
    %v2730 = vsub.f32 %v2722, %v2726
    %v2731 = vsub.f32 %v2723, %v2729
    %v2732 = vmul.f32 %v2730, 1.442695
    %v2733 = vpow.pop %v2732
    %v2734 = vmul.f32 %v2731, 1.442695
    %v2735 = vpow.pop %v2734
    %v2736 = vsel %vm356, %v2733, 0.0
    %2737 = vadd.xlane.f32.xlu0 %v2736
    %v2738 = vpop.xlane.xlu0 %2737
    %v2739 = vsel %vm356, %v2735, 0.0
    %2740 = vadd.xlane.f32.xlu0 %v2739
    %v2741 = vpop.xlane.xlu0 %2740
    %v2742 = vrcp.pop %v2738
    %v2743 = vrcp.pop %v2741
    %v2744 = vmul.f32 %v2733, %v2742
    %v2745 = vmul.f32 %v2735, %v2743
    %v2746 = vpack.c.bf16 %v2744, %v2744
    %v2747 = vpack.c.bf16 %v2745, %v2745
    %2748 = vrot.lane.b32.xlu0 %v1802, 40
    %v2749 = vpop.permute.xlu0 %2748
    %v2751 = vsel %vm356, %v2746, 0
    %v2754 = vsel %vm495, %v2749, 0
    %2756 = vmatprep.subr.bf16.mxu0 0
    %2757 = vmatpush1.bf16.msra.mxu0 0
    %2758 = vmatprep.subr.bf16.mxu0 0
    %2759 = vmatpush1.bf16.msra.mxu0 0
    %2760 = vmatprep.subr.bf16.mxu0 0
    %2761 = vmatpush1.bf16.msra.mxu0 0
    %2762 = vmatprep.subr.bf16.mxu0 0
    %2763 = vmatpush1.bf16.msra.mxu0 0
    %2764 = vmatprep.subr.bf16.mxu0 0
    %2765 = vmatpush1.bf16.msra.mxu0 0
    %2766 = vmatprep.subr.bf16.mxu0 0
    %2767 = vmatpush1.bf16.msra.mxu0 0
    %2768 = vmatprep.subr.bf16.mxu0 0
    %2769 = vmatpush1.bf16.msra.mxu0 0
    %2770 = vmatprep.subr.bf16.mxu0 0
    %2771 = vmatpush1.bf16.msra.mxu0 %v2754
    %2772 = vmatprep.subr.bf16.mxu0 0
    %2773 = vmatpush2.bf16.msra.mxu0 0
    %2774 = vmatprep.subr.bf16.mxu0 0
    %2775 = vmatpush2.bf16.msra.mxu0 0
    %2776 = vmatprep.subr.bf16.mxu0 0
    %2777 = vmatpush2.bf16.msra.mxu0 0
    %2778 = vmatprep.subr.bf16.mxu0 0
    %2779 = vmatpush2.bf16.msra.mxu0 0
    %2780 = vmatprep.subr.bf16.mxu0 0
    %2781 = vmatpush2.bf16.msra.mxu0 0
    %2782 = vmatprep.subr.bf16.mxu0 0
    %2783 = vmatpush2.bf16.msra.mxu0 0
    %2784 = vmatprep.subr.bf16.mxu0 0
    %2785 = vmatpush2.bf16.msra.mxu0 0
    %2786 = vmatprep.subr.bf16.mxu0 0
    %2787 = vmatpush2.bf16.msra.mxu0 0
    %2788 = vmatprep.mubr.bf16.mxu0 0
    %2789 = vmatmul.mubr.bf16.gmra.mxu0 %v2751
    %v2790 = vpop.f32.mrf.mxu0
    %v2791 = vadd.f32 0.0, %v2790
    %v2792 = vpop.f32.mrf.mxu0
    %v2793 = vpop.f32.mrf.mxu0
    %v2794 = vpop.f32.mrf.mxu0
    %2795 = vdwg.mxu0
    %2796 = vrot.lane.b32.xlu0 %v1803, 40
    %v2797 = vpop.permute.xlu0 %2796
    %v2799 = vsel %vm356, %v2747, 0
    %v2802 = vsel %vm495, %v2797, 0
    %2804 = vmatprep.subr.bf16.mxu0 0
    %2805 = vmatpush1.bf16.msra.mxu0 0
    %2806 = vmatprep.subr.bf16.mxu0 0
    %2807 = vmatpush1.bf16.msra.mxu0 0
    %2808 = vmatprep.subr.bf16.mxu0 0
    %2809 = vmatpush1.bf16.msra.mxu0 0
    %2810 = vmatprep.subr.bf16.mxu0 0
    %2811 = vmatpush1.bf16.msra.mxu0 0
    %2812 = vmatprep.subr.bf16.mxu0 0
    %2813 = vmatpush1.bf16.msra.mxu0 0
    %2814 = vmatprep.subr.bf16.mxu0 0
    %2815 = vmatpush1.bf16.msra.mxu0 0
    %2816 = vmatprep.subr.bf16.mxu0 0
    %2817 = vmatpush1.bf16.msra.mxu0 0
    %2818 = vmatprep.subr.bf16.mxu0 0
    %2819 = vmatpush1.bf16.msra.mxu0 %v2802
    %2820 = vmatprep.subr.bf16.mxu0 0
    %2821 = vmatpush2.bf16.msra.mxu0 0
    %2822 = vmatprep.subr.bf16.mxu0 0
    %2823 = vmatpush2.bf16.msra.mxu0 0
    %2824 = vmatprep.subr.bf16.mxu0 0
    %2825 = vmatpush2.bf16.msra.mxu0 0
    %2826 = vmatprep.subr.bf16.mxu0 0
    %2827 = vmatpush2.bf16.msra.mxu0 0
    %2828 = vmatprep.subr.bf16.mxu0 0
    %2829 = vmatpush2.bf16.msra.mxu0 0
    %2830 = vmatprep.subr.bf16.mxu0 0
    %2831 = vmatpush2.bf16.msra.mxu0 0
    %2832 = vmatprep.subr.bf16.mxu0 0
    %2833 = vmatpush2.bf16.msra.mxu0 0
    %2834 = vmatprep.subr.bf16.mxu0 0
    %2835 = vmatpush2.bf16.msra.mxu0 0
    %2836 = vmatprep.mubr.bf16.mxu0 0
    %2837 = vmatmul.mubr.bf16.gmra.mxu0 %v2799
    %v2838 = vpop.f32.mrf.mxu0
    %v2839 = vadd.f32 0.0, %v2838
    %v2840 = vpop.f32.mrf.mxu0
    %v2841 = vpop.f32.mrf.mxu0
    %v2842 = vpop.f32.mrf.mxu0
    %2843 = vdwg.mxu0
    %v2844 = vpack.c.bf16 %v2839, %v2791
    %v2846 = vsel %vm356, %v2844, 0
    %v2849 = vsel %vm495, %v1801, 0
    %2851 = vmatprep.subr.bf16.mxu0 0
    %2852 = vmatpush1.bf16.msra.mxu0 0
    %2853 = vmatprep.subr.bf16.mxu0 0
    %2854 = vmatpush1.bf16.msra.mxu0 0
    %2855 = vmatprep.subr.bf16.mxu0 0
    %2856 = vmatpush1.bf16.msra.mxu0 0
    %2857 = vmatprep.subr.bf16.mxu0 0
    %2858 = vmatpush1.bf16.msra.mxu0 0
    %2859 = vmatprep.subr.bf16.mxu0 0
    %2860 = vmatpush1.bf16.msra.mxu0 0
    %2861 = vmatprep.subr.bf16.mxu0 0
    %2862 = vmatpush1.bf16.msra.mxu0 0
    %2863 = vmatprep.subr.bf16.mxu0 0
    %2864 = vmatpush1.bf16.msra.mxu0 0
    %2865 = vmatprep.subr.bf16.mxu0 0
    %2866 = vmatpush1.bf16.msra.mxu0 %v2849
    %2867 = vmatprep.subr.bf16.mxu0 0
    %2868 = vmatpush2.bf16.msra.mxu0 0
    %2869 = vmatprep.subr.bf16.mxu0 0
    %2870 = vmatpush2.bf16.msra.mxu0 0
    %2871 = vmatprep.subr.bf16.mxu0 0
    %2872 = vmatpush2.bf16.msra.mxu0 0
    %2873 = vmatprep.subr.bf16.mxu0 0
    %2874 = vmatpush2.bf16.msra.mxu0 0
    %2875 = vmatprep.subr.bf16.mxu0 0
    %2876 = vmatpush2.bf16.msra.mxu0 0
    %2877 = vmatprep.subr.bf16.mxu0 0
    %2878 = vmatpush2.bf16.msra.mxu0 0
    %2879 = vmatprep.subr.bf16.mxu0 0
    %2880 = vmatpush2.bf16.msra.mxu0 0
    %2881 = vmatprep.subr.bf16.mxu0 0
    %2882 = vmatpush2.bf16.msra.mxu0 0
    %2883 = vmatprep.mubr.bf16.mxu0 0
    %2884 = vmatmul.mubr.bf16.gmra.mxu0 %v2846
    %v2885 = vpop.f32.mrf.mxu0
    %v2886 = vadd.f32 0.0, %v2885
    %v2887 = vpop.f32.mrf.mxu0
    %v2888 = vpop.f32.mrf.mxu0
    %v2889 = vadd.f32 0.0, %v2888
    %v2890 = vpop.f32.mrf.mxu0
    %2891 = vdwg.mxu0
    %v2892 = vadd.f32 %v2618, %v2886
    %v2893 = vadd.f32 %v2619, %v2889
    %s2894 = scalar_lea.vmem [#allocation8], 1
    %v2895 = vld [vmem:[%s2894] sm:$0x1]
    %v2897 = vlaneseq
    %v2898 = vshrl.u32 %v2897, 7
    %v2899 = vsub.s32 0, %v2898
    %v2900 = vrot.slane %v2895, %v2899
    %v2902 = vadd.f32 %v2892, %v2900
    %v2903 = vadd.f32 %v2893, %v2900
    %v2904 = vadd.f32 %v2902, %v1725
    %v2905 = vadd.f32 %v2903, %v1726
    %s2906 = scalar_lea.vmem [#allocation10], 1
    %v2907 = vld [vmem:[%s2906] sm:$0x1]
    %s2908 = scalar_lea.vmem [#allocation11], 1
    %v2909 = vld [vmem:[%s2908] sm:$0x1]
    %v2910 = vsel %vm209, %v2904, 0.0
    %2911 = vadd.xlane.f32.xlu0 %v2910
    %v2912 = vpop.xlane.xlu0 %2911
    %v2913 = vsel %vm209, %v2905, 0.0
    %2914 = vadd.xlane.f32.xlu0 %v2913
    %v2915 = vpop.xlane.xlu0 %2914
    %v2916 = vmul.f32 %v2912, %v216
    %v2917 = vmul.f32 %v2915, %v216
    %v2918 = vsub.f32 %v2904, %v2916
    %v2919 = vsub.f32 %v2905, %v2917
    %v2920 = vmul.f32 %v2918, %v2918
    %v2921 = vmul.f32 %v2919, %v2919
    %v2922 = vsel %vm209, %v2920, 0.0
    %2923 = vadd.xlane.f32.xlu0 %v2922
    %v2924 = vpop.xlane.xlu0 %2923
    %v2925 = vsel %vm209, %v2921, 0.0
    %2926 = vadd.xlane.f32.xlu0 %v2925
    %v2927 = vpop.xlane.xlu0 %2926
    %v2928 = vmul.f32 %v2924, %v216
    %v2929 = vmul.f32 %v2927, %v216
    %v2930 = vadd.f32 %v2928, 1e-12
    %v2931 = vadd.f32 %v2929, 1e-12
    %v2932 = vrsqrt.pop %v2930
    %v2933 = vrsqrt.pop %v2931
    %v2934 = vmul.f32 %v2918, %v2932
    %v2935 = vmul.f32 %v2919, %v2933
    %v2937 = vlaneseq
    %v2938 = vshrl.u32 %v2937, 7
    %v2939 = vsub.s32 0, %v2938
    %v2940 = vrot.slane %v2907, %v2939
    %v2942 = vmul.f32 %v2934, %v2940
    %v2943 = vmul.f32 %v2935, %v2940
    %v2945 = vlaneseq
    %v2946 = vshrl.u32 %v2945, 7
    %v2947 = vsub.s32 0, %v2946
    %v2948 = vrot.slane %v2909, %v2947
    %v2950 = vadd.f32 %v2942, %v2948
    %v2951 = vadd.f32 %v2943, %v2948
    %v2952 = vpack.c.bf16 %v2951, %v2950
    %s2953 = scalar_lea.vmem %s10, 16
    %v2954 = vld [vmem:[%s2953] sm:$0xf]
    %v2955 = vld [vmem:[%s2953 + $0x4] sm:$0xf]
    %v2956 = vld [vmem:[%s2953 + $0x8] sm:$0xf]
    %v2957 = vld [vmem:[%s2953 + $0xc] sm:$0xf]
    %s2958 = scalar_lea.vmem [#allocation13], 1
    %v2959 = vld [vmem:[%s2958] sm:$0x1]
    %v2961 = vlaneseq
    %v2962 = vshrl.u32 %v2961, 7
    %v2963 = vsub.s32 0, %v2962
    %v2964 = vrot.slane %v2959, %v2963
    %v2970 = vunpack.c.l.b16 %v2954
    %v2971 = vunpack.c.l.b16 %v2955
    %v2972 = vunpack.c.l.b16 %v2956
    %v2973 = vunpack.c.l.b16 %v2957
    %v2974 = vpack.c.b16 %v2971, %v2970
    %v2975 = vpack.c.b16 %v2973, %v2972
    %v2979 = vsel %vm209, %v2952, 0
    %2981 = vmatprep.subr.bf16.mxu0 0
    %2982 = vmatpush1.bf16.msra.mxu0 0
    %2983 = vmatprep.subr.bf16.mxu0 0
    %2984 = vmatpush1.bf16.msra.mxu0 0
    %2985 = vmatprep.subr.bf16.mxu0 0
    %2986 = vmatpush1.bf16.msra.mxu0 0
    %2987 = vmatprep.subr.bf16.mxu0 0
    %2988 = vmatpush1.bf16.msra.mxu0 0
    %2989 = vmatprep.subr.bf16.mxu0 0
    %2990 = vmatpush1.bf16.msra.mxu0 0
    %2991 = vmatprep.subr.bf16.mxu0 0
    %2992 = vmatpush1.bf16.msra.mxu0 0
    %2993 = vmatprep.subr.bf16.mxu0 0
    %2994 = vmatpush1.bf16.msra.mxu0 %v2975
    %2995 = vmatprep.subr.bf16.mxu0 0
    %2996 = vmatpush1.bf16.msra.mxu0 %v2974
    %2997 = vmatprep.subr.bf16.mxu0 0
    %2998 = vmatpush2.bf16.msra.mxu0 0
    %2999 = vmatprep.subr.bf16.mxu0 0
    %3000 = vmatpush2.bf16.msra.mxu0 0
    %3001 = vmatprep.subr.bf16.mxu0 0
    %3002 = vmatpush2.bf16.msra.mxu0 0
    %3003 = vmatprep.subr.bf16.mxu0 0
    %3004 = vmatpush2.bf16.msra.mxu0 0
    %3005 = vmatprep.subr.bf16.mxu0 0
    %3006 = vmatpush2.bf16.msra.mxu0 0
    %3007 = vmatprep.subr.bf16.mxu0 0
    %3008 = vmatpush2.bf16.msra.mxu0 0
    %3009 = vmatprep.subr.bf16.mxu0 0
    %3010 = vmatpush2.bf16.msra.mxu0 0
    %3011 = vmatprep.subr.bf16.mxu0 0
    %3012 = vmatpush2.bf16.msra.mxu0 0
    %3013 = vmatprep.mubr.bf16.mxu0 0
    %3014 = vmatmul.mubr.bf16.gmra.mxu0 %v2979
    %v3015 = vpop.f32.mrf.mxu0
    %v3016 = vadd.f32 %v2964, %v3015
    %v3017 = vpop.f32.mrf.mxu0
    %v3018 = vpop.f32.mrf.mxu0
    %v3019 = vadd.f32 %v2964, %v3018
    %v3020 = vpop.f32.mrf.mxu0
    %3021 = vdwg.mxu0
    %v3022 = vmul.f32 %v3016, %v3016
    %v3023 = vmul.f32 %v3019, %v3019
    %v3024 = vmul.f32 %v3016, %v3022
    %v3025 = vmul.f32 %v3019, %v3023
    %v3026 = vmul.f32 %v3024, 0.044715
    %v3027 = vmul.f32 %v3025, 0.044715
    %v3028 = vadd.f32 %v3016, %v3026
    %v3029 = vadd.f32 %v3019, %v3027
    %v3030 = vmul.f32 %v3028, 0.7978846
    %v3031 = vmul.f32 %v3029, 0.7978846
    %v3032 = vtanh.pop %v3030
    %v3033 = vtanh.pop %v3031
    %v3034 = vadd.f32 %v3032, 1.0
    %v3035 = vadd.f32 %v3033, 1.0
    %v3036 = vmul.f32 %v3034, 0.5
    %v3037 = vmul.f32 %v3035, 0.5
    %v3038 = vmul.f32 %v3016, %v3036
    %v3039 = vmul.f32 %v3019, %v3037
    %v3040 = vpack.c.bf16 %v3039, %v3038
    %s3041 = scalar_lea.vmem %s12, 32
    %v3042 = vld [vmem:[%s3041] sm:$0xf]
    %v3043 = vld [vmem:[%s3041 + $0x4] sm:$0xf]
    %v3044 = vld [vmem:[%s3041 + $0x8] sm:$0xf]
    %v3045 = vld [vmem:[%s3041 + $0xc] sm:$0xf]
    %v3046 = vld [vmem:[%s3041 + $0x10] sm:$0xf]
    %v3047 = vld [vmem:[%s3041 + $0x14] sm:$0xf]
    %v3048 = vld [vmem:[%s3041 + $0x18] sm:$0xf]
    %v3049 = vld [vmem:[%s3041 + $0x1c] sm:$0xf]
    %s3050 = scalar_lea.vmem [#allocation14], 1
    %v3051 = vld [vmem:[%s3050] sm:$0x1]
    %v3053 = vlaneseq
    %v3054 = vshrl.u32 %v3053, 7
    %v3055 = vsub.s32 0, %v3054
    %v3056 = vrot.slane %v3051, %v3055
    %v3066 = vunpack.c.l.b16 %v3042
    %v3067 = vunpack.c.l.b16 %v3043
    %v3068 = vunpack.c.l.b16 %v3044
    %v3069 = vunpack.c.l.b16 %v3045
    %v3070 = vunpack.c.l.b16 %v3046
    %v3071 = vunpack.c.l.b16 %v3047
    %v3072 = vunpack.c.l.b16 %v3048
    %v3073 = vunpack.c.l.b16 %v3049
    %v3074 = vpack.c.b16 %v3067, %v3066
    %v3075 = vpack.c.b16 %v3069, %v3068
    %v3076 = vpack.c.b16 %v3071, %v3070
    %v3077 = vpack.c.b16 %v3073, %v3072
    %v3083 = vsel %vm1636, %v3040, 0
    %3085 = vmatprep.subr.bf16.mxu0 0
    %3086 = vmatpush1.bf16.msra.mxu0 0
    %3087 = vmatprep.subr.bf16.mxu0 0
    %3088 = vmatpush1.bf16.msra.mxu0 0
    %3089 = vmatprep.subr.bf16.mxu0 0
    %3090 = vmatpush1.bf16.msra.mxu0 0
    %3091 = vmatprep.subr.bf16.mxu0 0
    %3092 = vmatpush1.bf16.msra.mxu0 0
    %3093 = vmatprep.subr.bf16.mxu0 0
    %3094 = vmatpush1.bf16.msra.mxu0 %v3077
    %3095 = vmatprep.subr.bf16.mxu0 0
    %3096 = vmatpush1.bf16.msra.mxu0 %v3076
    %3097 = vmatprep.subr.bf16.mxu0 0
    %3098 = vmatpush1.bf16.msra.mxu0 %v3075
    %3099 = vmatprep.subr.bf16.mxu0 0
    %3100 = vmatpush1.bf16.msra.mxu0 %v3074
    %3101 = vmatprep.subr.bf16.mxu0 0
    %3102 = vmatpush2.bf16.msra.mxu0 0
    %3103 = vmatprep.subr.bf16.mxu0 0
    %3104 = vmatpush2.bf16.msra.mxu0 0
    %3105 = vmatprep.subr.bf16.mxu0 0
    %3106 = vmatpush2.bf16.msra.mxu0 0
    %3107 = vmatprep.subr.bf16.mxu0 0
    %3108 = vmatpush2.bf16.msra.mxu0 0
    %3109 = vmatprep.subr.bf16.mxu0 0
    %3110 = vmatpush2.bf16.msra.mxu0 0
    %3111 = vmatprep.subr.bf16.mxu0 0
    %3112 = vmatpush2.bf16.msra.mxu0 0
    %3113 = vmatprep.subr.bf16.mxu0 0
    %3114 = vmatpush2.bf16.msra.mxu0 0
    %3115 = vmatprep.subr.bf16.mxu0 0
    %3116 = vmatpush2.bf16.msra.mxu0 0
    %3117 = vmatprep.mubr.bf16.mxu0 0
    %3118 = vmatmul.mubr.bf16.gmra.mxu0 %v3083
    %v3119 = vpop.f32.mrf.mxu0
    %v3120 = vadd.f32 %v3056, %v3119
    %v3121 = vpop.f32.mrf.mxu0
    %v3122 = vpop.f32.mrf.mxu0
    %v3123 = vadd.f32 %v3056, %v3122
    %v3124 = vpop.f32.mrf.mxu0
    %3125 = vdwg.mxu0
    %v3126 = vadd.f32 %v3120, %v2950
    %v3127 = vadd.f32 %v3123, %v2951
    %s3128 = scalar_lea.vmem [#allocation16], 1
    %v3129 = vld [vmem:[%s3128] sm:$0x1]
    %s3130 = scalar_lea.vmem %s15, 1
    %v3131 = vld [vmem:[%s3130] sm:$0x1]
    %v3132 = vsel %vm209, %v3126, 0.0
    %3133 = vadd.xlane.f32.xlu0 %v3132
    %v3134 = vpop.xlane.xlu0 %3133
    %v3135 = vsel %vm209, %v3127, 0.0
    %3136 = vadd.xlane.f32.xlu0 %v3135
    %v3137 = vpop.xlane.xlu0 %3136
    %v3138 = vmul.f32 %v3134, %v216
    %v3139 = vmul.f32 %v3137, %v216
    %v3140 = vsub.f32 %v3126, %v3138
    %v3141 = vsub.f32 %v3127, %v3139
    %v3142 = vmul.f32 %v3140, %v3140
    %v3143 = vmul.f32 %v3141, %v3141
    %v3144 = vsel %vm209, %v3142, 0.0
    %3145 = vadd.xlane.f32.xlu0 %v3144
    %v3146 = vpop.xlane.xlu0 %3145
    %v3147 = vsel %vm209, %v3143, 0.0
    %3148 = vadd.xlane.f32.xlu0 %v3147
    %v3149 = vpop.xlane.xlu0 %3148
    %v3150 = vmul.f32 %v3146, %v216
    %v3151 = vmul.f32 %v3149, %v216
    %v3152 = vadd.f32 %v3150, 1e-12
    %v3153 = vadd.f32 %v3151, 1e-12
    %v3154 = vrsqrt.pop %v3152
    %v3155 = vrsqrt.pop %v3153
    %v3156 = vmul.f32 %v3140, %v3154
    %v3157 = vmul.f32 %v3141, %v3155
    %v3159 = vlaneseq
    %v3160 = vshrl.u32 %v3159, 7
    %v3161 = vsub.s32 0, %v3160
    %v3162 = vrot.slane %v3129, %v3161
    %v3164 = vmul.f32 %v3156, %v3162
    %v3165 = vmul.f32 %v3157, %v3162
    %v3167 = vlaneseq
    %v3168 = vshrl.u32 %v3167, 7
    %v3169 = vsub.s32 0, %v3168
    %v3170 = vrot.slane %v3131, %v3169
    %v3172 = vadd.f32 %v3164, %v3170
    %v3173 = vadd.f32 %v3165, %v3170
    %v3174 = vpack.c.bf16 %v3172, %v3172
    %v3175 = vpack.c.bf16 %v3173, %v3173
    %v3176 = vld [vmem:[#allocation17] sm:$0xf]
    %v3177 = vld [vmem:[#allocation17 + $0x4] sm:$0xf]
    %v3178 = vld [vmem:[#allocation17 + $0x8] sm:$0xf]
    %v3179 = vld [vmem:[#allocation17 + $0xc] sm:$0xf]
    %v3180 = vld [vmem:[%s17] sm:$0x1]
    %v3182 = vlaneseq
    %v3183 = vshrl.u32 %v3182, 7
    %v3184 = vsub.s32 0, %v3183
    %v3185 = vrot.slane %v3180, %v3184
    %v3189 = vunpack.c.l.b16 %v3174
    %v3190 = vunpack.c.l.b16 %v3175
    %v3191 = vrot.slane %v3190, 7
    %vm3192 = vcmask 1041409
    %v3193 = vsel %vm3192, %v3191, %v3189
    %v3194 = vpack.c.b16 %v3193, %v3193
    %v3199 = vunpack.c.l.b16 %v3176
    %v3200 = vunpack.c.l.b16 %v3177
    %v3201 = vunpack.c.l.b16 %v3178
    %v3202 = vunpack.c.l.b16 %v3179
    %v3203 = vpack.c.b16 %v3200, %v3199
    %v3204 = vpack.c.b16 %v3202, %v3201
    %v3208 = vsel %vm209, %v3194, 0
    %3210 = vmatprep.subr.bf16.mxu0 0
    %3211 = vmatpush1.bf16.msra.mxu0 0
    %3212 = vmatprep.subr.bf16.mxu0 0
    %3213 = vmatpush1.bf16.msra.mxu0 0
    %3214 = vmatprep.subr.bf16.mxu0 0
    %3215 = vmatpush1.bf16.msra.mxu0 0
    %3216 = vmatprep.subr.bf16.mxu0 0
    %3217 = vmatpush1.bf16.msra.mxu0 0
    %3218 = vmatprep.subr.bf16.mxu0 0
    %3219 = vmatpush1.bf16.msra.mxu0 0
    %3220 = vmatprep.subr.bf16.mxu0 0
    %3221 = vmatpush1.bf16.msra.mxu0 0
    %3222 = vmatprep.subr.bf16.mxu0 0
    %3223 = vmatpush1.bf16.msra.mxu0 %v3204
    %3224 = vmatprep.subr.bf16.mxu0 0
    %3225 = vmatpush1.bf16.msra.mxu0 %v3203
    %3226 = vmatprep.subr.bf16.mxu0 0
    %3227 = vmatpush2.bf16.msra.mxu0 0
    %3228 = vmatprep.subr.bf16.mxu0 0
    %3229 = vmatpush2.bf16.msra.mxu0 0
    %3230 = vmatprep.subr.bf16.mxu0 0
    %3231 = vmatpush2.bf16.msra.mxu0 0
    %3232 = vmatprep.subr.bf16.mxu0 0
    %3233 = vmatpush2.bf16.msra.mxu0 0
    %3234 = vmatprep.subr.bf16.mxu0 0
    %3235 = vmatpush2.bf16.msra.mxu0 0
    %3236 = vmatprep.subr.bf16.mxu0 0
    %3237 = vmatpush2.bf16.msra.mxu0 0
    %3238 = vmatprep.subr.bf16.mxu0 0
    %3239 = vmatpush2.bf16.msra.mxu0 0
    %3240 = vmatprep.subr.bf16.mxu0 0
    %3241 = vmatpush2.bf16.msra.mxu0 0
    %3242 = vmatprep.mubr.bf16.mxu0 0
    %3243 = vmatmul.mubr.bf16.gmra.mxu0 %v3208
    %v3244 = vpop.f32.mrf.mxu0
    %v3245 = vadd.f32 %v3185, %v3244
    %v3246 = vpop.f32.mrf.mxu0
    %v3247 = vpop.f32.mrf.mxu0
    %v3248 = vpop.f32.mrf.mxu0
    %3249 = vdwg.mxu0
    %v3250 = vtanh.pop %v3245
    %v3251 = vmax.f32 %v3250, 0.0
    %v3252 = vpack.c.bf16 %v3251, %v3251
    %v3253 = vld [vmem:[%s18] sm:$0xf]
    %v3254 = vld [vmem:[%s18 + $0x4] sm:$0xf]
    %v3255 = vld [vmem:[%s18 + $0x8] sm:$0xf]
    %v3256 = vld [vmem:[%s18 + $0xc] sm:$0xf]
    %v3257 = vld [vmem:[%s19] sm:$0x1]
    %v3259 = vlaneseq
    %v3260 = vshrl.u32 %v3259, 7
    %v3261 = vsub.s32 0, %v3260
    %v3262 = vrot.slane %v3257, %v3261
    %v3268 = vunpack.c.l.b16 %v3253
    %v3269 = vunpack.c.l.b16 %v3254
    %v3270 = vunpack.c.l.b16 %v3255
    %v3271 = vunpack.c.l.b16 %v3256
    %v3272 = vpack.c.b16 %v3269, %v3268
    %v3273 = vpack.c.b16 %v3271, %v3270
    %v3277 = vsel %vm209, %v3252, 0
    %3279 = vmatprep.subr.bf16.mxu0 0
    %3280 = vmatpush1.bf16.msra.mxu0 0
    %3281 = vmatprep.subr.bf16.mxu0 0
    %3282 = vmatpush1.bf16.msra.mxu0 0
    %3283 = vmatprep.subr.bf16.mxu0 0
    %3284 = vmatpush1.bf16.msra.mxu0 0
    %3285 = vmatprep.subr.bf16.mxu0 0
    %3286 = vmatpush1.bf16.msra.mxu0 0
    %3287 = vmatprep.subr.bf16.mxu0 0
    %3288 = vmatpush1.bf16.msra.mxu0 0
    %3289 = vmatprep.subr.bf16.mxu0 0
    %3290 = vmatpush1.bf16.msra.mxu0 0
    %3291 = vmatprep.subr.bf16.mxu0 0
    %3292 = vmatpush1.bf16.msra.mxu0 %v3273
    %3293 = vmatprep.subr.bf16.mxu0 0
    %3294 = vmatpush1.bf16.msra.mxu0 %v3272
    %3295 = vmatprep.subr.bf16.mxu0 0
    %3296 = vmatpush2.bf16.msra.mxu0 0
    %3297 = vmatprep.subr.bf16.mxu0 0
    %3298 = vmatpush2.bf16.msra.mxu0 0
    %3299 = vmatprep.subr.bf16.mxu0 0
    %3300 = vmatpush2.bf16.msra.mxu0 0
    %3301 = vmatprep.subr.bf16.mxu0 0
    %3302 = vmatpush2.bf16.msra.mxu0 0
    %3303 = vmatprep.subr.bf16.mxu0 0
    %3304 = vmatpush2.bf16.msra.mxu0 0
    %3305 = vmatprep.subr.bf16.mxu0 0
    %3306 = vmatpush2.bf16.msra.mxu0 0
    %3307 = vmatprep.subr.bf16.mxu0 0
    %3308 = vmatpush2.bf16.msra.mxu0 0
    %3309 = vmatprep.subr.bf16.mxu0 0
    %3310 = vmatpush2.bf16.msra.mxu0 0
    %3311 = vmatprep.mubr.bf16.mxu0 0
    %3312 = vmatmul.mubr.bf16.gmra.mxu0 %v3277
    %v3313 = vpop.f32.mrf.mxu0
    %v3314 = vadd.f32 %v3262, %v3313
    %v3315 = vpop.f32.mrf.mxu0
    %v3316 = vpop.f32.mrf.mxu0
    %v3317 = vpop.f32.mrf.mxu0
    %3318 = vdwg.mxu0
    %v3319 = vmax.f32 %v3314, 0.0
    %v3320 = vpack.c.bf16 %v3319, %v3319
    %v3321 = vld [vmem:[%s20] sm:$0xf]
    %v3322 = vld [vmem:[%s20 + $0x4] sm:$0xf]
    %v3323 = vld [vmem:[%s21] sm:$0x1]
    %v3325 = vlaneseq
    %v3326 = vshrl.u32 %v3325, 7
    %v3327 = vsub.s32 0, %v3326
    %v3328 = vrot.slane %v3323, %v3327
    %v3332 = vunpack.c.l.b16 %v3321
    %v3333 = vunpack.c.l.b16 %v3322
    %v3334 = vpack.c.b16 %v3333, %v3332
    %vm3336 = vcmask 130048
    %v3338 = vsel %vm3336, %v3320, 0
    %3340 = vmatprep.subr.bf16.mxu0 0
    %3341 = vmatpush1.bf16.msra.mxu0 0
    %3342 = vmatprep.subr.bf16.mxu0 0
    %3343 = vmatpush1.bf16.msra.mxu0 0
    %3344 = vmatprep.subr.bf16.mxu0 0
    %3345 = vmatpush1.bf16.msra.mxu0 0
    %3346 = vmatprep.subr.bf16.mxu0 0
    %3347 = vmatpush1.bf16.msra.mxu0 0
    %3348 = vmatprep.subr.bf16.mxu0 0
    %3349 = vmatpush1.bf16.msra.mxu0 0
    %3350 = vmatprep.subr.bf16.mxu0 0
    %3351 = vmatpush1.bf16.msra.mxu0 0
    %3352 = vmatprep.subr.bf16.mxu0 0
    %3353 = vmatpush1.bf16.msra.mxu0 0
    %3354 = vmatprep.subr.bf16.mxu0 0
    %3355 = vmatpush1.bf16.msra.mxu0 %v3334
    %3356 = vmatprep.subr.bf16.mxu0 0
    %3357 = vmatpush2.bf16.msra.mxu0 0
    %3358 = vmatprep.subr.bf16.mxu0 0
    %3359 = vmatpush2.bf16.msra.mxu0 0
    %3360 = vmatprep.subr.bf16.mxu0 0
    %3361 = vmatpush2.bf16.msra.mxu0 0
    %3362 = vmatprep.subr.bf16.mxu0 0
    %3363 = vmatpush2.bf16.msra.mxu0 0
    %3364 = vmatprep.subr.bf16.mxu0 0
    %3365 = vmatpush2.bf16.msra.mxu0 0
    %3366 = vmatprep.subr.bf16.mxu0 0
    %3367 = vmatpush2.bf16.msra.mxu0 0
    %3368 = vmatprep.subr.bf16.mxu0 0
    %3369 = vmatpush2.bf16.msra.mxu0 0
    %3370 = vmatprep.subr.bf16.mxu0 0
    %3371 = vmatpush2.bf16.msra.mxu0 0
    %3372 = vmatprep.mubr.bf16.mxu0 0
    %3373 = vmatmul.mubr.bf16.gmra.mxu0 %v3338
    %v3374 = vpop.f32.mrf.mxu0
    %v3375 = vadd.f32 %v3328, %v3374
    %v3376 = vpop.f32.mrf.mxu0
    %v3377 = vpop.f32.mrf.mxu0
    %v3378 = vpop.f32.mrf.mxu0
    %3379 = vdwg.mxu0
    %v3380 = vxor.u32 %v3375, 2147483648
    %v3381 = vmul.f32 %v3380, 1.442695
    %v3382 = vpow.pop %v3381
    %v3383 = vadd.f32 %v3382, 1.0
    %v3384 = vrcp.pop %v3383
    %v3385 = vmul.f32 1.0, %v3384
    %vm3386 = vcmask 25600
    %3387 = vst.msk [vmem:[#allocation19] sm:$0x3] %vm3386, %v3385
    // Predicated region
    $region130: #{tpu_custom_call.1} parent=1 // pred_check
      _
    $region131: #{tpu_custom_call.1} parent=1 // pred_check_branch
      %3389 = sbr.rel (0) target = $region133
    $region132: #{tpu_custom_call.1} parent=1 // pred_region
      %s3391 = ssub.s32 32, 32
      %3392 = vsyncadd [#allocation4], %s3391
      %s3394 = sshll.u32 [#allocation19], 4
      %s3395 = int_to_ptr.vmem [resolvable:$true] %s3394
      %3397 = dma.vmem_to_hbm [thread:$0]  %s3395, 32, %s22, [#allocation4]
    $region133: #{tpu_custom_call.1} parent=1 // pred_fallthru
      _
    // Predicated region
    $region134: #{tpu_custom_call.1} parent=1 // pred_check
      _
    $region135: #{tpu_custom_call.1} parent=1 // pred_check_branch
      %3399 = sbr.rel (0) target = $region137
    $region136: #{tpu_custom_call.1} parent=1 // pred_region
      %3400 = dma.done [#allocation4], 32
    $region137: #{tpu_custom_call.1} parent=1 // pred_fallthru
      _
    %3401 = vsyncpa [#allocation3], 1
    %3402 = vsyncpa [#allocation6], 1
    %3403 = vsyncpa [#allocation9], 1
    %3404 = vsyncpa [#allocation12], 1
    %3405 = vsyncpa [#allocation15], 1
    %3406 = vsyncpa [#allocation18], 1
    %3407 = vsyncpa [#allocation4], 1

</llo_original>
